<compile_context>
chip_gen: v5e
topology: v5e:2x2
jax: 0.10.0
libtpu: 0.0.40
codegen_flags: <defaults>
</compile_context>

<pallas_src>
import functools

import jax
import jax.numpy as jnp
import numpy as np
from jax.experimental import pallas as pl
from jax.experimental.pallas import tpu as pltpu

EPS = 1e-5


def _round_up(x, m):
    return (x + m - 1) // m * m


# ----------------------------------------------------------------------------
# Fused generator kernel (one grid step = S batch samples, stacked on sublanes)
# ----------------------------------------------------------------------------
def _make_fused_kernel(layout, n_res, F, R, S, OW):
    C1, C2, C4 = F, 2 * F, 4 * F
    SR = S * R
    f32 = jnp.float32

    def kernel(x_ref, w_ref, o_ref):
        def blk(name):
            off, rows, cols = layout[name]
            return w_ref[off:off + rows, 0:cols]        # static ref slice -> load

        def dot(a, b):
            return jnp.dot(a, b, preferred_element_type=f32)

        # Per-sample boundary row masks (2-D iota, pure VPU).  Row s*R is the
        # first time-row of sample s; row s*R + R-1 its last.
        row = jax.lax.broadcasted_iota(jnp.int32, (SR, 1), 0)
        first = functools.reduce(
            jnp.logical_or, [row == s * R for s in range(S)]).astype(f32)
        last = functools.reduce(
            jnp.logical_or, [row == s * R + (R - 1) for s in range(S)]).astype(f32)
        nfirst, nlast = 1.0 - first, 1.0 - last

        def rolls(h):
            # Sublane rotations on the XLU (no MXU on the shift path).  Wrapped
            # rows are always overwritten by the boundary masks below.
            dn = pltpu.roll(h, 1, axis=0)        # row j <- h[j-1]
            up = pltpu.roll(h, SR - 1, axis=0)   # row j <- h[j+1]
            return dn, up

        def inorm_act(y, g, C, gb_name=None, relu=True):
            """InstanceNorm over the g*R positions of each channel, computed
            independently per sample (per R-row block).  Grouped layout:
            column r*C + c holds channel c at time phase r."""
            npos = float(g * R)
            parts = []
            for s in range(S):
                ys = y[s * R:(s + 1) * R, :]
                s1 = jnp.sum(ys, axis=0, keepdims=True)
                s2 = jnp.sum(ys * ys, axis=0, keepdims=True)
                if g > 1:
                    t1, t2 = s1[:, 0:C], s2[:, 0:C]
                    for i in range(1, g):
                        t1 = t1 + s1[:, i * C:(i + 1) * C]
                        t2 = t2 + s2[:, i * C:(i + 1) * C]
                    s1, s2 = t1, t2
                mean = s1 / npos
                var = s2 / npos - mean * mean            # biased variance (IN)
                inv = jax.lax.rsqrt(var + EPS)
                if g > 1:
                    mean = jnp.concatenate([mean] * g, axis=1)
                    inv = jnp.concatenate([inv] * g, axis=1)
                parts.append((ys - mean) * inv)
            y = parts[0] if S == 1 else jnp.concatenate(parts, axis=0)
            if gb_name is not None:
                gb = blk(gb_name)
                y = y * gb[0:1, :] + gb[1:2, :]
            return jnp.maximum(y, 0.0) if relu else y

        # ---- initial: Conv(k=7, s=1, reflect p=3) + IN(affine) + ReLU -------
        # x_ref holds the length-10 reflect-padded windows; output "quad"
        # layout (SR, 4*F): 4 consecutive time steps per row.
        h = dot(x_ref[...], blk("w_init"))
        h = inorm_act(h, 4, C1, "gb_init")

        # ---- down1: Conv(k=4, s=2, zero p=1) + IN + ReLU : quad(F)->pair(2F)
        dn, up = rolls(h)
        ctx = jnp.concatenate(
            [dn[:, 3 * C1:4 * C1] * nfirst, h, up[:, 0:C1] * nlast], axis=1)
        h = inorm_act(dot(ctx, blk("w_d1")), 2, C2, "gb_d1")

        # ---- down2: Conv(k=4, s=2, zero p=1) + IN + ReLU : pair(2F)->nat(4F)
        dn, up = rolls(h)
        ctx = jnp.concatenate(
            [dn[:, C2:2 * C2] * nfirst, h, up[:, 0:C2] * nlast], axis=1)
        h = inorm_act(dot(ctx, blk("w_d2")), 1, C4, "gb_d2")

        # ---- residual blocks: Conv(k=3, reflect p=1) x2, natural(4F) --------
        for i in range(n_res):
            dn, up = rolls(h)
            rf_dn = dn * nfirst + up * first
            rf_up = up * nlast + dn * last
            t = inorm_act(dot(jnp.concatenate([rf_dn, h, rf_up], axis=1),
                              blk(f"w_r{i}a")), 1, C4)
            dn, up = rolls(t)
            rf_dn = dn * nfirst + up * first
            rf_up = up * nlast + dn * last
            t = inorm_act(dot(jnp.concatenate([rf_dn, t, rf_up], axis=1),
                              blk(f"w_r{i}b")), 1, C4, relu=False)
            h = h + t

        # ---- up1: ConvTranspose(k=4, s=2, p=1), polyphase: nat(4F)->pair(2F)
        dn, up = rolls(h)
        ctx = jnp.concatenate([dn * nfirst, h, up * nlast], axis=1)
        h = inorm_act(dot(ctx, blk("w_u1")), 2, C2, "gb_u1")

        # ---- up2: ConvTranspose(k=4, s=2, p=1), polyphase: pair(2F)->quad(F)
        dn, up = rolls(h)
        ctx = jnp.concatenate(
            [dn[:, C2:2 * C2] * nfirst, h, up[:, 0:C2] * nlast], axis=1)
        h = inorm_act(dot(ctx, blk("w_u2")), 4, C1, "gb_u2")

        # ---- output: Conv(k=7, s=1, reflect p=3) + Tanh, lane-dense store ---
        dn, up = rolls(h)
        refl_prev = jnp.concatenate(
            [h[:, 3 * C1:4 * C1], h[:, 2 * C1:3 * C1], h[:, C1:2 * C1]], axis=1)
        refl_next = jnp.concatenate(
            [h[:, 2 * C1:3 * C1], h[:, C1:2 * C1], h[:, 0:C1]], axis=1)
        prev_part = dn[:, C1:4 * C1] * nfirst + refl_prev * first
        next_part = up[:, 0:3 * C1] * nlast + refl_next * last
        ctx = jnp.concatenate([prev_part, h, next_part], axis=1)
        y = dot(ctx, blk("w_out")) + blk("b_out")   # weight/bias padded to OW lanes
        o_ref[...] = jnp.tanh(y)

    return kernel


# ----------------------------------------------------------------------------
# Weight preparation: PyTorch conv weights -> single-matmul block matrices
# ----------------------------------------------------------------------------
def _prep_initial(w):
    """Conv1d (F, Cin, 7), stride 1, pad 3: quad output phase r uses window
    offset r+k for tap k.  -> (10*Cin, 4*F)."""
    F, Cin, K = w.shape
    W = jnp.zeros((10 * Cin, 4 * F), jnp.float32)
    for r in range(4):
        for k in range(K):
            s = r + k
            W = W.at[s * Cin:(s + 1) * Cin, r * F:(r + 1) * F].set(w[:, :, k].T)
    return W


def _prep_down(w, G):
    """Conv1d (Cout, Cin, 4), stride 2, zero pad 1: output phase r uses input
    block 2r+k for tap k.  -> ((2G+2)*Cin, G*Cout)."""
    Cout, Cin, K = w.shape
    W = jnp.zeros(((2 * G + 2) * Cin, G * Cout), jnp.float32)
    for r in range(G):
        for k in range(K):
            p = 2 * r + k
            W = W.at[p * Cin:(p + 1) * Cin, r * Cout:(r + 1) * Cout].set(w[:, :, k].T)
    return W


def _prep_res(w):
    """Conv1d (C, C, 3), stride 1, reflect pad 1 -> (3C, C)."""
    return jnp.concatenate([w[:, :, k].T for k in range(3)], axis=0)


def _prep_up(w, G):
    """ConvTranspose1d (Cin, Cout, 4), stride 2, pad 1, polyphase:
       even output phase r: x[r//2]@W3 + x[r//2+1]@W1
       odd  output phase r: x[(r+1)//2]@W2 + x[(r+1)//2+1]@W0
    (blocks indexed in the context [x[i-1], x[i], ...]).  -> ((G//2+2)*Cin, G*Cout)."""
    Cin, Cout, K = w.shape
    P = G // 2 + 2
    W = jnp.zeros((P * Cin, G * Cout), jnp.float32)
    for r in range(G):
        if r % 2 == 0:
            taps = [(r // 2, 3), (r // 2 + 1, 1)]
        else:
            taps = [((r + 1) // 2, 2), ((r + 1) // 2 + 1, 0)]
        for p, k in taps:
            W = W.at[p * Cin:(p + 1) * Cin, r * Cout:(r + 1) * Cout].set(w[:, :, k])
    return W


def _prep_out(w):
    """Conv1d (out_ch, F, 7), stride 1, reflect pad 3 -> (10*F, 4*out_ch)."""
    out_ch, Cin, K = w.shape
    W = jnp.zeros((10 * Cin, 4 * out_ch), jnp.float32)
    for r in range(4):
        for k in range(K):
            p = r + k
            W = W.at[p * Cin:(p + 1) * Cin, r * out_ch:(r + 1) * out_ch].set(w[:, :, k].T)
    return W


def _gb(gamma, beta, g):
    return jnp.stack([jnp.tile(gamma, g), jnp.tile(beta, g)]).astype(jnp.float32)


# ----------------------------------------------------------------------------
# Generator forward pass (single fused pallas_call, one packed constant slab)
# ----------------------------------------------------------------------------
def generator_forward(params, x_ncl, samples_per_step=None):
    N, in_ch, L = x_ncl.shape
    assert L % 4 == 0 and L >= 8, "sequence length must be a multiple of 4 (>= 8)"
    R = L // 4
    F = params["initial"]["w"].shape[0]
    out_ch = params["output"]["w"].shape[0]
    n_res = len(params["res"])
    OW = _round_up(4 * out_ch, 128)          # lane-dense output width

    # Samples folded into the matmul M dimension per grid step.  Keep the grid
    # length >= 2 when the batch allows it so both v7x TensorCores get work;
    # single-TC parts (v5e/v6e) just see a shorter serial loop.
    if samples_per_step is None:
        S = N // 2 if (N % 2 == 0 and N >= 2) else 1
    else:
        S = samples_per_step
    if N % S != 0:
        S = 1
    if (S * R) % 8 != 0:
        S = N                                # block == full array -> exempt
    G = N // S

    # Initial-conv input windows: reflect pad by 3, one 10-sample window per
    # quad of output positions (positions 4i..4i+3 need taps 4i..4i+9).
    x = jnp.transpose(x_ncl, (0, 2, 1)).astype(jnp.float32)        # (N, L, Cin)
    x_rp = jnp.pad(x, ((0, 0), (3, 3), (0, 0)), mode="reflect")    # (N, L+6, Cin)
    win = 4 * jnp.arange(R)[:, None] + jnp.arange(10)[None, :]     # (R, 10)
    xw = x_rp[:, win, :].reshape(N * R, 10 * in_ch)

    # Per-layer block weights.  Conv biases feeding InstanceNorm are dropped:
    # IN subtracts the per-channel mean, so they are an exact no-op.
    p = params
    blocks = [
        ("w_init", _prep_initial(p["initial"]["w"]), None),
        ("gb_init", _gb(p["initial"]["g"], p["initial"]["be"], 4), None),
        ("w_d1", _prep_down(p["down1"]["w"], 2), None),
        ("gb_d1", _gb(p["down1"]["g"], p["down1"]["be"], 2), None),
        ("w_d2", _prep_down(p["down2"]["w"], 1), None),
        ("gb_d2", _gb(p["down2"]["g"], p["down2"]["be"], 1), None),
    ]
    for i, rp in enumerate(p["res"]):
        blocks += [(f"w_r{i}a", _prep_res(rp["w1"]), None),
                   (f"w_r{i}b", _prep_res(rp["w2"]), None)]
    blocks += [
        ("w_u1", _prep_up(p["up1"]["w"], 2), None),
        ("gb_u1", _gb(p["up1"]["g"], p["up1"]["be"], 2), None),
        ("w_u2", _prep_up(p["up2"]["w"], 4), None),
        ("gb_u2", _gb(p["up2"]["g"], p["up2"]["be"], 4), None),
        ("w_out", _prep_out(p["output"]["w"]), OW),        # zero-padded to OW lanes
        ("b_out",
         jnp.tile(p["output"]["b"], 4).reshape(1, 4 * out_ch).astype(jnp.float32), OW),
    ]

    # Pack everything into a single lane-aligned f32 slab (8-row aligned block
    # starts, last dim padded to a multiple of 128).
    max_cols = max(max(a.shape[1] for _, a, _ in blocks), OW)
    LW = _round_up(max_cols, 128)
    layout, parts, off = {}, [], 0
    for name, a, load_cols in blocks:
        r, c = a.shape
        rpad = _round_up(r, 8)
        layout[name] = (off, r, c if load_cols is None else load_cols)
        parts.append(jnp.pad(a.astype(jnp.float32), ((0, rpad - r), (0, LW - c))))
        off += rpad
    slab = jnp.concatenate(parts, axis=0)                  # (total_rows, LW)

    out2 = pl.pallas_call(
        _make_fused_kernel(layout, n_res, F, R, S, OW),
        out_shape=jax.ShapeDtypeStruct((N * R, OW), jnp.float32),
        grid=(G,),
        in_specs=[
            pl.BlockSpec((S * R, 10 * in_ch), lambda g: (g, 0)),
            pl.BlockSpec(slab.shape, lambda g: (0, 0)),    # resident constant slab
        ],
        out_specs=pl.BlockSpec((S * R, OW), lambda g: (g, 0)),
        compiler_params=pltpu.CompilerParams(dimension_semantics=("parallel",)),
    )(xw, slab)

    # lane-dense quad layout (N*R, OW) -> NCL (N, out_ch, L)
    y = out2[:, :4 * out_ch].reshape(N, L, out_ch)
    return jnp.transpose(y, (0, 2, 1))


# ----------------------------------------------------------------------------
# Independent pure-XLA reference (structural correctness check)
# ----------------------------------------------------------------------------
def reference_forward(params, x_ncl):
    hp = jax.lax.Precision.HIGHEST

    def conv(x, w, b, stride, pad, reflect):
        if reflect:
            x = jnp.pad(x, ((0, 0), (0, 0), (pad, pad)), mode="reflect")
            padding = [(0, 0)]
        else:
            padding = [(pad, pad)]
        y = jax.lax.conv_general_dilated(
            x, w, window_strides=(stride,), padding=padding,
            dimension_numbers=("NCH", "OIH", "NCH"), precision=hp)
        return y + b[None, :, None]

    def convT(x, w, b):  # kernel 4, stride 2, padding 1
        w_conv = jnp.transpose(w[:, :, ::-1], (1, 0, 2))
        y = jax.lax.conv_general_dilated(
            x, w_conv, window_strides=(1,), padding=[(2, 2)], lhs_dilation=(2,),
            dimension_numbers=("NCH", "OIH", "NCH"), precision=hp)
        return y + b[None, :, None]

    def inorm(y, g=None, be=None):
        m = jnp.mean(y, axis=2, keepdims=True)
        v = jnp.mean((y - m) ** 2, axis=2, keepdims=True)
        y = (y - m) / jnp.sqrt(v + EPS)
        if g is not None:
            y = y * g[None, :, None] + be[None, :, None]
        return y

    x = x_ncl.astype(jnp.float32)
    p = params["initial"]
    h = jax.nn.relu(inorm(conv(x, p["w"], p["b"], 1, 3, True), p["g"], p["be"]))
    p = params["down1"]
    h = jax.nn.relu(inorm(conv(h, p["w"], p["b"], 2, 1, False), p["g"], p["be"]))
    p = params["down2"]
    h = jax.nn.relu(inorm(conv(h, p["w"], p["b"], 2, 1, False), p["g"], p["be"]))
    for rp in params["res"]:
        t = jax.nn.relu(inorm(conv(h, rp["w1"], rp["b1"], 1, 1, True)))
        t = inorm(conv(t, rp["w2"], rp["b2"], 1, 1, True))
        h = h + t
    p = params["up1"]
    h = jax.nn.relu(inorm(convT(h, p["w"], p["b"]), p["g"], p["be"]))
    p = params["up2"]
    h = jax.nn.relu(inorm(convT(h, p["w"], p["b"]), p["g"], p["be"]))
    p = params["output"]
    return jnp.tanh(conv(h, p["w"], p["b"], 1, 3, True))


# ----------------------------------------------------------------------------
# Deterministic parameter initialization (shapes match Generator.__init__)
# ----------------------------------------------------------------------------
def init_params(key, in_ch=1, out_ch=1, F=16, n_res=2):
    keys = iter(jax.random.split(key, 64))

    def conv_params(cout, cin, K):
        s = 1.0 / (cin * K) ** 0.5
        w = jax.random.uniform(next(keys), (cout, cin, K), jnp.float32, -s, s)
        b = jax.random.uniform(next(keys), (cout,), jnp.float32, -s, s)
        return w, b

    def convT_params(cin, cout, K):
        s = 1.0 / (cout * K) ** 0.5
        w = jax.random.uniform(next(keys), (cin, cout, K), jnp.float32, -s, s)
        b = jax.random.uniform(next(keys), (cout,), jnp.float32, -s, s)
        return w, b

    p = {}
    w, b = conv_params(F, in_ch, 7)
    p["initial"] = dict(w=w, b=b, g=jnp.ones((F,)), be=jnp.zeros((F,)))
    w, b = conv_params(2 * F, F, 4)
    p["down1"] = dict(w=w, b=b, g=jnp.ones((2 * F,)), be=jnp.zeros((2 * F,)))
    w, b = conv_params(4 * F, 2 * F, 4)
    p["down2"] = dict(w=w, b=b, g=jnp.ones((4 * F,)), be=jnp.zeros((4 * F,)))
    res = []
    for _ in range(n_res):
        w1, b1 = conv_params(4 * F, 4 * F, 3)
        w2, b2 = conv_params(4 * F, 4 * F, 3)
        res.append(dict(w1=w1, b1=b1, w2=w2, b2=b2))
    p["res"] = res
    w, b = convT_params(4 * F, 2 * F, 4)
    p["up1"] = dict(w=w, b=b, g=jnp.ones((2 * F,)), be=jnp.zeros((2 * F,)))
    w, b = convT_params(2 * F, F, 4)
    p["up2"] = dict(w=w, b=b, g=jnp.ones((F,)), be=jnp.zeros((F,)))
    w, b = conv_params(out_ch, F, 7)
    p["output"] = dict(w=w, b=b)
    return p


# ----------------------------------------------------------------------------
if __name__ == "__main__":
    key = jax.random.PRNGKey(0)
    kx, kp = jax.random.split(key)

    N, C_IN, L = 4, 1, 32          # (batch, in_channels, length)
    BASE_F, N_RES = 16, 2          # grid = 2 steps, 2 samples folded per step

    x = jax.random.normal(kx, (N, C_IN, L), jnp.float32)
    params = init_params(kp, in_ch=C_IN, out_ch=1, F=BASE_F, n_res=N_RES)

    fwd = jax.jit(functools.partial(generator_forward, params))
    y = jax.block_until_ready(fwd(x))

    assert y.shape == (N, 1, L), y.shape
    assert bool(jnp.all(jnp.isfinite(y)))

    # Structural correctness check against an independent XLA implementation
    # (loose tolerance targets tap/boundary/per-sample-stat mapping bugs).
    y_ref = jax.jit(functools.partial(reference_forward, params))(x)
    np.testing.assert_allclose(np.asarray(y), np.asarray(y_ref), rtol=5e-2, atol=5e-2)

    print("KERNEL_OK")
</pallas_src>

<mosaic_0001>
module attributes {stable_mosaic.version = 11 : i64} {
  func.func @kernel(%arg0: i32, %arg1: memref<16x10xf32, #tpu.memory_space<vmem>>, %arg2: memref<1536x128xf32, #tpu.memory_space<vmem>>, %arg3: memref<16x128xf32, #tpu.memory_space<vmem>>) attributes {dimension_semantics = [#tpu.dimension_semantics<parallel>], iteration_bounds = array<i64: 2>, scalar_prefetch = 0 : i64, scratch_operands = 0 : i64, tpu.core_type = #tpu.core_type<tc>, window_params = [{transform_indices = @transform_0, window_bounds = array<i64: 16, 10>}, {pipeline_mode = #tpu.pipeline_mode<synchronous>, transform_indices = @transform_1, window_bounds = array<i64: 1536, 128>}, {transform_indices = @transform_2, window_bounds = array<i64: 16, 128>}]} {
    %0 = tpu.iota {dimensions = array<i32: 0>} : vector<16x1xi32>
    %c0_i32 = arith.constant 0 : i32
    %1 = vector.broadcast %c0_i32 : i32 to vector<16x1xi32>
    %2 = arith.cmpi eq, %0, %1 : vector<16x1xi32>
    %c8_i32 = arith.constant 8 : i32
    %3 = vector.broadcast %c8_i32 : i32 to vector<16x1xi32>
    %4 = arith.cmpi eq, %0, %3 : vector<16x1xi32>
    %5 = arith.ori %2, %4 : vector<16x1xi1>
    %6 = arith.extui %5 : vector<16x1xi1> to vector<16x1xi32>
    %7 = arith.sitofp %6 : vector<16x1xi32> to vector<16x1xf32>
    %c7_i32 = arith.constant 7 : i32
    %8 = vector.broadcast %c7_i32 : i32 to vector<16x1xi32>
    %9 = arith.cmpi eq, %0, %8 : vector<16x1xi32>
    %c15_i32 = arith.constant 15 : i32
    %10 = vector.broadcast %c15_i32 : i32 to vector<16x1xi32>
    %11 = arith.cmpi eq, %0, %10 : vector<16x1xi32>
    %12 = arith.ori %9, %11 : vector<16x1xi1>
    %13 = arith.extui %12 : vector<16x1xi1> to vector<16x1xi32>
    %14 = arith.sitofp %13 : vector<16x1xi32> to vector<16x1xf32>
    %cst = arith.constant 1.000000e+00 : f32
    %15 = vector.broadcast %cst : f32 to vector<16x1xf32>
    %16 = arith.subf %15, %7 : vector<16x1xf32>
    %cst_0 = arith.constant 1.000000e+00 : f32
    %17 = vector.broadcast %cst_0 : f32 to vector<16x1xf32>
    %18 = arith.subf %17, %14 : vector<16x1xf32>
    %c0 = arith.constant 0 : index
    %c0_1 = arith.constant 0 : index
    %19 = vector.load %arg1[%c0, %c0_1] : memref<16x10xf32, #tpu.memory_space<vmem>>, vector<16x10xf32>
    %c0_2 = arith.constant 0 : index
    %c0_3 = arith.constant 0 : index
    %20 = vector.load %arg2[%c0_2, %c0_3] : memref<1536x128xf32, #tpu.memory_space<vmem>>, vector<10x64xf32>
    %cst_4 = arith.constant dense<0.000000e+00> : vector<16x64xf32>
    %21 = tpu.matmul %19, %20, %cst_4 {dimension_numbers = #tpu.dot_dimension_numbers<[1], [0], [0], [1], [0, 0, 1, 1], [], []>} : vector<16x10xf32>, vector<10x64xf32>, vector<16x64xf32> -> vector<16x64xf32>
    %22 = vector.extract_strided_slice %21 {offsets = [0, 0], sizes = [8, 64], strides = [1, 1]} : vector<16x64xf32> to vector<8x64xf32>
    %cst_5 = arith.constant dense<0.000000e+00> : vector<64xf32>
    %23 = vector.multi_reduction <add>, %22, %cst_5 [0] : vector<8x64xf32> to vector<64xf32>
    %24 = vector.shape_cast %23 : vector<64xf32> to vector<1x64xf32>
    %25 = arith.mulf %22, %22 : vector<8x64xf32>
    %cst_6 = arith.constant dense<0.000000e+00> : vector<64xf32>
    %26 = vector.multi_reduction <add>, %25, %cst_6 [0] : vector<8x64xf32> to vector<64xf32>
    %27 = vector.shape_cast %26 : vector<64xf32> to vector<1x64xf32>
    %28 = vector.extract_strided_slice %24 {offsets = [0, 0], sizes = [1, 16], strides = [1, 1]} : vector<1x64xf32> to vector<1x16xf32>
    %29 = vector.extract_strided_slice %27 {offsets = [0, 0], sizes = [1, 16], strides = [1, 1]} : vector<1x64xf32> to vector<1x16xf32>
    %30 = vector.extract_strided_slice %24 {offsets = [0, 16], sizes = [1, 16], strides = [1, 1]} : vector<1x64xf32> to vector<1x16xf32>
    %31 = arith.addf %28, %30 : vector<1x16xf32>
    %32 = vector.extract_strided_slice %27 {offsets = [0, 16], sizes = [1, 16], strides = [1, 1]} : vector<1x64xf32> to vector<1x16xf32>
    %33 = arith.addf %29, %32 : vector<1x16xf32>
    %34 = vector.extract_strided_slice %24 {offsets = [0, 32], sizes = [1, 16], strides = [1, 1]} : vector<1x64xf32> to vector<1x16xf32>
    %35 = arith.addf %31, %34 : vector<1x16xf32>
    %36 = vector.extract_strided_slice %27 {offsets = [0, 32], sizes = [1, 16], strides = [1, 1]} : vector<1x64xf32> to vector<1x16xf32>
    %37 = arith.addf %33, %36 : vector<1x16xf32>
    %38 = vector.extract_strided_slice %24 {offsets = [0, 48], sizes = [1, 16], strides = [1, 1]} : vector<1x64xf32> to vector<1x16xf32>
    %39 = arith.addf %35, %38 : vector<1x16xf32>
    %40 = vector.extract_strided_slice %27 {offsets = [0, 48], sizes = [1, 16], strides = [1, 1]} : vector<1x64xf32> to vector<1x16xf32>
    %41 = arith.addf %37, %40 : vector<1x16xf32>
    %cst_7 = arith.constant 3.200000e+01 : f32
    %42 = vector.broadcast %cst_7 : f32 to vector<1x16xf32>
    %43 = arith.divf %39, %42 : vector<1x16xf32>
    %cst_8 = arith.constant 3.200000e+01 : f32
    %44 = vector.broadcast %cst_8 : f32 to vector<1x16xf32>
    %45 = arith.divf %41, %44 : vector<1x16xf32>
    %46 = arith.mulf %43, %43 : vector<1x16xf32>
    %47 = arith.subf %45, %46 : vector<1x16xf32>
    %cst_9 = arith.constant 9.99999974E-6 : f32
    %48 = vector.broadcast %cst_9 : f32 to vector<1x16xf32>
    %49 = arith.addf %47, %48 : vector<1x16xf32>
    %50 = math.rsqrt %49 : vector<1x16xf32>
    %51 = tpu.concatenate %43, %43, %43, %43 in 1 : vector<1x16xf32>, vector<1x16xf32>, vector<1x16xf32>, vector<1x16xf32> -> vector<1x64xf32>
    %52 = tpu.concatenate %50, %50, %50, %50 in 1 : vector<1x16xf32>, vector<1x16xf32>, vector<1x16xf32>, vector<1x16xf32> -> vector<1x64xf32>
    %53 = vector.broadcast %51 : vector<1x64xf32> to vector<8x64xf32>
    %54 = arith.subf %22, %53 : vector<8x64xf32>
    %55 = vector.broadcast %52 : vector<1x64xf32> to vector<8x64xf32>
    %56 = arith.mulf %54, %55 : vector<8x64xf32>
    %57 = vector.extract_strided_slice %21 {offsets = [8, 0], sizes = [8, 64], strides = [1, 1]} : vector<16x64xf32> to vector<8x64xf32>
    %cst_10 = arith.constant dense<0.000000e+00> : vector<64xf32>
    %58 = vector.multi_reduction <add>, %57, %cst_10 [0] : vector<8x64xf32> to vector<64xf32>
    %59 = vector.shape_cast %58 : vector<64xf32> to vector<1x64xf32>
    %60 = arith.mulf %57, %57 : vector<8x64xf32>
    %cst_11 = arith.constant dense<0.000000e+00> : vector<64xf32>
    %61 = vector.multi_reduction <add>, %60, %cst_11 [0] : vector<8x64xf32> to vector<64xf32>
    %62 = vector.shape_cast %61 : vector<64xf32> to vector<1x64xf32>
    %63 = vector.extract_strided_slice %59 {offsets = [0, 0], sizes = [1, 16], strides = [1, 1]} : vector<1x64xf32> to vector<1x16xf32>
    %64 = vector.extract_strided_slice %62 {offsets = [0, 0], sizes = [1, 16], strides = [1, 1]} : vector<1x64xf32> to vector<1x16xf32>
    %65 = vector.extract_strided_slice %59 {offsets = [0, 16], sizes = [1, 16], strides = [1, 1]} : vector<1x64xf32> to vector<1x16xf32>
    %66 = arith.addf %63, %65 : vector<1x16xf32>
    %67 = vector.extract_strided_slice %62 {offsets = [0, 16], sizes = [1, 16], strides = [1, 1]} : vector<1x64xf32> to vector<1x16xf32>
    %68 = arith.addf %64, %67 : vector<1x16xf32>
    %69 = vector.extract_strided_slice %59 {offsets = [0, 32], sizes = [1, 16], strides = [1, 1]} : vector<1x64xf32> to vector<1x16xf32>
    %70 = arith.addf %66, %69 : vector<1x16xf32>
    %71 = vector.extract_strided_slice %62 {offsets = [0, 32], sizes = [1, 16], strides = [1, 1]} : vector<1x64xf32> to vector<1x16xf32>
    %72 = arith.addf %68, %71 : vector<1x16xf32>
    %73 = vector.extract_strided_slice %59 {offsets = [0, 48], sizes = [1, 16], strides = [1, 1]} : vector<1x64xf32> to vector<1x16xf32>
    %74 = arith.addf %70, %73 : vector<1x16xf32>
    %75 = vector.extract_strided_slice %62 {offsets = [0, 48], sizes = [1, 16], strides = [1, 1]} : vector<1x64xf32> to vector<1x16xf32>
    %76 = arith.addf %72, %75 : vector<1x16xf32>
    %cst_12 = arith.constant 3.200000e+01 : f32
    %77 = vector.broadcast %cst_12 : f32 to vector<1x16xf32>
    %78 = arith.divf %74, %77 : vector<1x16xf32>
    %cst_13 = arith.constant 3.200000e+01 : f32
    %79 = vector.broadcast %cst_13 : f32 to vector<1x16xf32>
    %80 = arith.divf %76, %79 : vector<1x16xf32>
    %81 = arith.mulf %78, %78 : vector<1x16xf32>
    %82 = arith.subf %80, %81 : vector<1x16xf32>
    %cst_14 = arith.constant 9.99999974E-6 : f32
    %83 = vector.broadcast %cst_14 : f32 to vector<1x16xf32>
    %84 = arith.addf %82, %83 : vector<1x16xf32>
    %85 = math.rsqrt %84 : vector<1x16xf32>
    %86 = tpu.concatenate %78, %78, %78, %78 in 1 : vector<1x16xf32>, vector<1x16xf32>, vector<1x16xf32>, vector<1x16xf32> -> vector<1x64xf32>
    %87 = tpu.concatenate %85, %85, %85, %85 in 1 : vector<1x16xf32>, vector<1x16xf32>, vector<1x16xf32>, vector<1x16xf32> -> vector<1x64xf32>
    %88 = vector.broadcast %86 : vector<1x64xf32> to vector<8x64xf32>
    %89 = arith.subf %57, %88 : vector<8x64xf32>
    %90 = vector.broadcast %87 : vector<1x64xf32> to vector<8x64xf32>
    %91 = arith.mulf %89, %90 : vector<8x64xf32>
    %92 = tpu.concatenate %56, %91 in 0 : vector<8x64xf32>, vector<8x64xf32> -> vector<16x64xf32>
    %c16 = arith.constant 16 : index
    %c0_15 = arith.constant 0 : index
    %93 = vector.load %arg2[%c16, %c0_15] : memref<1536x128xf32, #tpu.memory_space<vmem>>, vector<2x64xf32>
    %94 = vector.extract_strided_slice %93 {offsets = [0, 0], sizes = [1, 64], strides = [1, 1]} : vector<2x64xf32> to vector<1x64xf32>
    %95 = vector.broadcast %94 : vector<1x64xf32> to vector<16x64xf32>
    %96 = arith.mulf %92, %95 : vector<16x64xf32>
    %97 = vector.extract_strided_slice %93 {offsets = [1, 0], sizes = [1, 64], strides = [1, 1]} : vector<2x64xf32> to vector<1x64xf32>
    %98 = vector.broadcast %97 : vector<1x64xf32> to vector<16x64xf32>
    %99 = arith.addf %96, %98 : vector<16x64xf32>
    %cst_16 = arith.constant 0.000000e+00 : f32
    %100 = vector.broadcast %cst_16 : f32 to vector<16x64xf32>
    %101 = arith.maximumf %99, %100 : vector<16x64xf32>
    %c1_i32 = arith.constant 1 : i32
    %102 = tpu.dynamic_rotate %101 by %c1_i32 dim 0 : vector<16x64xf32>, i32 -> vector<16x64xf32>
    %c15_i32_17 = arith.constant 15 : i32
    %103 = tpu.dynamic_rotate %101 by %c15_i32_17 dim 0 : vector<16x64xf32>, i32 -> vector<16x64xf32>
    %104 = vector.extract_strided_slice %102 {offsets = [0, 48], sizes = [16, 16], strides = [1, 1]} : vector<16x64xf32> to vector<16x16xf32>
    %105 = vector.broadcast %16 : vector<16x1xf32> to vector<16x16xf32>
    %106 = arith.mulf %104, %105 : vector<16x16xf32>
    %107 = vector.extract_strided_slice %103 {offsets = [0, 0], sizes = [16, 16], strides = [1, 1]} : vector<16x64xf32> to vector<16x16xf32>
    %108 = vector.broadcast %18 : vector<16x1xf32> to vector<16x16xf32>
    %109 = arith.mulf %107, %108 : vector<16x16xf32>
    %110 = tpu.concatenate %106, %101, %109 in 1 : vector<16x16xf32>, vector<16x64xf32>, vector<16x16xf32> -> vector<16x96xf32>
    %c24 = arith.constant 24 : index
    %c0_18 = arith.constant 0 : index
    %111 = vector.load %arg2[%c24, %c0_18] : memref<1536x128xf32, #tpu.memory_space<vmem>>, vector<96x64xf32>
    %cst_19 = arith.constant dense<0.000000e+00> : vector<16x64xf32>
    %112 = tpu.matmul %110, %111, %cst_19 {dimension_numbers = #tpu.dot_dimension_numbers<[1], [0], [0], [1], [0, 0, 1, 1], [], []>} : vector<16x96xf32>, vector<96x64xf32>, vector<16x64xf32> -> vector<16x64xf32>
    %113 = vector.extract_strided_slice %112 {offsets = [0, 0], sizes = [8, 64], strides = [1, 1]} : vector<16x64xf32> to vector<8x64xf32>
    %cst_20 = arith.constant dense<0.000000e+00> : vector<64xf32>
    %114 = vector.multi_reduction <add>, %113, %cst_20 [0] : vector<8x64xf32> to vector<64xf32>
    %115 = vector.shape_cast %114 : vector<64xf32> to vector<1x64xf32>
    %116 = arith.mulf %113, %113 : vector<8x64xf32>
    %cst_21 = arith.constant dense<0.000000e+00> : vector<64xf32>
    %117 = vector.multi_reduction <add>, %116, %cst_21 [0] : vector<8x64xf32> to vector<64xf32>
    %118 = vector.shape_cast %117 : vector<64xf32> to vector<1x64xf32>
    %119 = vector.extract_strided_slice %115 {offsets = [0, 0], sizes = [1, 32], strides = [1, 1]} : vector<1x64xf32> to vector<1x32xf32>
    %120 = vector.extract_strided_slice %118 {offsets = [0, 0], sizes = [1, 32], strides = [1, 1]} : vector<1x64xf32> to vector<1x32xf32>
    %121 = vector.extract_strided_slice %115 {offsets = [0, 32], sizes = [1, 32], strides = [1, 1]} : vector<1x64xf32> to vector<1x32xf32>
    %122 = arith.addf %119, %121 : vector<1x32xf32>
    %123 = vector.extract_strided_slice %118 {offsets = [0, 32], sizes = [1, 32], strides = [1, 1]} : vector<1x64xf32> to vector<1x32xf32>
    %124 = arith.addf %120, %123 : vector<1x32xf32>
    %cst_22 = arith.constant 1.600000e+01 : f32
    %125 = vector.broadcast %cst_22 : f32 to vector<1x32xf32>
    %126 = arith.divf %122, %125 : vector<1x32xf32>
    %cst_23 = arith.constant 1.600000e+01 : f32
    %127 = vector.broadcast %cst_23 : f32 to vector<1x32xf32>
    %128 = arith.divf %124, %127 : vector<1x32xf32>
    %129 = arith.mulf %126, %126 : vector<1x32xf32>
    %130 = arith.subf %128, %129 : vector<1x32xf32>
    %cst_24 = arith.constant 9.99999974E-6 : f32
    %131 = vector.broadcast %cst_24 : f32 to vector<1x32xf32>
    %132 = arith.addf %130, %131 : vector<1x32xf32>
    %133 = math.rsqrt %132 : vector<1x32xf32>
    %134 = tpu.concatenate %126, %126 in 1 : vector<1x32xf32>, vector<1x32xf32> -> vector<1x64xf32>
    %135 = tpu.concatenate %133, %133 in 1 : vector<1x32xf32>, vector<1x32xf32> -> vector<1x64xf32>
    %136 = vector.broadcast %134 : vector<1x64xf32> to vector<8x64xf32>
    %137 = arith.subf %113, %136 : vector<8x64xf32>
    %138 = vector.broadcast %135 : vector<1x64xf32> to vector<8x64xf32>
    %139 = arith.mulf %137, %138 : vector<8x64xf32>
    %140 = vector.extract_strided_slice %112 {offsets = [8, 0], sizes = [8, 64], strides = [1, 1]} : vector<16x64xf32> to vector<8x64xf32>
    %cst_25 = arith.constant dense<0.000000e+00> : vector<64xf32>
    %141 = vector.multi_reduction <add>, %140, %cst_25 [0] : vector<8x64xf32> to vector<64xf32>
    %142 = vector.shape_cast %141 : vector<64xf32> to vector<1x64xf32>
    %143 = arith.mulf %140, %140 : vector<8x64xf32>
    %cst_26 = arith.constant dense<0.000000e+00> : vector<64xf32>
    %144 = vector.multi_reduction <add>, %143, %cst_26 [0] : vector<8x64xf32> to vector<64xf32>
    %145 = vector.shape_cast %144 : vector<64xf32> to vector<1x64xf32>
    %146 = vector.extract_strided_slice %142 {offsets = [0, 0], sizes = [1, 32], strides = [1, 1]} : vector<1x64xf32> to vector<1x32xf32>
    %147 = vector.extract_strided_slice %145 {offsets = [0, 0], sizes = [1, 32], strides = [1, 1]} : vector<1x64xf32> to vector<1x32xf32>
    %148 = vector.extract_strided_slice %142 {offsets = [0, 32], sizes = [1, 32], strides = [1, 1]} : vector<1x64xf32> to vector<1x32xf32>
    %149 = arith.addf %146, %148 : vector<1x32xf32>
    %150 = vector.extract_strided_slice %145 {offsets = [0, 32], sizes = [1, 32], strides = [1, 1]} : vector<1x64xf32> to vector<1x32xf32>
    %151 = arith.addf %147, %150 : vector<1x32xf32>
    %cst_27 = arith.constant 1.600000e+01 : f32
    %152 = vector.broadcast %cst_27 : f32 to vector<1x32xf32>
    %153 = arith.divf %149, %152 : vector<1x32xf32>
    %cst_28 = arith.constant 1.600000e+01 : f32
    %154 = vector.broadcast %cst_28 : f32 to vector<1x32xf32>
    %155 = arith.divf %151, %154 : vector<1x32xf32>
    %156 = arith.mulf %153, %153 : vector<1x32xf32>
    %157 = arith.subf %155, %156 : vector<1x32xf32>
    %cst_29 = arith.constant 9.99999974E-6 : f32
    %158 = vector.broadcast %cst_29 : f32 to vector<1x32xf32>
    %159 = arith.addf %157, %158 : vector<1x32xf32>
    %160 = math.rsqrt %159 : vector<1x32xf32>
    %161 = tpu.concatenate %153, %153 in 1 : vector<1x32xf32>, vector<1x32xf32> -> vector<1x64xf32>
    %162 = tpu.concatenate %160, %160 in 1 : vector<1x32xf32>, vector<1x32xf32> -> vector<1x64xf32>
    %163 = vector.broadcast %161 : vector<1x64xf32> to vector<8x64xf32>
    %164 = arith.subf %140, %163 : vector<8x64xf32>
    %165 = vector.broadcast %162 : vector<1x64xf32> to vector<8x64xf32>
    %166 = arith.mulf %164, %165 : vector<8x64xf32>
    %167 = tpu.concatenate %139, %166 in 0 : vector<8x64xf32>, vector<8x64xf32> -> vector<16x64xf32>
    %c120 = arith.constant 120 : index
    %c0_30 = arith.constant 0 : index
    %168 = vector.load %arg2[%c120, %c0_30] : memref<1536x128xf32, #tpu.memory_space<vmem>>, vector<2x64xf32>
    %169 = vector.extract_strided_slice %168 {offsets = [0, 0], sizes = [1, 64], strides = [1, 1]} : vector<2x64xf32> to vector<1x64xf32>
    %170 = vector.broadcast %169 : vector<1x64xf32> to vector<16x64xf32>
    %171 = arith.mulf %167, %170 : vector<16x64xf32>
    %172 = vector.extract_strided_slice %168 {offsets = [1, 0], sizes = [1, 64], strides = [1, 1]} : vector<2x64xf32> to vector<1x64xf32>
    %173 = vector.broadcast %172 : vector<1x64xf32> to vector<16x64xf32>
    %174 = arith.addf %171, %173 : vector<16x64xf32>
    %cst_31 = arith.constant 0.000000e+00 : f32
    %175 = vector.broadcast %cst_31 : f32 to vector<16x64xf32>
    %176 = arith.maximumf %174, %175 : vector<16x64xf32>
    %c1_i32_32 = arith.constant 1 : i32
    %177 = tpu.dynamic_rotate %176 by %c1_i32_32 dim 0 : vector<16x64xf32>, i32 -> vector<16x64xf32>
    %c15_i32_33 = arith.constant 15 : i32
    %178 = tpu.dynamic_rotate %176 by %c15_i32_33 dim 0 : vector<16x64xf32>, i32 -> vector<16x64xf32>
    %179 = vector.extract_strided_slice %177 {offsets = [0, 32], sizes = [16, 32], strides = [1, 1]} : vector<16x64xf32> to vector<16x32xf32>
    %180 = vector.broadcast %16 : vector<16x1xf32> to vector<16x32xf32>
    %181 = arith.mulf %179, %180 : vector<16x32xf32>
    %182 = vector.extract_strided_slice %178 {offsets = [0, 0], sizes = [16, 32], strides = [1, 1]} : vector<16x64xf32> to vector<16x32xf32>
    %183 = vector.broadcast %18 : vector<16x1xf32> to vector<16x32xf32>
    %184 = arith.mulf %182, %183 : vector<16x32xf32>
    %185 = tpu.concatenate %181, %176, %184 in 1 : vector<16x32xf32>, vector<16x64xf32>, vector<16x32xf32> -> vector<16x128xf32>
    %c128 = arith.constant 128 : index
    %c0_34 = arith.constant 0 : index
    %186 = vector.load %arg2[%c128, %c0_34] : memref<1536x128xf32, #tpu.memory_space<vmem>>, vector<128x64xf32>
    %cst_35 = arith.constant dense<0.000000e+00> : vector<16x64xf32>
    %187 = tpu.matmul %185, %186, %cst_35 {dimension_numbers = #tpu.dot_dimension_numbers<[1], [0], [0], [1], [0, 0, 1, 1], [], []>} : vector<16x128xf32>, vector<128x64xf32>, vector<16x64xf32> -> vector<16x64xf32>
    %188 = vector.extract_strided_slice %187 {offsets = [0, 0], sizes = [8, 64], strides = [1, 1]} : vector<16x64xf32> to vector<8x64xf32>
    %cst_36 = arith.constant dense<0.000000e+00> : vector<64xf32>
    %189 = vector.multi_reduction <add>, %188, %cst_36 [0] : vector<8x64xf32> to vector<64xf32>
    %190 = vector.shape_cast %189 : vector<64xf32> to vector<1x64xf32>
    %191 = arith.mulf %188, %188 : vector<8x64xf32>
    %cst_37 = arith.constant dense<0.000000e+00> : vector<64xf32>
    %192 = vector.multi_reduction <add>, %191, %cst_37 [0] : vector<8x64xf32> to vector<64xf32>
    %193 = vector.shape_cast %192 : vector<64xf32> to vector<1x64xf32>
    %cst_38 = arith.constant 8.000000e+00 : f32
    %194 = vector.broadcast %cst_38 : f32 to vector<1x64xf32>
    %195 = arith.divf %190, %194 : vector<1x64xf32>
    %cst_39 = arith.constant 8.000000e+00 : f32
    %196 = vector.broadcast %cst_39 : f32 to vector<1x64xf32>
    %197 = arith.divf %193, %196 : vector<1x64xf32>
    %198 = arith.mulf %195, %195 : vector<1x64xf32>
    %199 = arith.subf %197, %198 : vector<1x64xf32>
    %cst_40 = arith.constant 9.99999974E-6 : f32
    %200 = vector.broadcast %cst_40 : f32 to vector<1x64xf32>
    %201 = arith.addf %199, %200 : vector<1x64xf32>
    %202 = math.rsqrt %201 : vector<1x64xf32>
    %203 = vector.broadcast %195 : vector<1x64xf32> to vector<8x64xf32>
    %204 = arith.subf %188, %203 : vector<8x64xf32>
    %205 = vector.broadcast %202 : vector<1x64xf32> to vector<8x64xf32>
    %206 = arith.mulf %204, %205 : vector<8x64xf32>
    %207 = vector.extract_strided_slice %187 {offsets = [8, 0], sizes = [8, 64], strides = [1, 1]} : vector<16x64xf32> to vector<8x64xf32>
    %cst_41 = arith.constant dense<0.000000e+00> : vector<64xf32>
    %208 = vector.multi_reduction <add>, %207, %cst_41 [0] : vector<8x64xf32> to vector<64xf32>
    %209 = vector.shape_cast %208 : vector<64xf32> to vector<1x64xf32>
    %210 = arith.mulf %207, %207 : vector<8x64xf32>
    %cst_42 = arith.constant dense<0.000000e+00> : vector<64xf32>
    %211 = vector.multi_reduction <add>, %210, %cst_42 [0] : vector<8x64xf32> to vector<64xf32>
    %212 = vector.shape_cast %211 : vector<64xf32> to vector<1x64xf32>
    %cst_43 = arith.constant 8.000000e+00 : f32
    %213 = vector.broadcast %cst_43 : f32 to vector<1x64xf32>
    %214 = arith.divf %209, %213 : vector<1x64xf32>
    %cst_44 = arith.constant 8.000000e+00 : f32
    %215 = vector.broadcast %cst_44 : f32 to vector<1x64xf32>
    %216 = arith.divf %212, %215 : vector<1x64xf32>
    %217 = arith.mulf %214, %214 : vector<1x64xf32>
    %218 = arith.subf %216, %217 : vector<1x64xf32>
    %cst_45 = arith.constant 9.99999974E-6 : f32
    %219 = vector.broadcast %cst_45 : f32 to vector<1x64xf32>
    %220 = arith.addf %218, %219 : vector<1x64xf32>
    %221 = math.rsqrt %220 : vector<1x64xf32>
    %222 = vector.broadcast %214 : vector<1x64xf32> to vector<8x64xf32>
    %223 = arith.subf %207, %222 : vector<8x64xf32>
    %224 = vector.broadcast %221 : vector<1x64xf32> to vector<8x64xf32>
    %225 = arith.mulf %223, %224 : vector<8x64xf32>
    %226 = tpu.concatenate %206, %225 in 0 : vector<8x64xf32>, vector<8x64xf32> -> vector<16x64xf32>
    %c256 = arith.constant 256 : index
    %c0_46 = arith.constant 0 : index
    %227 = vector.load %arg2[%c256, %c0_46] : memref<1536x128xf32, #tpu.memory_space<vmem>>, vector<2x64xf32>
    %228 = vector.extract_strided_slice %227 {offsets = [0, 0], sizes = [1, 64], strides = [1, 1]} : vector<2x64xf32> to vector<1x64xf32>
    %229 = vector.broadcast %228 : vector<1x64xf32> to vector<16x64xf32>
    %230 = arith.mulf %226, %229 : vector<16x64xf32>
    %231 = vector.extract_strided_slice %227 {offsets = [1, 0], sizes = [1, 64], strides = [1, 1]} : vector<2x64xf32> to vector<1x64xf32>
    %232 = vector.broadcast %231 : vector<1x64xf32> to vector<16x64xf32>
    %233 = arith.addf %230, %232 : vector<16x64xf32>
    %cst_47 = arith.constant 0.000000e+00 : f32
    %234 = vector.broadcast %cst_47 : f32 to vector<16x64xf32>
    %235 = arith.maximumf %233, %234 : vector<16x64xf32>
    %c1_i32_48 = arith.constant 1 : i32
    %236 = tpu.dynamic_rotate %235 by %c1_i32_48 dim 0 : vector<16x64xf32>, i32 -> vector<16x64xf32>
    %c15_i32_49 = arith.constant 15 : i32
    %237 = tpu.dynamic_rotate %235 by %c15_i32_49 dim 0 : vector<16x64xf32>, i32 -> vector<16x64xf32>
    %238 = vector.broadcast %16 : vector<16x1xf32> to vector<16x64xf32>
    %239 = arith.mulf %236, %238 : vector<16x64xf32>
    %240 = vector.broadcast %7 : vector<16x1xf32> to vector<16x64xf32>
    %241 = arith.mulf %237, %240 : vector<16x64xf32>
    %242 = arith.addf %239, %241 : vector<16x64xf32>
    %243 = vector.broadcast %18 : vector<16x1xf32> to vector<16x64xf32>
    %244 = arith.mulf %237, %243 : vector<16x64xf32>
    %245 = vector.broadcast %14 : vector<16x1xf32> to vector<16x64xf32>
    %246 = arith.mulf %236, %245 : vector<16x64xf32>
    %247 = arith.addf %244, %246 : vector<16x64xf32>
    %248 = tpu.concatenate %242, %235, %247 in 1 : vector<16x64xf32>, vector<16x64xf32>, vector<16x64xf32> -> vector<16x192xf32>
    %c264 = arith.constant 264 : index
    %c0_50 = arith.constant 0 : index
    %249 = vector.load %arg2[%c264, %c0_50] : memref<1536x128xf32, #tpu.memory_space<vmem>>, vector<192x64xf32>
    %cst_51 = arith.constant dense<0.000000e+00> : vector<16x64xf32>
    %250 = tpu.matmul %248, %249, %cst_51 {dimension_numbers = #tpu.dot_dimension_numbers<[1], [0], [0], [1], [0, 0, 1, 1], [], []>} : vector<16x192xf32>, vector<192x64xf32>, vector<16x64xf32> -> vector<16x64xf32>
    %251 = vector.extract_strided_slice %250 {offsets = [0, 0], sizes = [8, 64], strides = [1, 1]} : vector<16x64xf32> to vector<8x64xf32>
    %cst_52 = arith.constant dense<0.000000e+00> : vector<64xf32>
    %252 = vector.multi_reduction <add>, %251, %cst_52 [0] : vector<8x64xf32> to vector<64xf32>
    %253 = vector.shape_cast %252 : vector<64xf32> to vector<1x64xf32>
    %254 = arith.mulf %251, %251 : vector<8x64xf32>
    %cst_53 = arith.constant dense<0.000000e+00> : vector<64xf32>
    %255 = vector.multi_reduction <add>, %254, %cst_53 [0] : vector<8x64xf32> to vector<64xf32>
    %256 = vector.shape_cast %255 : vector<64xf32> to vector<1x64xf32>
    %cst_54 = arith.constant 8.000000e+00 : f32
    %257 = vector.broadcast %cst_54 : f32 to vector<1x64xf32>
    %258 = arith.divf %253, %257 : vector<1x64xf32>
    %cst_55 = arith.constant 8.000000e+00 : f32
    %259 = vector.broadcast %cst_55 : f32 to vector<1x64xf32>
    %260 = arith.divf %256, %259 : vector<1x64xf32>
    %261 = arith.mulf %258, %258 : vector<1x64xf32>
    %262 = arith.subf %260, %261 : vector<1x64xf32>
    %cst_56 = arith.constant 9.99999974E-6 : f32
    %263 = vector.broadcast %cst_56 : f32 to vector<1x64xf32>
    %264 = arith.addf %262, %263 : vector<1x64xf32>
    %265 = math.rsqrt %264 : vector<1x64xf32>
    %266 = vector.broadcast %258 : vector<1x64xf32> to vector<8x64xf32>
    %267 = arith.subf %251, %266 : vector<8x64xf32>
    %268 = vector.broadcast %265 : vector<1x64xf32> to vector<8x64xf32>
    %269 = arith.mulf %267, %268 : vector<8x64xf32>
    %270 = vector.extract_strided_slice %250 {offsets = [8, 0], sizes = [8, 64], strides = [1, 1]} : vector<16x64xf32> to vector<8x64xf32>
    %cst_57 = arith.constant dense<0.000000e+00> : vector<64xf32>
    %271 = vector.multi_reduction <add>, %270, %cst_57 [0] : vector<8x64xf32> to vector<64xf32>
    %272 = vector.shape_cast %271 : vector<64xf32> to vector<1x64xf32>
    %273 = arith.mulf %270, %270 : vector<8x64xf32>
    %cst_58 = arith.constant dense<0.000000e+00> : vector<64xf32>
    %274 = vector.multi_reduction <add>, %273, %cst_58 [0] : vector<8x64xf32> to vector<64xf32>
    %275 = vector.shape_cast %274 : vector<64xf32> to vector<1x64xf32>
    %cst_59 = arith.constant 8.000000e+00 : f32
    %276 = vector.broadcast %cst_59 : f32 to vector<1x64xf32>
    %277 = arith.divf %272, %276 : vector<1x64xf32>
    %cst_60 = arith.constant 8.000000e+00 : f32
    %278 = vector.broadcast %cst_60 : f32 to vector<1x64xf32>
    %279 = arith.divf %275, %278 : vector<1x64xf32>
    %280 = arith.mulf %277, %277 : vector<1x64xf32>
    %281 = arith.subf %279, %280 : vector<1x64xf32>
    %cst_61 = arith.constant 9.99999974E-6 : f32
    %282 = vector.broadcast %cst_61 : f32 to vector<1x64xf32>
    %283 = arith.addf %281, %282 : vector<1x64xf32>
    %284 = math.rsqrt %283 : vector<1x64xf32>
    %285 = vector.broadcast %277 : vector<1x64xf32> to vector<8x64xf32>
    %286 = arith.subf %270, %285 : vector<8x64xf32>
    %287 = vector.broadcast %284 : vector<1x64xf32> to vector<8x64xf32>
    %288 = arith.mulf %286, %287 : vector<8x64xf32>
    %289 = tpu.concatenate %269, %288 in 0 : vector<8x64xf32>, vector<8x64xf32> -> vector<16x64xf32>
    %cst_62 = arith.constant 0.000000e+00 : f32
    %290 = vector.broadcast %cst_62 : f32 to vector<16x64xf32>
    %291 = arith.maximumf %289, %290 : vector<16x64xf32>
    %c1_i32_63 = arith.constant 1 : i32
    %292 = tpu.dynamic_rotate %291 by %c1_i32_63 dim 0 : vector<16x64xf32>, i32 -> vector<16x64xf32>
    %c15_i32_64 = arith.constant 15 : i32
    %293 = tpu.dynamic_rotate %291 by %c15_i32_64 dim 0 : vector<16x64xf32>, i32 -> vector<16x64xf32>
    %294 = vector.broadcast %16 : vector<16x1xf32> to vector<16x64xf32>
    %295 = arith.mulf %292, %294 : vector<16x64xf32>
    %296 = vector.broadcast %7 : vector<16x1xf32> to vector<16x64xf32>
    %297 = arith.mulf %293, %296 : vector<16x64xf32>
    %298 = arith.addf %295, %297 : vector<16x64xf32>
    %299 = vector.broadcast %18 : vector<16x1xf32> to vector<16x64xf32>
    %300 = arith.mulf %293, %299 : vector<16x64xf32>
    %301 = vector.broadcast %14 : vector<16x1xf32> to vector<16x64xf32>
    %302 = arith.mulf %292, %301 : vector<16x64xf32>
    %303 = arith.addf %300, %302 : vector<16x64xf32>
    %304 = tpu.concatenate %298, %291, %303 in 1 : vector<16x64xf32>, vector<16x64xf32>, vector<16x64xf32> -> vector<16x192xf32>
    %c456 = arith.constant 456 : index
    %c0_65 = arith.constant 0 : index
    %305 = vector.load %arg2[%c456, %c0_65] : memref<1536x128xf32, #tpu.memory_space<vmem>>, vector<192x64xf32>
    %cst_66 = arith.constant dense<0.000000e+00> : vector<16x64xf32>
    %306 = tpu.matmul %304, %305, %cst_66 {dimension_numbers = #tpu.dot_dimension_numbers<[1], [0], [0], [1], [0, 0, 1, 1], [], []>} : vector<16x192xf32>, vector<192x64xf32>, vector<16x64xf32> -> vector<16x64xf32>
    %307 = vector.extract_strided_slice %306 {offsets = [0, 0], sizes = [8, 64], strides = [1, 1]} : vector<16x64xf32> to vector<8x64xf32>
    %cst_67 = arith.constant dense<0.000000e+00> : vector<64xf32>
    %308 = vector.multi_reduction <add>, %307, %cst_67 [0] : vector<8x64xf32> to vector<64xf32>
    %309 = vector.shape_cast %308 : vector<64xf32> to vector<1x64xf32>
    %310 = arith.mulf %307, %307 : vector<8x64xf32>
    %cst_68 = arith.constant dense<0.000000e+00> : vector<64xf32>
    %311 = vector.multi_reduction <add>, %310, %cst_68 [0] : vector<8x64xf32> to vector<64xf32>
    %312 = vector.shape_cast %311 : vector<64xf32> to vector<1x64xf32>
    %cst_69 = arith.constant 8.000000e+00 : f32
    %313 = vector.broadcast %cst_69 : f32 to vector<1x64xf32>
    %314 = arith.divf %309, %313 : vector<1x64xf32>
    %cst_70 = arith.constant 8.000000e+00 : f32
    %315 = vector.broadcast %cst_70 : f32 to vector<1x64xf32>
    %316 = arith.divf %312, %315 : vector<1x64xf32>
    %317 = arith.mulf %314, %314 : vector<1x64xf32>
    %318 = arith.subf %316, %317 : vector<1x64xf32>
    %cst_71 = arith.constant 9.99999974E-6 : f32
    %319 = vector.broadcast %cst_71 : f32 to vector<1x64xf32>
    %320 = arith.addf %318, %319 : vector<1x64xf32>
    %321 = math.rsqrt %320 : vector<1x64xf32>
    %322 = vector.broadcast %314 : vector<1x64xf32> to vector<8x64xf32>
    %323 = arith.subf %307, %322 : vector<8x64xf32>
    %324 = vector.broadcast %321 : vector<1x64xf32> to vector<8x64xf32>
    %325 = arith.mulf %323, %324 : vector<8x64xf32>
    %326 = vector.extract_strided_slice %306 {offsets = [8, 0], sizes = [8, 64], strides = [1, 1]} : vector<16x64xf32> to vector<8x64xf32>
    %cst_72 = arith.constant dense<0.000000e+00> : vector<64xf32>
    %327 = vector.multi_reduction <add>, %326, %cst_72 [0] : vector<8x64xf32> to vector<64xf32>
    %328 = vector.shape_cast %327 : vector<64xf32> to vector<1x64xf32>
    %329 = arith.mulf %326, %326 : vector<8x64xf32>
    %cst_73 = arith.constant dense<0.000000e+00> : vector<64xf32>
    %330 = vector.multi_reduction <add>, %329, %cst_73 [0] : vector<8x64xf32> to vector<64xf32>
    %331 = vector.shape_cast %330 : vector<64xf32> to vector<1x64xf32>
    %cst_74 = arith.constant 8.000000e+00 : f32
    %332 = vector.broadcast %cst_74 : f32 to vector<1x64xf32>
    %333 = arith.divf %328, %332 : vector<1x64xf32>
    %cst_75 = arith.constant 8.000000e+00 : f32
    %334 = vector.broadcast %cst_75 : f32 to vector<1x64xf32>
    %335 = arith.divf %331, %334 : vector<1x64xf32>
    %336 = arith.mulf %333, %333 : vector<1x64xf32>
    %337 = arith.subf %335, %336 : vector<1x64xf32>
    %cst_76 = arith.constant 9.99999974E-6 : f32
    %338 = vector.broadcast %cst_76 : f32 to vector<1x64xf32>
    %339 = arith.addf %337, %338 : vector<1x64xf32>
    %340 = math.rsqrt %339 : vector<1x64xf32>
    %341 = vector.broadcast %333 : vector<1x64xf32> to vector<8x64xf32>
    %342 = arith.subf %326, %341 : vector<8x64xf32>
    %343 = vector.broadcast %340 : vector<1x64xf32> to vector<8x64xf32>
    %344 = arith.mulf %342, %343 : vector<8x64xf32>
    %345 = tpu.concatenate %325, %344 in 0 : vector<8x64xf32>, vector<8x64xf32> -> vector<16x64xf32>
    %346 = arith.addf %235, %345 : vector<16x64xf32>
    %c1_i32_77 = arith.constant 1 : i32
    %347 = tpu.dynamic_rotate %346 by %c1_i32_77 dim 0 : vector<16x64xf32>, i32 -> vector<16x64xf32>
    %c15_i32_78 = arith.constant 15 : i32
    %348 = tpu.dynamic_rotate %346 by %c15_i32_78 dim 0 : vector<16x64xf32>, i32 -> vector<16x64xf32>
    %349 = vector.broadcast %16 : vector<16x1xf32> to vector<16x64xf32>
    %350 = arith.mulf %347, %349 : vector<16x64xf32>
    %351 = vector.broadcast %7 : vector<16x1xf32> to vector<16x64xf32>
    %352 = arith.mulf %348, %351 : vector<16x64xf32>
    %353 = arith.addf %350, %352 : vector<16x64xf32>
    %354 = vector.broadcast %18 : vector<16x1xf32> to vector<16x64xf32>
    %355 = arith.mulf %348, %354 : vector<16x64xf32>
    %356 = vector.broadcast %14 : vector<16x1xf32> to vector<16x64xf32>
    %357 = arith.mulf %347, %356 : vector<16x64xf32>
    %358 = arith.addf %355, %357 : vector<16x64xf32>
    %359 = tpu.concatenate %353, %346, %358 in 1 : vector<16x64xf32>, vector<16x64xf32>, vector<16x64xf32> -> vector<16x192xf32>
    %c648 = arith.constant 648 : index
    %c0_79 = arith.constant 0 : index
    %360 = vector.load %arg2[%c648, %c0_79] : memref<1536x128xf32, #tpu.memory_space<vmem>>, vector<192x64xf32>
    %cst_80 = arith.constant dense<0.000000e+00> : vector<16x64xf32>
    %361 = tpu.matmul %359, %360, %cst_80 {dimension_numbers = #tpu.dot_dimension_numbers<[1], [0], [0], [1], [0, 0, 1, 1], [], []>} : vector<16x192xf32>, vector<192x64xf32>, vector<16x64xf32> -> vector<16x64xf32>
    %362 = vector.extract_strided_slice %361 {offsets = [0, 0], sizes = [8, 64], strides = [1, 1]} : vector<16x64xf32> to vector<8x64xf32>
    %cst_81 = arith.constant dense<0.000000e+00> : vector<64xf32>
    %363 = vector.multi_reduction <add>, %362, %cst_81 [0] : vector<8x64xf32> to vector<64xf32>
    %364 = vector.shape_cast %363 : vector<64xf32> to vector<1x64xf32>
    %365 = arith.mulf %362, %362 : vector<8x64xf32>
    %cst_82 = arith.constant dense<0.000000e+00> : vector<64xf32>
    %366 = vector.multi_reduction <add>, %365, %cst_82 [0] : vector<8x64xf32> to vector<64xf32>
    %367 = vector.shape_cast %366 : vector<64xf32> to vector<1x64xf32>
    %cst_83 = arith.constant 8.000000e+00 : f32
    %368 = vector.broadcast %cst_83 : f32 to vector<1x64xf32>
    %369 = arith.divf %364, %368 : vector<1x64xf32>
    %cst_84 = arith.constant 8.000000e+00 : f32
    %370 = vector.broadcast %cst_84 : f32 to vector<1x64xf32>
    %371 = arith.divf %367, %370 : vector<1x64xf32>
    %372 = arith.mulf %369, %369 : vector<1x64xf32>
    %373 = arith.subf %371, %372 : vector<1x64xf32>
    %cst_85 = arith.constant 9.99999974E-6 : f32
    %374 = vector.broadcast %cst_85 : f32 to vector<1x64xf32>
    %375 = arith.addf %373, %374 : vector<1x64xf32>
    %376 = math.rsqrt %375 : vector<1x64xf32>
    %377 = vector.broadcast %369 : vector<1x64xf32> to vector<8x64xf32>
    %378 = arith.subf %362, %377 : vector<8x64xf32>
    %379 = vector.broadcast %376 : vector<1x64xf32> to vector<8x64xf32>
    %380 = arith.mulf %378, %379 : vector<8x64xf32>
    %381 = vector.extract_strided_slice %361 {offsets = [8, 0], sizes = [8, 64], strides = [1, 1]} : vector<16x64xf32> to vector<8x64xf32>
    %cst_86 = arith.constant dense<0.000000e+00> : vector<64xf32>
    %382 = vector.multi_reduction <add>, %381, %cst_86 [0] : vector<8x64xf32> to vector<64xf32>
    %383 = vector.shape_cast %382 : vector<64xf32> to vector<1x64xf32>
    %384 = arith.mulf %381, %381 : vector<8x64xf32>
    %cst_87 = arith.constant dense<0.000000e+00> : vector<64xf32>
    %385 = vector.multi_reduction <add>, %384, %cst_87 [0] : vector<8x64xf32> to vector<64xf32>
    %386 = vector.shape_cast %385 : vector<64xf32> to vector<1x64xf32>
    %cst_88 = arith.constant 8.000000e+00 : f32
    %387 = vector.broadcast %cst_88 : f32 to vector<1x64xf32>
    %388 = arith.divf %383, %387 : vector<1x64xf32>
    %cst_89 = arith.constant 8.000000e+00 : f32
    %389 = vector.broadcast %cst_89 : f32 to vector<1x64xf32>
    %390 = arith.divf %386, %389 : vector<1x64xf32>
    %391 = arith.mulf %388, %388 : vector<1x64xf32>
    %392 = arith.subf %390, %391 : vector<1x64xf32>
    %cst_90 = arith.constant 9.99999974E-6 : f32
    %393 = vector.broadcast %cst_90 : f32 to vector<1x64xf32>
    %394 = arith.addf %392, %393 : vector<1x64xf32>
    %395 = math.rsqrt %394 : vector<1x64xf32>
    %396 = vector.broadcast %388 : vector<1x64xf32> to vector<8x64xf32>
    %397 = arith.subf %381, %396 : vector<8x64xf32>
    %398 = vector.broadcast %395 : vector<1x64xf32> to vector<8x64xf32>
    %399 = arith.mulf %397, %398 : vector<8x64xf32>
    %400 = tpu.concatenate %380, %399 in 0 : vector<8x64xf32>, vector<8x64xf32> -> vector<16x64xf32>
    %cst_91 = arith.constant 0.000000e+00 : f32
    %401 = vector.broadcast %cst_91 : f32 to vector<16x64xf32>
    %402 = arith.maximumf %400, %401 : vector<16x64xf32>
    %c1_i32_92 = arith.constant 1 : i32
    %403 = tpu.dynamic_rotate %402 by %c1_i32_92 dim 0 : vector<16x64xf32>, i32 -> vector<16x64xf32>
    %c15_i32_93 = arith.constant 15 : i32
    %404 = tpu.dynamic_rotate %402 by %c15_i32_93 dim 0 : vector<16x64xf32>, i32 -> vector<16x64xf32>
    %405 = vector.broadcast %16 : vector<16x1xf32> to vector<16x64xf32>
    %406 = arith.mulf %403, %405 : vector<16x64xf32>
    %407 = vector.broadcast %7 : vector<16x1xf32> to vector<16x64xf32>
    %408 = arith.mulf %404, %407 : vector<16x64xf32>
    %409 = arith.addf %406, %408 : vector<16x64xf32>
    %410 = vector.broadcast %18 : vector<16x1xf32> to vector<16x64xf32>
    %411 = arith.mulf %404, %410 : vector<16x64xf32>
    %412 = vector.broadcast %14 : vector<16x1xf32> to vector<16x64xf32>
    %413 = arith.mulf %403, %412 : vector<16x64xf32>
    %414 = arith.addf %411, %413 : vector<16x64xf32>
    %415 = tpu.concatenate %409, %402, %414 in 1 : vector<16x64xf32>, vector<16x64xf32>, vector<16x64xf32> -> vector<16x192xf32>
    %c840 = arith.constant 840 : index
    %c0_94 = arith.constant 0 : index
    %416 = vector.load %arg2[%c840, %c0_94] : memref<1536x128xf32, #tpu.memory_space<vmem>>, vector<192x64xf32>
    %cst_95 = arith.constant dense<0.000000e+00> : vector<16x64xf32>
    %417 = tpu.matmul %415, %416, %cst_95 {dimension_numbers = #tpu.dot_dimension_numbers<[1], [0], [0], [1], [0, 0, 1, 1], [], []>} : vector<16x192xf32>, vector<192x64xf32>, vector<16x64xf32> -> vector<16x64xf32>
    %418 = vector.extract_strided_slice %417 {offsets = [0, 0], sizes = [8, 64], strides = [1, 1]} : vector<16x64xf32> to vector<8x64xf32>
    %cst_96 = arith.constant dense<0.000000e+00> : vector<64xf32>
    %419 = vector.multi_reduction <add>, %418, %cst_96 [0] : vector<8x64xf32> to vector<64xf32>
    %420 = vector.shape_cast %419 : vector<64xf32> to vector<1x64xf32>
    %421 = arith.mulf %418, %418 : vector<8x64xf32>
    %cst_97 = arith.constant dense<0.000000e+00> : vector<64xf32>
    %422 = vector.multi_reduction <add>, %421, %cst_97 [0] : vector<8x64xf32> to vector<64xf32>
    %423 = vector.shape_cast %422 : vector<64xf32> to vector<1x64xf32>
    %cst_98 = arith.constant 8.000000e+00 : f32
    %424 = vector.broadcast %cst_98 : f32 to vector<1x64xf32>
    %425 = arith.divf %420, %424 : vector<1x64xf32>
    %cst_99 = arith.constant 8.000000e+00 : f32
    %426 = vector.broadcast %cst_99 : f32 to vector<1x64xf32>
    %427 = arith.divf %423, %426 : vector<1x64xf32>
    %428 = arith.mulf %425, %425 : vector<1x64xf32>
    %429 = arith.subf %427, %428 : vector<1x64xf32>
    %cst_100 = arith.constant 9.99999974E-6 : f32
    %430 = vector.broadcast %cst_100 : f32 to vector<1x64xf32>
    %431 = arith.addf %429, %430 : vector<1x64xf32>
    %432 = math.rsqrt %431 : vector<1x64xf32>
    %433 = vector.broadcast %425 : vector<1x64xf32> to vector<8x64xf32>
    %434 = arith.subf %418, %433 : vector<8x64xf32>
    %435 = vector.broadcast %432 : vector<1x64xf32> to vector<8x64xf32>
    %436 = arith.mulf %434, %435 : vector<8x64xf32>
    %437 = vector.extract_strided_slice %417 {offsets = [8, 0], sizes = [8, 64], strides = [1, 1]} : vector<16x64xf32> to vector<8x64xf32>
    %cst_101 = arith.constant dense<0.000000e+00> : vector<64xf32>
    %438 = vector.multi_reduction <add>, %437, %cst_101 [0] : vector<8x64xf32> to vector<64xf32>
    %439 = vector.shape_cast %438 : vector<64xf32> to vector<1x64xf32>
    %440 = arith.mulf %437, %437 : vector<8x64xf32>
    %cst_102 = arith.constant dense<0.000000e+00> : vector<64xf32>
    %441 = vector.multi_reduction <add>, %440, %cst_102 [0] : vector<8x64xf32> to vector<64xf32>
    %442 = vector.shape_cast %441 : vector<64xf32> to vector<1x64xf32>
    %cst_103 = arith.constant 8.000000e+00 : f32
    %443 = vector.broadcast %cst_103 : f32 to vector<1x64xf32>
    %444 = arith.divf %439, %443 : vector<1x64xf32>
    %cst_104 = arith.constant 8.000000e+00 : f32
    %445 = vector.broadcast %cst_104 : f32 to vector<1x64xf32>
    %446 = arith.divf %442, %445 : vector<1x64xf32>
    %447 = arith.mulf %444, %444 : vector<1x64xf32>
    %448 = arith.subf %446, %447 : vector<1x64xf32>
    %cst_105 = arith.constant 9.99999974E-6 : f32
    %449 = vector.broadcast %cst_105 : f32 to vector<1x64xf32>
    %450 = arith.addf %448, %449 : vector<1x64xf32>
    %451 = math.rsqrt %450 : vector<1x64xf32>
    %452 = vector.broadcast %444 : vector<1x64xf32> to vector<8x64xf32>
    %453 = arith.subf %437, %452 : vector<8x64xf32>
    %454 = vector.broadcast %451 : vector<1x64xf32> to vector<8x64xf32>
    %455 = arith.mulf %453, %454 : vector<8x64xf32>
    %456 = tpu.concatenate %436, %455 in 0 : vector<8x64xf32>, vector<8x64xf32> -> vector<16x64xf32>
    %457 = arith.addf %346, %456 : vector<16x64xf32>
    %c1_i32_106 = arith.constant 1 : i32
    %458 = tpu.dynamic_rotate %457 by %c1_i32_106 dim 0 : vector<16x64xf32>, i32 -> vector<16x64xf32>
    %c15_i32_107 = arith.constant 15 : i32
    %459 = tpu.dynamic_rotate %457 by %c15_i32_107 dim 0 : vector<16x64xf32>, i32 -> vector<16x64xf32>
    %460 = vector.broadcast %16 : vector<16x1xf32> to vector<16x64xf32>
    %461 = arith.mulf %458, %460 : vector<16x64xf32>
    %462 = vector.broadcast %18 : vector<16x1xf32> to vector<16x64xf32>
    %463 = arith.mulf %459, %462 : vector<16x64xf32>
    %464 = tpu.concatenate %461, %457, %463 in 1 : vector<16x64xf32>, vector<16x64xf32>, vector<16x64xf32> -> vector<16x192xf32>
    %c1032 = arith.constant 1032 : index
    %c0_108 = arith.constant 0 : index
    %465 = vector.load %arg2[%c1032, %c0_108] : memref<1536x128xf32, #tpu.memory_space<vmem>>, vector<192x64xf32>
    %cst_109 = arith.constant dense<0.000000e+00> : vector<16x64xf32>
    %466 = tpu.matmul %464, %465, %cst_109 {dimension_numbers = #tpu.dot_dimension_numbers<[1], [0], [0], [1], [0, 0, 1, 1], [], []>} : vector<16x192xf32>, vector<192x64xf32>, vector<16x64xf32> -> vector<16x64xf32>
    %467 = vector.extract_strided_slice %466 {offsets = [0, 0], sizes = [8, 64], strides = [1, 1]} : vector<16x64xf32> to vector<8x64xf32>
    %cst_110 = arith.constant dense<0.000000e+00> : vector<64xf32>
    %468 = vector.multi_reduction <add>, %467, %cst_110 [0] : vector<8x64xf32> to vector<64xf32>
    %469 = vector.shape_cast %468 : vector<64xf32> to vector<1x64xf32>
    %470 = arith.mulf %467, %467 : vector<8x64xf32>
    %cst_111 = arith.constant dense<0.000000e+00> : vector<64xf32>
    %471 = vector.multi_reduction <add>, %470, %cst_111 [0] : vector<8x64xf32> to vector<64xf32>
    %472 = vector.shape_cast %471 : vector<64xf32> to vector<1x64xf32>
    %473 = vector.extract_strided_slice %469 {offsets = [0, 0], sizes = [1, 32], strides = [1, 1]} : vector<1x64xf32> to vector<1x32xf32>
    %474 = vector.extract_strided_slice %472 {offsets = [0, 0], sizes = [1, 32], strides = [1, 1]} : vector<1x64xf32> to vector<1x32xf32>
    %475 = vector.extract_strided_slice %469 {offsets = [0, 32], sizes = [1, 32], strides = [1, 1]} : vector<1x64xf32> to vector<1x32xf32>
    %476 = arith.addf %473, %475 : vector<1x32xf32>
    %477 = vector.extract_strided_slice %472 {offsets = [0, 32], sizes = [1, 32], strides = [1, 1]} : vector<1x64xf32> to vector<1x32xf32>
    %478 = arith.addf %474, %477 : vector<1x32xf32>
    %cst_112 = arith.constant 1.600000e+01 : f32
    %479 = vector.broadcast %cst_112 : f32 to vector<1x32xf32>
    %480 = arith.divf %476, %479 : vector<1x32xf32>
    %cst_113 = arith.constant 1.600000e+01 : f32
    %481 = vector.broadcast %cst_113 : f32 to vector<1x32xf32>
    %482 = arith.divf %478, %481 : vector<1x32xf32>
    %483 = arith.mulf %480, %480 : vector<1x32xf32>
    %484 = arith.subf %482, %483 : vector<1x32xf32>
    %cst_114 = arith.constant 9.99999974E-6 : f32
    %485 = vector.broadcast %cst_114 : f32 to vector<1x32xf32>
    %486 = arith.addf %484, %485 : vector<1x32xf32>
    %487 = math.rsqrt %486 : vector<1x32xf32>
    %488 = tpu.concatenate %480, %480 in 1 : vector<1x32xf32>, vector<1x32xf32> -> vector<1x64xf32>
    %489 = tpu.concatenate %487, %487 in 1 : vector<1x32xf32>, vector<1x32xf32> -> vector<1x64xf32>
    %490 = vector.broadcast %488 : vector<1x64xf32> to vector<8x64xf32>
    %491 = arith.subf %467, %490 : vector<8x64xf32>
    %492 = vector.broadcast %489 : vector<1x64xf32> to vector<8x64xf32>
    %493 = arith.mulf %491, %492 : vector<8x64xf32>
    %494 = vector.extract_strided_slice %466 {offsets = [8, 0], sizes = [8, 64], strides = [1, 1]} : vector<16x64xf32> to vector<8x64xf32>
    %cst_115 = arith.constant dense<0.000000e+00> : vector<64xf32>
    %495 = vector.multi_reduction <add>, %494, %cst_115 [0] : vector<8x64xf32> to vector<64xf32>
    %496 = vector.shape_cast %495 : vector<64xf32> to vector<1x64xf32>
    %497 = arith.mulf %494, %494 : vector<8x64xf32>
    %cst_116 = arith.constant dense<0.000000e+00> : vector<64xf32>
    %498 = vector.multi_reduction <add>, %497, %cst_116 [0] : vector<8x64xf32> to vector<64xf32>
    %499 = vector.shape_cast %498 : vector<64xf32> to vector<1x64xf32>
    %500 = vector.extract_strided_slice %496 {offsets = [0, 0], sizes = [1, 32], strides = [1, 1]} : vector<1x64xf32> to vector<1x32xf32>
    %501 = vector.extract_strided_slice %499 {offsets = [0, 0], sizes = [1, 32], strides = [1, 1]} : vector<1x64xf32> to vector<1x32xf32>
    %502 = vector.extract_strided_slice %496 {offsets = [0, 32], sizes = [1, 32], strides = [1, 1]} : vector<1x64xf32> to vector<1x32xf32>
    %503 = arith.addf %500, %502 : vector<1x32xf32>
    %504 = vector.extract_strided_slice %499 {offsets = [0, 32], sizes = [1, 32], strides = [1, 1]} : vector<1x64xf32> to vector<1x32xf32>
    %505 = arith.addf %501, %504 : vector<1x32xf32>
    %cst_117 = arith.constant 1.600000e+01 : f32
    %506 = vector.broadcast %cst_117 : f32 to vector<1x32xf32>
    %507 = arith.divf %503, %506 : vector<1x32xf32>
    %cst_118 = arith.constant 1.600000e+01 : f32
    %508 = vector.broadcast %cst_118 : f32 to vector<1x32xf32>
    %509 = arith.divf %505, %508 : vector<1x32xf32>
    %510 = arith.mulf %507, %507 : vector<1x32xf32>
    %511 = arith.subf %509, %510 : vector<1x32xf32>
    %cst_119 = arith.constant 9.99999974E-6 : f32
    %512 = vector.broadcast %cst_119 : f32 to vector<1x32xf32>
    %513 = arith.addf %511, %512 : vector<1x32xf32>
    %514 = math.rsqrt %513 : vector<1x32xf32>
    %515 = tpu.concatenate %507, %507 in 1 : vector<1x32xf32>, vector<1x32xf32> -> vector<1x64xf32>
    %516 = tpu.concatenate %514, %514 in 1 : vector<1x32xf32>, vector<1x32xf32> -> vector<1x64xf32>
    %517 = vector.broadcast %515 : vector<1x64xf32> to vector<8x64xf32>
    %518 = arith.subf %494, %517 : vector<8x64xf32>
    %519 = vector.broadcast %516 : vector<1x64xf32> to vector<8x64xf32>
    %520 = arith.mulf %518, %519 : vector<8x64xf32>
    %521 = tpu.concatenate %493, %520 in 0 : vector<8x64xf32>, vector<8x64xf32> -> vector<16x64xf32>
    %c1224 = arith.constant 1224 : index
    %c0_120 = arith.constant 0 : index
    %522 = vector.load %arg2[%c1224, %c0_120] : memref<1536x128xf32, #tpu.memory_space<vmem>>, vector<2x64xf32>
    %523 = vector.extract_strided_slice %522 {offsets = [0, 0], sizes = [1, 64], strides = [1, 1]} : vector<2x64xf32> to vector<1x64xf32>
    %524 = vector.broadcast %523 : vector<1x64xf32> to vector<16x64xf32>
    %525 = arith.mulf %521, %524 : vector<16x64xf32>
    %526 = vector.extract_strided_slice %522 {offsets = [1, 0], sizes = [1, 64], strides = [1, 1]} : vector<2x64xf32> to vector<1x64xf32>
    %527 = vector.broadcast %526 : vector<1x64xf32> to vector<16x64xf32>
    %528 = arith.addf %525, %527 : vector<16x64xf32>
    %cst_121 = arith.constant 0.000000e+00 : f32
    %529 = vector.broadcast %cst_121 : f32 to vector<16x64xf32>
    %530 = arith.maximumf %528, %529 : vector<16x64xf32>
    %c1_i32_122 = arith.constant 1 : i32
    %531 = tpu.dynamic_rotate %530 by %c1_i32_122 dim 0 : vector<16x64xf32>, i32 -> vector<16x64xf32>
    %c15_i32_123 = arith.constant 15 : i32
    %532 = tpu.dynamic_rotate %530 by %c15_i32_123 dim 0 : vector<16x64xf32>, i32 -> vector<16x64xf32>
    %533 = vector.extract_strided_slice %531 {offsets = [0, 32], sizes = [16, 32], strides = [1, 1]} : vector<16x64xf32> to vector<16x32xf32>
    %534 = vector.broadcast %16 : vector<16x1xf32> to vector<16x32xf32>
    %535 = arith.mulf %533, %534 : vector<16x32xf32>
    %536 = vector.extract_strided_slice %532 {offsets = [0, 0], sizes = [16, 32], strides = [1, 1]} : vector<16x64xf32> to vector<16x32xf32>
    %537 = vector.broadcast %18 : vector<16x1xf32> to vector<16x32xf32>
    %538 = arith.mulf %536, %537 : vector<16x32xf32>
    %539 = tpu.concatenate %535, %530, %538 in 1 : vector<16x32xf32>, vector<16x64xf32>, vector<16x32xf32> -> vector<16x128xf32>
    %c1232 = arith.constant 1232 : index
    %c0_124 = arith.constant 0 : index
    %540 = vector.load %arg2[%c1232, %c0_124] : memref<1536x128xf32, #tpu.memory_space<vmem>>, vector<128x64xf32>
    %cst_125 = arith.constant dense<0.000000e+00> : vector<16x64xf32>
    %541 = tpu.matmul %539, %540, %cst_125 {dimension_numbers = #tpu.dot_dimension_numbers<[1], [0], [0], [1], [0, 0, 1, 1], [], []>} : vector<16x128xf32>, vector<128x64xf32>, vector<16x64xf32> -> vector<16x64xf32>
    %542 = vector.extract_strided_slice %541 {offsets = [0, 0], sizes = [8, 64], strides = [1, 1]} : vector<16x64xf32> to vector<8x64xf32>
    %cst_126 = arith.constant dense<0.000000e+00> : vector<64xf32>
    %543 = vector.multi_reduction <add>, %542, %cst_126 [0] : vector<8x64xf32> to vector<64xf32>
    %544 = vector.shape_cast %543 : vector<64xf32> to vector<1x64xf32>
    %545 = arith.mulf %542, %542 : vector<8x64xf32>
    %cst_127 = arith.constant dense<0.000000e+00> : vector<64xf32>
    %546 = vector.multi_reduction <add>, %545, %cst_127 [0] : vector<8x64xf32> to vector<64xf32>
    %547 = vector.shape_cast %546 : vector<64xf32> to vector<1x64xf32>
    %548 = vector.extract_strided_slice %544 {offsets = [0, 0], sizes = [1, 16], strides = [1, 1]} : vector<1x64xf32> to vector<1x16xf32>
    %549 = vector.extract_strided_slice %547 {offsets = [0, 0], sizes = [1, 16], strides = [1, 1]} : vector<1x64xf32> to vector<1x16xf32>
    %550 = vector.extract_strided_slice %544 {offsets = [0, 16], sizes = [1, 16], strides = [1, 1]} : vector<1x64xf32> to vector<1x16xf32>
    %551 = arith.addf %548, %550 : vector<1x16xf32>
    %552 = vector.extract_strided_slice %547 {offsets = [0, 16], sizes = [1, 16], strides = [1, 1]} : vector<1x64xf32> to vector<1x16xf32>
    %553 = arith.addf %549, %552 : vector<1x16xf32>
    %554 = vector.extract_strided_slice %544 {offsets = [0, 32], sizes = [1, 16], strides = [1, 1]} : vector<1x64xf32> to vector<1x16xf32>
    %555 = arith.addf %551, %554 : vector<1x16xf32>
    %556 = vector.extract_strided_slice %547 {offsets = [0, 32], sizes = [1, 16], strides = [1, 1]} : vector<1x64xf32> to vector<1x16xf32>
    %557 = arith.addf %553, %556 : vector<1x16xf32>
    %558 = vector.extract_strided_slice %544 {offsets = [0, 48], sizes = [1, 16], strides = [1, 1]} : vector<1x64xf32> to vector<1x16xf32>
    %559 = arith.addf %555, %558 : vector<1x16xf32>
    %560 = vector.extract_strided_slice %547 {offsets = [0, 48], sizes = [1, 16], strides = [1, 1]} : vector<1x64xf32> to vector<1x16xf32>
    %561 = arith.addf %557, %560 : vector<1x16xf32>
    %cst_128 = arith.constant 3.200000e+01 : f32
    %562 = vector.broadcast %cst_128 : f32 to vector<1x16xf32>
    %563 = arith.divf %559, %562 : vector<1x16xf32>
    %cst_129 = arith.constant 3.200000e+01 : f32
    %564 = vector.broadcast %cst_129 : f32 to vector<1x16xf32>
    %565 = arith.divf %561, %564 : vector<1x16xf32>
    %566 = arith.mulf %563, %563 : vector<1x16xf32>
    %567 = arith.subf %565, %566 : vector<1x16xf32>
    %cst_130 = arith.constant 9.99999974E-6 : f32
    %568 = vector.broadcast %cst_130 : f32 to vector<1x16xf32>
    %569 = arith.addf %567, %568 : vector<1x16xf32>
    %570 = math.rsqrt %569 : vector<1x16xf32>
    %571 = tpu.concatenate %563, %563, %563, %563 in 1 : vector<1x16xf32>, vector<1x16xf32>, vector<1x16xf32>, vector<1x16xf32> -> vector<1x64xf32>
    %572 = tpu.concatenate %570, %570, %570, %570 in 1 : vector<1x16xf32>, vector<1x16xf32>, vector<1x16xf32>, vector<1x16xf32> -> vector<1x64xf32>
    %573 = vector.broadcast %571 : vector<1x64xf32> to vector<8x64xf32>
    %574 = arith.subf %542, %573 : vector<8x64xf32>
    %575 = vector.broadcast %572 : vector<1x64xf32> to vector<8x64xf32>
    %576 = arith.mulf %574, %575 : vector<8x64xf32>
    %577 = vector.extract_strided_slice %541 {offsets = [8, 0], sizes = [8, 64], strides = [1, 1]} : vector<16x64xf32> to vector<8x64xf32>
    %cst_131 = arith.constant dense<0.000000e+00> : vector<64xf32>
    %578 = vector.multi_reduction <add>, %577, %cst_131 [0] : vector<8x64xf32> to vector<64xf32>
    %579 = vector.shape_cast %578 : vector<64xf32> to vector<1x64xf32>
    %580 = arith.mulf %577, %577 : vector<8x64xf32>
    %cst_132 = arith.constant dense<0.000000e+00> : vector<64xf32>
    %581 = vector.multi_reduction <add>, %580, %cst_132 [0] : vector<8x64xf32> to vector<64xf32>
    %582 = vector.shape_cast %581 : vector<64xf32> to vector<1x64xf32>
    %583 = vector.extract_strided_slice %579 {offsets = [0, 0], sizes = [1, 16], strides = [1, 1]} : vector<1x64xf32> to vector<1x16xf32>
    %584 = vector.extract_strided_slice %582 {offsets = [0, 0], sizes = [1, 16], strides = [1, 1]} : vector<1x64xf32> to vector<1x16xf32>
    %585 = vector.extract_strided_slice %579 {offsets = [0, 16], sizes = [1, 16], strides = [1, 1]} : vector<1x64xf32> to vector<1x16xf32>
    %586 = arith.addf %583, %585 : vector<1x16xf32>
    %587 = vector.extract_strided_slice %582 {offsets = [0, 16], sizes = [1, 16], strides = [1, 1]} : vector<1x64xf32> to vector<1x16xf32>
    %588 = arith.addf %584, %587 : vector<1x16xf32>
    %589 = vector.extract_strided_slice %579 {offsets = [0, 32], sizes = [1, 16], strides = [1, 1]} : vector<1x64xf32> to vector<1x16xf32>
    %590 = arith.addf %586, %589 : vector<1x16xf32>
    %591 = vector.extract_strided_slice %582 {offsets = [0, 32], sizes = [1, 16], strides = [1, 1]} : vector<1x64xf32> to vector<1x16xf32>
    %592 = arith.addf %588, %591 : vector<1x16xf32>
    %593 = vector.extract_strided_slice %579 {offsets = [0, 48], sizes = [1, 16], strides = [1, 1]} : vector<1x64xf32> to vector<1x16xf32>
    %594 = arith.addf %590, %593 : vector<1x16xf32>
    %595 = vector.extract_strided_slice %582 {offsets = [0, 48], sizes = [1, 16], strides = [1, 1]} : vector<1x64xf32> to vector<1x16xf32>
    %596 = arith.addf %592, %595 : vector<1x16xf32>
    %cst_133 = arith.constant 3.200000e+01 : f32
    %597 = vector.broadcast %cst_133 : f32 to vector<1x16xf32>
    %598 = arith.divf %594, %597 : vector<1x16xf32>
    %cst_134 = arith.constant 3.200000e+01 : f32
    %599 = vector.broadcast %cst_134 : f32 to vector<1x16xf32>
    %600 = arith.divf %596, %599 : vector<1x16xf32>
    %601 = arith.mulf %598, %598 : vector<1x16xf32>
    %602 = arith.subf %600, %601 : vector<1x16xf32>
    %cst_135 = arith.constant 9.99999974E-6 : f32
    %603 = vector.broadcast %cst_135 : f32 to vector<1x16xf32>
    %604 = arith.addf %602, %603 : vector<1x16xf32>
    %605 = math.rsqrt %604 : vector<1x16xf32>
    %606 = tpu.concatenate %598, %598, %598, %598 in 1 : vector<1x16xf32>, vector<1x16xf32>, vector<1x16xf32>, vector<1x16xf32> -> vector<1x64xf32>
    %607 = tpu.concatenate %605, %605, %605, %605 in 1 : vector<1x16xf32>, vector<1x16xf32>, vector<1x16xf32>, vector<1x16xf32> -> vector<1x64xf32>
    %608 = vector.broadcast %606 : vector<1x64xf32> to vector<8x64xf32>
    %609 = arith.subf %577, %608 : vector<8x64xf32>
    %610 = vector.broadcast %607 : vector<1x64xf32> to vector<8x64xf32>
    %611 = arith.mulf %609, %610 : vector<8x64xf32>
    %612 = tpu.concatenate %576, %611 in 0 : vector<8x64xf32>, vector<8x64xf32> -> vector<16x64xf32>
    %c1360 = arith.constant 1360 : index
    %c0_136 = arith.constant 0 : index
    %613 = vector.load %arg2[%c1360, %c0_136] : memref<1536x128xf32, #tpu.memory_space<vmem>>, vector<2x64xf32>
    %614 = vector.extract_strided_slice %613 {offsets = [0, 0], sizes = [1, 64], strides = [1, 1]} : vector<2x64xf32> to vector<1x64xf32>
    %615 = vector.broadcast %614 : vector<1x64xf32> to vector<16x64xf32>
    %616 = arith.mulf %612, %615 : vector<16x64xf32>
    %617 = vector.extract_strided_slice %613 {offsets = [1, 0], sizes = [1, 64], strides = [1, 1]} : vector<2x64xf32> to vector<1x64xf32>
    %618 = vector.broadcast %617 : vector<1x64xf32> to vector<16x64xf32>
    %619 = arith.addf %616, %618 : vector<16x64xf32>
    %cst_137 = arith.constant 0.000000e+00 : f32
    %620 = vector.broadcast %cst_137 : f32 to vector<16x64xf32>
    %621 = arith.maximumf %619, %620 : vector<16x64xf32>
    %c1_i32_138 = arith.constant 1 : i32
    %622 = tpu.dynamic_rotate %621 by %c1_i32_138 dim 0 : vector<16x64xf32>, i32 -> vector<16x64xf32>
    %c15_i32_139 = arith.constant 15 : i32
    %623 = tpu.dynamic_rotate %621 by %c15_i32_139 dim 0 : vector<16x64xf32>, i32 -> vector<16x64xf32>
    %624 = vector.extract_strided_slice %621 {offsets = [0, 48], sizes = [16, 16], strides = [1, 1]} : vector<16x64xf32> to vector<16x16xf32>
    %625 = vector.extract_strided_slice %621 {offsets = [0, 32], sizes = [16, 16], strides = [1, 1]} : vector<16x64xf32> to vector<16x16xf32>
    %626 = vector.extract_strided_slice %621 {offsets = [0, 16], sizes = [16, 16], strides = [1, 1]} : vector<16x64xf32> to vector<16x16xf32>
    %627 = tpu.concatenate %624, %625, %626 in 1 : vector<16x16xf32>, vector<16x16xf32>, vector<16x16xf32> -> vector<16x48xf32>
    %628 = vector.extract_strided_slice %621 {offsets = [0, 32], sizes = [16, 16], strides = [1, 1]} : vector<16x64xf32> to vector<16x16xf32>
    %629 = vector.extract_strided_slice %621 {offsets = [0, 16], sizes = [16, 16], strides = [1, 1]} : vector<16x64xf32> to vector<16x16xf32>
    %630 = vector.extract_strided_slice %621 {offsets = [0, 0], sizes = [16, 16], strides = [1, 1]} : vector<16x64xf32> to vector<16x16xf32>
    %631 = tpu.concatenate %628, %629, %630 in 1 : vector<16x16xf32>, vector<16x16xf32>, vector<16x16xf32> -> vector<16x48xf32>
    %632 = vector.extract_strided_slice %622 {offsets = [0, 16], sizes = [16, 48], strides = [1, 1]} : vector<16x64xf32> to vector<16x48xf32>
    %633 = vector.broadcast %16 : vector<16x1xf32> to vector<16x48xf32>
    %634 = arith.mulf %632, %633 : vector<16x48xf32>
    %635 = vector.broadcast %7 : vector<16x1xf32> to vector<16x48xf32>
    %636 = arith.mulf %627, %635 : vector<16x48xf32>
    %637 = arith.addf %634, %636 : vector<16x48xf32>
    %638 = vector.extract_strided_slice %623 {offsets = [0, 0], sizes = [16, 48], strides = [1, 1]} : vector<16x64xf32> to vector<16x48xf32>
    %639 = vector.broadcast %18 : vector<16x1xf32> to vector<16x48xf32>
    %640 = arith.mulf %638, %639 : vector<16x48xf32>
    %641 = vector.broadcast %14 : vector<16x1xf32> to vector<16x48xf32>
    %642 = arith.mulf %631, %641 : vector<16x48xf32>
    %643 = arith.addf %640, %642 : vector<16x48xf32>
    %644 = tpu.concatenate %637, %621, %643 in 1 : vector<16x48xf32>, vector<16x64xf32>, vector<16x48xf32> -> vector<16x160xf32>
    %c1368 = arith.constant 1368 : index
    %c0_140 = arith.constant 0 : index
    %645 = vector.load %arg2[%c1368, %c0_140] : memref<1536x128xf32, #tpu.memory_space<vmem>>, vector<160x128xf32>
    %cst_141 = arith.constant dense<0.000000e+00> : vector<16x128xf32>
    %646 = tpu.matmul %644, %645, %cst_141 {dimension_numbers = #tpu.dot_dimension_numbers<[1], [0], [0], [1], [0, 0, 1, 1], [], []>} : vector<16x160xf32>, vector<160x128xf32>, vector<16x128xf32> -> vector<16x128xf32>
    %c1528 = arith.constant 1528 : index
    %c0_142 = arith.constant 0 : index
    %647 = vector.load %arg2[%c1528, %c0_142] : memref<1536x128xf32, #tpu.memory_space<vmem>>, vector<1x128xf32>
    %648 = vector.broadcast %647 : vector<1x128xf32> to vector<16x128xf32>
    %649 = arith.addf %646, %648 : vector<16x128xf32>
    %650 = math.tanh %649 : vector<16x128xf32>
    %c0_143 = arith.constant 0 : index
    %c0_144 = arith.constant 0 : index
    %651 = vector.load %arg3[%c0_143, %c0_144] : memref<16x128xf32, #tpu.memory_space<vmem>>, vector<16x128xf32>
    tpu.vector_store %arg3[%c0_143, %c0_144], %650 {strides = array<i32>} : memref<16x128xf32, #tpu.memory_space<vmem>>, vector<16x128xf32>,
    return
  }
  func.func @transform_0(%arg0: i32) -> (i32, i32) {
    %c0_i32 = arith.constant 0 : i32
    %c0_i32_0 = arith.constant 0 : i32
    return %arg0, %c0_i32 : i32, i32
  }
  func.func @transform_1(%arg0: i32) -> (i32, i32) {
    %c0_i32 = arith.constant 0 : i32
    %c0_i32_0 = arith.constant 0 : i32
    %c0_i32_1 = arith.constant 0 : i32
    return %c0_i32, %c0_i32_0 : i32, i32
  }
  func.func @transform_2(%arg0: i32) -> (i32, i32) {
    %c0_i32 = arith.constant 0 : i32
    %c0_i32_0 = arith.constant 0 : i32
    return %arg0, %c0_i32 : i32, i32
  }
}

</mosaic_0001>

<llo_original>
// kernel: generator_forward.1
$region0: #{generator_forward.1}
  #allocation0 [shape = 'u32[]', space=smem, size = 0x4, offset = 0x4, fixed_abs, tag = 'smem constant byte address 0x4 - core index']
  #allocation1 [shape = 'u32[72,128]{1,0:T(1,128)}', space=vmem, size = 0x9000, scoped, tag = 'internal scratch']
  %s0 = inlined_call_operand.vmem [shape: f32[32,10], index: 0, kind: input, shape index: {}]
  %s1 = inlined_call_operand.vmem [shape: f32[1536,128], index: 1, kind: input, shape index: {}]
  %s2 = inlined_call_operand.vmem [shape: f32[32,128], index: 2, kind: output, shape index: {}]
  %s3 = sld [smem:[#allocation0]]
  $region41: #{generator_forward.1} parent=0
    _
  %s5 = ssub.s32 1, %s3
  %s6 = scalar_select 0, %s5, %s3
  loop: start=0, step=1, limit=4
  $region2: #{generator_forward.1} parent=0 // loop_pre_header
    _
  $region3: #{generator_forward.1} parent=0 // loop_header
    %s8 = sphi 0, %s12
    %p9 = scmp.ge.s32.totalorder %s8, 4
    %s18 = sphi 0, %s20
    %s21 = sphi 0, %s18
    %s22 = sphi 0, %s21
    %s38 = sphi 0, %s22
    %s42 = sphi 0, %s42
    %s44 = sphi 0, %s42
    %s45 = sphi 0, %s44
    %s59 = sphi 0, %s45
    %s65 = sphi 0, %s67
    %s68 = sphi 0, %s65
    %s69 = sphi 0, %s68
    %s85 = sphi 0, %s69
  $region4: #{generator_forward.1} parent=0 // loop_header_branch
    %11 = sbr.rel (%p9) target = $region8
  $region5: #{generator_forward.1} parent=0 // loop_body
    %s13 = ssub.s32 %s8, 1
    %s14 = ssub.s32 %s8, 2
    %s15 = sadd.s32 %s8, 1
    %s16 = ssub.s32 %s8, %s15
    %p17 = scmp.eq.s32.totalorder %s16, 0
    %s19 = sadd.s32 %s18, 1
    %s20 = scalar_select %p17, %s18, %s19
    %p23 = pneg %p17
    %p24 = scmp.eq.s32.totalorder %s8, 1
    %p25 = por %p23, %p24
    %p26 = scmp.ne.s32.totalorder %s18, %s21
    %p27 = scmp.eq.s32.totalorder %s8, 0
    %p28 = por %p26, %p27
    %p29 = scmp.ne.s32.totalorder %s18, %s21
    %p30 = scmp.eq.s32.totalorder %s13, 1
    %p31 = por %p29, %p30
    %p32 = scmp.ne.s32.totalorder %s21, %s22
    %p33 = scmp.eq.s32.totalorder %s13, 0
    %p34 = por %p32, %p33
    %p35 = scmp.ne.s32.totalorder %s21, %s22
    %p36 = scmp.eq.s32.totalorder %s14, 1
    %p37 = por %p35, %p36
    %p39 = scmp.ne.s32.totalorder %s22, %s38
    %p40 = scmp.eq.s32.totalorder %s14, 0
    %p41 = por %p39, %p40
    %s43 = sadd.s32 %s42, 1
    %p46 = scmp.eq.s32.totalorder %s8, 1
    %p47 = scmp.ne.s32.totalorder %s42, %s44
    %p48 = scmp.eq.s32.totalorder %s8, 0
    %p49 = por %p47, %p48
    %p50 = scmp.ne.s32.totalorder %s42, %s44
    %p51 = scmp.eq.s32.totalorder %s13, 1
    %p52 = por %p50, %p51
    %p53 = scmp.ne.s32.totalorder %s44, %s45
    %p54 = scmp.eq.s32.totalorder %s13, 0
    %p55 = por %p53, %p54
    %p56 = scmp.ne.s32.totalorder %s44, %s45
    %p57 = scmp.eq.s32.totalorder %s14, 1
    %p58 = por %p56, %p57
    %p60 = scmp.ne.s32.totalorder %s45, %s59
    %p61 = scmp.eq.s32.totalorder %s14, 0
    %p62 = por %p60, %p61
    %s63 = ssub.s32 %s8, %s15
    %p64 = scmp.eq.s32.totalorder %s63, 0
    %s66 = sadd.s32 %s65, 1
    %s67 = scalar_select %p64, %s65, %s66
    %p70 = pneg %p64
    %p71 = scmp.eq.s32.totalorder %s8, 1
    %p72 = por %p70, %p71
    %p73 = scmp.ne.s32.totalorder %s65, %s68
    %p74 = scmp.eq.s32.totalorder %s8, 0
    %p75 = por %p73, %p74
    %p76 = scmp.ne.s32.totalorder %s65, %s68
    %p77 = scmp.eq.s32.totalorder %s13, 1
    %p78 = por %p76, %p77
    %p79 = scmp.ne.s32.totalorder %s68, %s69
    %p80 = scmp.eq.s32.totalorder %s13, 0
    %p81 = por %p79, %p80
    %p82 = scmp.ne.s32.totalorder %s68, %s69
    %p83 = scmp.eq.s32.totalorder %s14, 1
    %p84 = por %p82, %p83
    %p86 = scmp.ne.s32.totalorder %s69, %s85
    %p87 = scmp.eq.s32.totalorder %s14, 0
    %p88 = por %p86, %p87
    %p89 = scmp.le.s32.totalorder 1, %s8
    %p90 = scmp.lt.s32.totalorder %s8, 3
    %p91 = pnand %p89, %p90
    %p92 = pneg %p91
    // Predicated region
    $region9: #{generator_forward.1} parent=5 // pred_check
      _
    $region10: #{generator_forward.1} parent=5 // pred_check_branch
      %94 = sbr.rel (%p91) target = $region12
    $region11: #{generator_forward.1} parent=5 // pred_region
      %s95 = ssub.s32 %s8, 1
      // Predicated region
      $region13: #{generator_forward.1} parent=11 // pred_check
        %p96 = pneg %p55
      $region14: #{generator_forward.1} parent=11 // pred_check_branch
        %98 = sbr.rel (%p96) target = $region16
      $region15: #{generator_forward.1} parent=11 // pred_region
        _
      $region16: #{generator_forward.1} parent=11 // pred_fallthru
        _
    $region12: #{generator_forward.1} parent=5 // pred_fallthru
      _
    %p99 = scmp.lt.s32.totalorder %s8, 2
    // Predicated region
    $region17: #{generator_forward.1} parent=5 // pred_check
      %p100 = pneg %p99
    $region18: #{generator_forward.1} parent=5 // pred_check_branch
      %102 = sbr.rel (%p100) target = $region20
    $region19: #{generator_forward.1} parent=5 // pred_region
      // Predicated region
      $region21: #{generator_forward.1} parent=19 // pred_check
        %p103 = pneg %p28
      $region22: #{generator_forward.1} parent=19 // pred_check_branch
        %105 = sbr.rel (%p103) target = $region24
      $region23: #{generator_forward.1} parent=19 // pred_region
        %s106 = smul.u32 2, %s8
        %p107 = scmp.lt.s32.totalorder %s106, 3
        %s108 = scalar_select %p107, %s106, 3
        %s109 = smul.addr %s108, 8
        %s110 = scalar_lea.vmem %s0, %s109
        %s111 = smul.u32 2, %s8
      $region24: #{generator_forward.1} parent=19 // pred_fallthru
        _
    $region20: #{generator_forward.1} parent=5 // pred_fallthru
      _
    %p112 = scmp.le.s32.totalorder 1, %s8
    %p113 = scmp.lt.s32.totalorder %s8, 3
    %p114 = pnand %p112, %p113
    %p115 = pneg %p114
    // Predicated region
    $region25: #{generator_forward.1} parent=5 // pred_check
      _
    $region26: #{generator_forward.1} parent=5 // pred_check_branch
      %117 = sbr.rel (%p114) target = $region28
    $region27: #{generator_forward.1} parent=5 // pred_region
      %s118 = ssub.s32 %s8, 1
      %s119 = smul.u32 2, %s13
      %p120 = scmp.lt.s32.totalorder %s119, 3
      %s121 = scalar_select %p120, %s119, 3
      %s122 = smul.addr %s121, 8
      %s123 = scalar_lea.vmem %s0, %s122
      %p124 = pneg %p34
      %p125 = pneg %p31
      %p126 = pneg %p55
      %p127 = pneg %p52
      %p128 = pneg %p81
      %p129 = pneg %p78
      %s130 = smul.u32 2, %s13
      %p131 = scmp.lt.s32.totalorder %s130, 3
      %s132 = scalar_select %p131, %s130, 3
      %s133 = smul.addr %s132, 8
      %s134 = scalar_lea.vmem %s2, %s133
      %s135 = smul.u32 2, %s13
      %p136 = scmp.lt.s32.totalorder %s135, 3
      %s137 = scalar_select %p136, %s135, 3
      %s138 = smul.addr %s137, 8
      %s139 = scalar_lea.vmem %s0, %s138
      %s140 = smul.u32 2, %s13
      %s141 = smul.u32 2, %s13
      %p142 = scmp.lt.s32.totalorder %s141, 3
      %s143 = scalar_select %p142, %s141, 3
      %s144 = smul.addr %s143, 8
      %s145 = scalar_lea.vmem %s2, %s144
      %s146 = smul.u32 2, %s13
      %v147 = vlaneseq
      %v148 = vshrl.u32 %v147, 7
      %v149 = vadd.s32 %v148, 8
      %vm150 = vcmp.eq.s32.totalorder %v148, 0
      %vm151 = vcmp.eq.s32.totalorder %v149, 0
      %vm152 = vcmp.eq.s32.totalorder %v148, 8
      %vm153 = vcmp.eq.s32.totalorder %v149, 8
      %vm154 = vmor %vm150, %vm152
      %vm155 = vmor %vm151, %vm153
      %v156 = vsel %vm154, 1, 0
      %v157 = vsel %vm155, 1, 0
      %v158 = vcvt.s32.f32 %v156
      %v159 = vcvt.s32.f32 %v157
      %vm160 = vcmp.eq.s32.totalorder %v148, 7
      %vm161 = vcmp.eq.s32.totalorder %v149, 7
      %vm162 = vcmp.eq.s32.totalorder %v148, 15
      %vm163 = vcmp.eq.s32.totalorder %v149, 15
      %vm164 = vmor %vm160, %vm162
      %vm165 = vmor %vm161, %vm163
      %v166 = vsel %vm164, 1, 0
      %v167 = vsel %vm165, 1, 0
      %v168 = vcvt.s32.f32 %v166
      %v169 = vcvt.s32.f32 %v167
      %v170 = vsub.f32 1.0, %v158
      %v171 = vsub.f32 1.0, %v159
      %v172 = vsub.f32 1.0, %v168
      %v173 = vsub.f32 1.0, %v169
      %v174 = vld [vmem:[%s139] sm:$0xff]
      %v175 = vld [vmem:[%s139 + $0x8] sm:$0xff]
      %v176 = vld [vmem:[%s1] sm:$0xff]
      %v177 = vld [vmem:[%s1 + $0x8] sm:$0x3]
      %vm178 = vcmask 80896
      %v180 = vsel %vm178, %v174, 0
      %v183 = vsel %vm178, %v175, 0
      %vm185 = vcmask 1041408
      %v187 = vsel %vm185, %v177, 0
      %189 = vmatpush.msra.mxu0 0.0
      %190 = vmatpush.msra.mxu0 0.0
      %191 = vmatpush.msra.mxu0 0.0
      %192 = vmatpush.msra.mxu0 0.0
      %193 = vmatpush.msra.mxu0 0.0
      %194 = vmatpush.msra.mxu0 0.0
      %195 = vmatpush.msra.mxu0 0.0
      %196 = vmatpush.msra.mxu0 0.0
      %197 = vmatpush.msra.mxu0 0.0
      %198 = vmatpush.msra.mxu0 0.0
      %199 = vmatpush.msra.mxu0 0.0
      %200 = vmatpush.msra.mxu0 0.0
      %201 = vmatpush.msra.mxu0 0.0
      %202 = vmatpush.msra.mxu0 0.0
      %203 = vmatpush.msra.mxu0 %v187
      %204 = vmatpush.msra.mxu0 %v176
      %205 = vmatmul.f32.gmra.mxu0 %v180
      %v206 = vpop.f32.mrf.mxu0
      %v207 = vadd.f32 0.0, %v206
      %208 = vmatmul.f32.gmra.mxu0 %v183
      %v209 = vpop.f32.mrf.mxu0
      %v210 = vadd.f32 0.0, %v209
      %211 = vdwg.mxu0
      %vm212 = vcmask 523264
      %v213 = vsel %vm212, %v207, 0.0
      %v214 = vrot.slane %v213, 4
      %v215 = vadd.f32 %v213, %v214
      %v216 = vrot.slane %v215, 2
      %v217 = vadd.f32 %v215, %v216
      %v218 = vrot.slane %v217, 1
      %v219 = vadd.f32 %v217, %v218
      %v220 = vmul.f32 %v207, %v207
      %v221 = vsel %vm212, %v220, 0.0
      %v222 = vrot.slane %v221, 4
      %v223 = vadd.f32 %v221, %v222
      %v224 = vrot.slane %v223, 2
      %v225 = vadd.f32 %v223, %v224
      %v226 = vrot.slane %v225, 1
      %v227 = vadd.f32 %v225, %v226
      %229 = vrot.lane.b32.xlu0 %v219, 112
      %v230 = vpop.permute.xlu0 %229
      %v232 = vadd.f32 %v219, %v230
      %234 = vrot.lane.b32.xlu0 %v227, 112
      %v235 = vpop.permute.xlu0 %234
      %v237 = vadd.f32 %v227, %v235
      %238 = vrot.lane.b32.xlu0 %v219, 96
      %v239 = vpop.permute.xlu0 %238
      %v241 = vadd.f32 %v232, %v239
      %242 = vrot.lane.b32.xlu0 %v227, 96
      %v243 = vpop.permute.xlu0 %242
      %v245 = vadd.f32 %v237, %v243
      %246 = vrot.lane.b32.xlu0 %v219, 80
      %v247 = vpop.permute.xlu0 %246
      %v249 = vadd.f32 %v241, %v247
      %250 = vrot.lane.b32.xlu0 %v227, 80
      %v251 = vpop.permute.xlu0 %250
      %v253 = vadd.f32 %v245, %v251
      %v254 = vrcp.pop 32.0
      %v255 = vmul.f32 32.0, %v254
      %v256 = vsub.f32 1.0, %v255
      %v257 = vmul.f32 %v254, %v256
      %v258 = vadd.f32 %v254, %v257
      %vm259 = vweird.f32 %v254
      %v260 = vsel %vm259, %v254, %v258
      %v261 = vmul.f32 %v249, %v260
      %v262 = vmul.f32 %v253, %v260
      %v263 = vmul.f32 %v261, %v261
      %v264 = vsub.f32 %v262, %v263
      %v265 = vadd.f32 %v264, 1e-05
      %v266 = vrsqrt.pop %v265
      %v267 = vmul.f32 %v266, %v265
      %v268 = vmul.f32 %v267, %v266
      %v269 = vmul.f32 0.5, %v268
      %v270 = vsub.f32 1.5, %v269
      %v271 = vmul.f32 %v266, %v270
      %vm272 = vweird.f32 %v265
      %vm273 = vweird.f32 %v266
      %vm274 = vmor %vm272, %vm273
      %v275 = vsel %vm274, %v266, %v271
      %277 = vrot.lane.b32.xlu0 %v261, 16
      %v278 = vpop.permute.xlu0 %277
      %280 = vrot.lane.b32.xlu0 %v261, 32
      %v281 = vpop.permute.xlu0 %280
      %283 = vrot.lane.b32.xlu0 %v261, 48
      %v284 = vpop.permute.xlu0 %283
      %vm286 = vcmask 130048
      %v287 = vsel %vm286, %v261, %v278
      %vm288 = vcmask 261120
      %v289 = vsel %vm288, %v287, %v281
      %vm290 = vcmask 392192
      %v291 = vsel %vm290, %v289, %v284
      %293 = vrot.lane.b32.xlu0 %v275, 16
      %v294 = vpop.permute.xlu0 %293
      %296 = vrot.lane.b32.xlu0 %v275, 32
      %v297 = vpop.permute.xlu0 %296
      %299 = vrot.lane.b32.xlu0 %v275, 48
      %v300 = vpop.permute.xlu0 %299
      %v302 = vsel %vm286, %v275, %v294
      %v303 = vsel %vm288, %v302, %v297
      %v304 = vsel %vm290, %v303, %v300
      %v305 = vperm.slane %v291, 0
      %v306 = vsub.f32 %v207, %v305
      %v307 = vperm.slane %v304, 0
      %v308 = vmul.f32 %v306, %v307
      %v309 = vsel %vm212, %v210, 0.0
      %v310 = vrot.slane %v309, 4
      %v311 = vadd.f32 %v309, %v310
      %v312 = vrot.slane %v311, 2
      %v313 = vadd.f32 %v311, %v312
      %v314 = vrot.slane %v313, 1
      %v315 = vadd.f32 %v313, %v314
      %v316 = vmul.f32 %v210, %v210
      %v317 = vsel %vm212, %v316, 0.0
      %v318 = vrot.slane %v317, 4
      %v319 = vadd.f32 %v317, %v318
      %v320 = vrot.slane %v319, 2
      %v321 = vadd.f32 %v319, %v320
      %v322 = vrot.slane %v321, 1
      %v323 = vadd.f32 %v321, %v322
      %325 = vrot.lane.b32.xlu0 %v315, 112
      %v326 = vpop.permute.xlu0 %325
      %v328 = vadd.f32 %v315, %v326
      %330 = vrot.lane.b32.xlu0 %v323, 112
      %v331 = vpop.permute.xlu0 %330
      %v333 = vadd.f32 %v323, %v331
      %334 = vrot.lane.b32.xlu0 %v315, 96
      %v335 = vpop.permute.xlu0 %334
      %v337 = vadd.f32 %v328, %v335
      %338 = vrot.lane.b32.xlu0 %v323, 96
      %v339 = vpop.permute.xlu0 %338
      %v341 = vadd.f32 %v333, %v339
      %342 = vrot.lane.b32.xlu0 %v315, 80
      %v343 = vpop.permute.xlu0 %342
      %v345 = vadd.f32 %v337, %v343
      %346 = vrot.lane.b32.xlu0 %v323, 80
      %v347 = vpop.permute.xlu0 %346
      %v349 = vadd.f32 %v341, %v347
      %v350 = vmul.f32 %v345, %v260
      %v351 = vmul.f32 %v349, %v260
      %v352 = vmul.f32 %v350, %v350
      %v353 = vsub.f32 %v351, %v352
      %v354 = vadd.f32 %v353, 1e-05
      %v355 = vrsqrt.pop %v354
      %v356 = vmul.f32 %v355, %v354
      %v357 = vmul.f32 %v356, %v355
      %v358 = vmul.f32 0.5, %v357
      %v359 = vsub.f32 1.5, %v358
      %v360 = vmul.f32 %v355, %v359
      %vm361 = vweird.f32 %v354
      %vm362 = vweird.f32 %v355
      %vm363 = vmor %vm361, %vm362
      %v364 = vsel %vm363, %v355, %v360
      %366 = vrot.lane.b32.xlu0 %v350, 16
      %v367 = vpop.permute.xlu0 %366
      %369 = vrot.lane.b32.xlu0 %v350, 32
      %v370 = vpop.permute.xlu0 %369
      %372 = vrot.lane.b32.xlu0 %v350, 48
      %v373 = vpop.permute.xlu0 %372
      %v375 = vsel %vm286, %v350, %v367
      %v376 = vsel %vm288, %v375, %v370
      %v377 = vsel %vm290, %v376, %v373
      %379 = vrot.lane.b32.xlu0 %v364, 16
      %v380 = vpop.permute.xlu0 %379
      %382 = vrot.lane.b32.xlu0 %v364, 32
      %v383 = vpop.permute.xlu0 %382
      %385 = vrot.lane.b32.xlu0 %v364, 48
      %v386 = vpop.permute.xlu0 %385
      %v388 = vsel %vm286, %v364, %v380
      %v389 = vsel %vm288, %v388, %v383
      %v390 = vsel %vm290, %v389, %v386
      %v391 = vperm.slane %v377, 0
      %v392 = vsub.f32 %v210, %v391
      %v393 = vperm.slane %v390, 0
      %v394 = vmul.f32 %v392, %v393
      %v395 = vld [vmem:[%s1 + $0x10] sm:$0x3]
      %v396 = vperm.slane %v395, 0
      %v397 = vmul.f32 %v308, %v396
      %v398 = vmul.f32 %v394, %v396
      %v399 = vperm.slane %v395, 1
      %v400 = vadd.f32 %v397, %v399
      %v401 = vadd.f32 %v398, %v399
      %v402 = vmax.f32 %v400, 0.0
      %v403 = vmax.f32 %v401, 0.0
      %v404 = vrot.slane %v402, 7
      %v405 = vrot.slane %v403, 7
      %vm406 = vcmp.lt.s32.totalorder %v148, 1
      %v407 = vsel %vm406, %v404, %v405
      %v408 = vsel %vm406, %v405, %v404
      %v409 = vrot.slane %v402, 1
      %v410 = vrot.slane %v403, 1
      %vm411 = vcmp.lt.s32.totalorder %v148, 7
      %v412 = vsel %vm411, %v409, %v410
      %v413 = vsel %vm411, %v410, %v409
      %v414 = vmul.f32 %v408, %v170
      %v415 = vmul.f32 %v407, %v171
      %v416 = vmul.f32 %v412, %v172
      %v417 = vmul.f32 %v413, %v173
      %420 = vrot.lane.b32.xlu0 %v414, 80
      %v421 = vpop.permute.xlu0 %420
      %422 = vrot.lane.b32.xlu0 %v415, 80
      %v423 = vpop.permute.xlu0 %422
      %428 = vrot.lane.b32.xlu0 %v402, 16
      %v429 = vpop.permute.xlu0 %428
      %430 = vrot.lane.b32.xlu0 %v403, 16
      %v431 = vpop.permute.xlu0 %430
      %436 = vrot.lane.b32.xlu0 %v416, 80
      %v437 = vpop.permute.xlu0 %436
      %438 = vrot.lane.b32.xlu0 %v417, 80
      %v439 = vpop.permute.xlu0 %438
      %v442 = vsel %vm286, %v421, %v429
      %v443 = vsel %vm286, %v423, %v431
      %vm444 = vcmask 654336
      %v445 = vsel %vm444, %v442, %v437
      %v446 = vsel %vm444, %v443, %v439
      %v447 = vld [vmem:[%s1 + $0x18] sm:$0xff]
      %v448 = vld [vmem:[%s1 + $0x20] sm:$0xff]
      %v449 = vld [vmem:[%s1 + $0x28] sm:$0xff]
      %v450 = vld [vmem:[%s1 + $0x30] sm:$0xff]
      %v451 = vld [vmem:[%s1 + $0x38] sm:$0xff]
      %v452 = vld [vmem:[%s1 + $0x40] sm:$0xff]
      %v453 = vld [vmem:[%s1 + $0x48] sm:$0xff]
      %v454 = vld [vmem:[%s1 + $0x50] sm:$0xff]
      %v455 = vld [vmem:[%s1 + $0x58] sm:$0xff]
      %v456 = vld [vmem:[%s1 + $0x60] sm:$0xff]
      %v457 = vld [vmem:[%s1 + $0x68] sm:$0xff]
      %v458 = vld [vmem:[%s1 + $0x70] sm:$0xff]
      %vm459 = vcmask 785408
      %v461 = vsel %vm459, %v445, 0
      %v464 = vsel %vm459, %v446, 0
      %466 = vmatpush.msra.mxu0 0.0
      %467 = vmatpush.msra.mxu0 0.0
      %468 = vmatpush.msra.mxu0 0.0
      %469 = vmatpush.msra.mxu0 0.0
      %470 = vmatpush.msra.mxu0 %v458
      %471 = vmatpush.msra.mxu0 %v457
      %472 = vmatpush.msra.mxu0 %v456
      %473 = vmatpush.msra.mxu0 %v455
      %474 = vmatpush.msra.mxu0 %v454
      %475 = vmatpush.msra.mxu0 %v453
      %476 = vmatpush.msra.mxu0 %v452
      %477 = vmatpush.msra.mxu0 %v451
      %478 = vmatpush.msra.mxu0 %v450
      %479 = vmatpush.msra.mxu0 %v449
      %480 = vmatpush.msra.mxu0 %v448
      %481 = vmatpush.msra.mxu0 %v447
      %482 = vmatmul.f32.gmra.mxu0 %v461
      %v483 = vpop.f32.mrf.mxu0
      %v484 = vadd.f32 0.0, %v483
      %485 = vmatmul.f32.gmra.mxu0 %v464
      %v486 = vpop.f32.mrf.mxu0
      %v487 = vadd.f32 0.0, %v486
      %488 = vdwg.mxu0
      %v489 = vsel %vm212, %v484, 0.0
      %v490 = vrot.slane %v489, 4
      %v491 = vadd.f32 %v489, %v490
      %v492 = vrot.slane %v491, 2
      %v493 = vadd.f32 %v491, %v492
      %v494 = vrot.slane %v493, 1
      %v495 = vadd.f32 %v493, %v494
      %v496 = vmul.f32 %v484, %v484
      %v497 = vsel %vm212, %v496, 0.0
      %v498 = vrot.slane %v497, 4
      %v499 = vadd.f32 %v497, %v498
      %v500 = vrot.slane %v499, 2
      %v501 = vadd.f32 %v499, %v500
      %v502 = vrot.slane %v501, 1
      %v503 = vadd.f32 %v501, %v502
      %505 = vrot.lane.b32.xlu0 %v495, 96
      %v506 = vpop.permute.xlu0 %505
      %v508 = vadd.f32 %v495, %v506
      %510 = vrot.lane.b32.xlu0 %v503, 96
      %v511 = vpop.permute.xlu0 %510
      %v513 = vadd.f32 %v503, %v511
      %v514 = vrcp.pop 16.0
      %v515 = vmul.f32 16.0, %v514
      %v516 = vsub.f32 1.0, %v515
      %v517 = vmul.f32 %v514, %v516
      %v518 = vadd.f32 %v514, %v517
      %vm519 = vweird.f32 %v514
      %v520 = vsel %vm519, %v514, %v518
      %v521 = vmul.f32 %v508, %v520
      %v522 = vmul.f32 %v513, %v520
      %v523 = vmul.f32 %v521, %v521
      %v524 = vsub.f32 %v522, %v523
      %v525 = vadd.f32 %v524, 1e-05
      %v526 = vrsqrt.pop %v525
      %v527 = vmul.f32 %v526, %v525
      %v528 = vmul.f32 %v527, %v526
      %v529 = vmul.f32 0.5, %v528
      %v530 = vsub.f32 1.5, %v529
      %v531 = vmul.f32 %v526, %v530
      %vm532 = vweird.f32 %v525
      %vm533 = vweird.f32 %v526
      %vm534 = vmor %vm532, %vm533
      %v535 = vsel %vm534, %v526, %v531
      %537 = vrot.lane.b32.xlu0 %v521, 32
      %v538 = vpop.permute.xlu0 %537
      %v540 = vsel %vm288, %v521, %v538
      %542 = vrot.lane.b32.xlu0 %v535, 32
      %v543 = vpop.permute.xlu0 %542
      %v545 = vsel %vm288, %v535, %v543
      %v546 = vperm.slane %v540, 0
      %v547 = vsub.f32 %v484, %v546
      %v548 = vperm.slane %v545, 0
      %v549 = vmul.f32 %v547, %v548
      %v550 = vsel %vm212, %v487, 0.0
      %v551 = vrot.slane %v550, 4
      %v552 = vadd.f32 %v550, %v551
      %v553 = vrot.slane %v552, 2
      %v554 = vadd.f32 %v552, %v553
      %v555 = vrot.slane %v554, 1
      %v556 = vadd.f32 %v554, %v555
      %v557 = vmul.f32 %v487, %v487
      %v558 = vsel %vm212, %v557, 0.0
      %v559 = vrot.slane %v558, 4
      %v560 = vadd.f32 %v558, %v559
      %v561 = vrot.slane %v560, 2
      %v562 = vadd.f32 %v560, %v561
      %v563 = vrot.slane %v562, 1
      %v564 = vadd.f32 %v562, %v563
      %566 = vrot.lane.b32.xlu0 %v556, 96
      %v567 = vpop.permute.xlu0 %566
      %v569 = vadd.f32 %v556, %v567
      %571 = vrot.lane.b32.xlu0 %v564, 96
      %v572 = vpop.permute.xlu0 %571
      %v574 = vadd.f32 %v564, %v572
      %v575 = vmul.f32 %v569, %v520
      %v576 = vmul.f32 %v574, %v520
      %v577 = vmul.f32 %v575, %v575
      %v578 = vsub.f32 %v576, %v577
      %v579 = vadd.f32 %v578, 1e-05
      %v580 = vrsqrt.pop %v579
      %v581 = vmul.f32 %v580, %v579
      %v582 = vmul.f32 %v581, %v580
      %v583 = vmul.f32 0.5, %v582
      %v584 = vsub.f32 1.5, %v583
      %v585 = vmul.f32 %v580, %v584
      %vm586 = vweird.f32 %v579
      %vm587 = vweird.f32 %v580
      %vm588 = vmor %vm586, %vm587
      %v589 = vsel %vm588, %v580, %v585
      %591 = vrot.lane.b32.xlu0 %v575, 32
      %v592 = vpop.permute.xlu0 %591
      %v594 = vsel %vm288, %v575, %v592
      %596 = vrot.lane.b32.xlu0 %v589, 32
      %v597 = vpop.permute.xlu0 %596
      %v599 = vsel %vm288, %v589, %v597
      %v600 = vperm.slane %v594, 0
      %v601 = vsub.f32 %v487, %v600
      %v602 = vperm.slane %v599, 0
      %v603 = vmul.f32 %v601, %v602
      %v604 = vld [vmem:[%s1 + $0x78] sm:$0x3]
      %v605 = vperm.slane %v604, 0
      %v606 = vmul.f32 %v549, %v605
      %v607 = vmul.f32 %v603, %v605
      %v608 = vperm.slane %v604, 1
      %v609 = vadd.f32 %v606, %v608
      %v610 = vadd.f32 %v607, %v608
      %v611 = vmax.f32 %v609, 0.0
      %v612 = vmax.f32 %v610, 0.0
      %v613 = vrot.slane %v611, 7
      %v614 = vrot.slane %v612, 7
      %v615 = vsel %vm406, %v613, %v614
      %v616 = vsel %vm406, %v614, %v613
      %v617 = vrot.slane %v611, 1
      %v618 = vrot.slane %v612, 1
      %v619 = vsel %vm411, %v617, %v618
      %v620 = vsel %vm411, %v618, %v617
      %v621 = vmul.f32 %v616, %v170
      %v622 = vmul.f32 %v615, %v171
      %v623 = vmul.f32 %v619, %v172
      %v624 = vmul.f32 %v620, %v173
      %627 = vrot.lane.b32.xlu0 %v621, 96
      %v628 = vpop.permute.xlu0 %627
      %629 = vrot.lane.b32.xlu0 %v622, 96
      %v630 = vpop.permute.xlu0 %629
      %635 = vrot.lane.b32.xlu0 %v611, 32
      %v636 = vpop.permute.xlu0 %635
      %637 = vrot.lane.b32.xlu0 %v612, 32
      %v638 = vpop.permute.xlu0 %637
      %643 = vrot.lane.b32.xlu0 %v623, 96
      %v644 = vpop.permute.xlu0 %643
      %645 = vrot.lane.b32.xlu0 %v624, 96
      %v646 = vpop.permute.xlu0 %645
      %v649 = vsel %vm288, %v628, %v636
      %v650 = vsel %vm288, %v630, %v638
      %v651 = vsel %vm459, %v649, %v644
      %v652 = vsel %vm459, %v650, %v646
      %v653 = vld [vmem:[%s1 + $0x80] sm:$0xff]
      %v654 = vld [vmem:[%s1 + $0x88] sm:$0xff]
      %v655 = vld [vmem:[%s1 + $0x90] sm:$0xff]
      %v656 = vld [vmem:[%s1 + $0x98] sm:$0xff]
      %v657 = vld [vmem:[%s1 + $0xa0] sm:$0xff]
      %v658 = vld [vmem:[%s1 + $0xa8] sm:$0xff]
      %v659 = vld [vmem:[%s1 + $0xb0] sm:$0xff]
      %v660 = vld [vmem:[%s1 + $0xb8] sm:$0xff]
      %v661 = vld [vmem:[%s1 + $0xc0] sm:$0xff]
      %v662 = vld [vmem:[%s1 + $0xc8] sm:$0xff]
      %v663 = vld [vmem:[%s1 + $0xd0] sm:$0xff]
      %v664 = vld [vmem:[%s1 + $0xd8] sm:$0xff]
      %v665 = vld [vmem:[%s1 + $0xe0] sm:$0xff]
      %v666 = vld [vmem:[%s1 + $0xe8] sm:$0xff]
      %v667 = vld [vmem:[%s1 + $0xf0] sm:$0xff]
      %v668 = vld [vmem:[%s1 + $0xf8] sm:$0xff]
      %669 = vmatpush.msra.mxu0 %v668
      %670 = vmatpush.msra.mxu0 %v667
      %671 = vmatpush.msra.mxu0 %v666
      %672 = vmatpush.msra.mxu0 %v665
      %673 = vmatpush.msra.mxu0 %v664
      %674 = vmatpush.msra.mxu0 %v663
      %675 = vmatpush.msra.mxu0 %v662
      %676 = vmatpush.msra.mxu0 %v661
      %677 = vmatpush.msra.mxu0 %v660
      %678 = vmatpush.msra.mxu0 %v659
      %679 = vmatpush.msra.mxu0 %v658
      %680 = vmatpush.msra.mxu0 %v657
      %681 = vmatpush.msra.mxu0 %v656
      %682 = vmatpush.msra.mxu0 %v655
      %683 = vmatpush.msra.mxu0 %v654
      %684 = vmatpush.msra.mxu0 %v653
      %685 = vmatmul.f32.gmra.mxu0 %v651
      %v686 = vpop.f32.mrf.mxu0
      %v687 = vadd.f32 0.0, %v686
      %688 = vmatmul.f32.gmra.mxu0 %v652
      %v689 = vpop.f32.mrf.mxu0
      %v690 = vadd.f32 0.0, %v689
      %691 = vdwg.mxu0
      %v692 = vsel %vm212, %v687, 0.0
      %v693 = vrot.slane %v692, 4
      %v694 = vadd.f32 %v692, %v693
      %v695 = vrot.slane %v694, 2
      %v696 = vadd.f32 %v694, %v695
      %v697 = vrot.slane %v696, 1
      %v698 = vadd.f32 %v696, %v697
      %v699 = vmul.f32 %v687, %v687
      %v700 = vsel %vm212, %v699, 0.0
      %v701 = vrot.slane %v700, 4
      %v702 = vadd.f32 %v700, %v701
      %v703 = vrot.slane %v702, 2
      %v704 = vadd.f32 %v702, %v703
      %v705 = vrot.slane %v704, 1
      %v706 = vadd.f32 %v704, %v705
      %v707 = vrcp.pop 8.0
      %v708 = vmul.f32 8.0, %v707
      %v709 = vsub.f32 1.0, %v708
      %v710 = vmul.f32 %v707, %v709
      %v711 = vadd.f32 %v707, %v710
      %vm712 = vweird.f32 %v707
      %v713 = vsel %vm712, %v707, %v711
      %v714 = vmul.f32 %v698, %v713
      %v715 = vmul.f32 %v706, %v713
      %v716 = vmul.f32 %v714, %v714
      %v717 = vsub.f32 %v715, %v716
      %v718 = vadd.f32 %v717, 1e-05
      %v719 = vrsqrt.pop %v718
      %v720 = vmul.f32 %v719, %v718
      %v721 = vmul.f32 %v720, %v719
      %v722 = vmul.f32 0.5, %v721
      %v723 = vsub.f32 1.5, %v722
      %v724 = vmul.f32 %v719, %v723
      %vm725 = vweird.f32 %v718
      %vm726 = vweird.f32 %v719
      %vm727 = vmor %vm725, %vm726
      %v728 = vsel %vm727, %v719, %v724
      %v729 = vsub.f32 %v687, %v714
      %v730 = vmul.f32 %v729, %v728
      %v731 = vsel %vm212, %v690, 0.0
      %v732 = vrot.slane %v731, 4
      %v733 = vadd.f32 %v731, %v732
      %v734 = vrot.slane %v733, 2
      %v735 = vadd.f32 %v733, %v734
      %v736 = vrot.slane %v735, 1
      %v737 = vadd.f32 %v735, %v736
      %v738 = vmul.f32 %v690, %v690
      %v739 = vsel %vm212, %v738, 0.0
      %v740 = vrot.slane %v739, 4
      %v741 = vadd.f32 %v739, %v740
      %v742 = vrot.slane %v741, 2
      %v743 = vadd.f32 %v741, %v742
      %v744 = vrot.slane %v743, 1
      %v745 = vadd.f32 %v743, %v744
      %v746 = vmul.f32 %v737, %v713
      %v747 = vmul.f32 %v745, %v713
      %v748 = vmul.f32 %v746, %v746
      %v749 = vsub.f32 %v747, %v748
      %v750 = vadd.f32 %v749, 1e-05
      %v751 = vrsqrt.pop %v750
      %v752 = vmul.f32 %v751, %v750
      %v753 = vmul.f32 %v752, %v751
      %v754 = vmul.f32 0.5, %v753
      %v755 = vsub.f32 1.5, %v754
      %v756 = vmul.f32 %v751, %v755
      %vm757 = vweird.f32 %v750
      %vm758 = vweird.f32 %v751
      %vm759 = vmor %vm757, %vm758
      %v760 = vsel %vm759, %v751, %v756
      %v761 = vsub.f32 %v690, %v746
      %v762 = vmul.f32 %v761, %v760
      %v763 = vld [vmem:[%s1 + $0x100] sm:$0x3]
      %v764 = vperm.slane %v763, 0
      %v765 = vmul.f32 %v730, %v764
      %v766 = vmul.f32 %v762, %v764
      %v767 = vperm.slane %v763, 1
      %v768 = vadd.f32 %v765, %v767
      %v769 = vadd.f32 %v766, %v767
      %v770 = vmax.f32 %v768, 0.0
      %v771 = vmax.f32 %v769, 0.0
      %v772 = vrot.slane %v770, 7
      %v773 = vrot.slane %v771, 7
      %v774 = vsel %vm406, %v772, %v773
      %v775 = vsel %vm406, %v773, %v772
      %v776 = vrot.slane %v770, 1
      %v777 = vrot.slane %v771, 1
      %v778 = vsel %vm411, %v776, %v777
      %v779 = vsel %vm411, %v777, %v776
      %v780 = vmul.f32 %v775, %v170
      %v781 = vmul.f32 %v774, %v171
      %v782 = vmul.f32 %v778, %v158
      %v783 = vmul.f32 %v779, %v159
      %v784 = vadd.f32 %v780, %v782
      %v785 = vadd.f32 %v781, %v783
      %v786 = vmul.f32 %v778, %v172
      %v787 = vmul.f32 %v779, %v173
      %v788 = vmul.f32 %v775, %v168
      %v789 = vmul.f32 %v774, %v169
      %v790 = vadd.f32 %v786, %v788
      %v791 = vadd.f32 %v787, %v789
      %794 = vrot.lane.b32.xlu0 %v770, 64
      %v795 = vpop.permute.xlu0 %794
      %796 = vrot.lane.b32.xlu0 %v771, 64
      %v797 = vpop.permute.xlu0 %796
      %v800 = vsel %vm212, %v784, %v795
      %v801 = vsel %vm212, %v785, %v797
      %v802 = vld [vmem:[%s1 + $0x108] sm:$0xff]
      %v803 = vld [vmem:[%s1 + $0x110] sm:$0xff]
      %v804 = vld [vmem:[%s1 + $0x118] sm:$0xff]
      %v805 = vld [vmem:[%s1 + $0x120] sm:$0xff]
      %v806 = vld [vmem:[%s1 + $0x128] sm:$0xff]
      %v807 = vld [vmem:[%s1 + $0x130] sm:$0xff]
      %v808 = vld [vmem:[%s1 + $0x138] sm:$0xff]
      %v809 = vld [vmem:[%s1 + $0x140] sm:$0xff]
      %v810 = vld [vmem:[%s1 + $0x148] sm:$0xff]
      %v811 = vld [vmem:[%s1 + $0x150] sm:$0xff]
      %v812 = vld [vmem:[%s1 + $0x158] sm:$0xff]
      %v813 = vld [vmem:[%s1 + $0x160] sm:$0xff]
      %v814 = vld [vmem:[%s1 + $0x168] sm:$0xff]
      %v815 = vld [vmem:[%s1 + $0x170] sm:$0xff]
      %v816 = vld [vmem:[%s1 + $0x178] sm:$0xff]
      %v817 = vld [vmem:[%s1 + $0x180] sm:$0xff]
      %v818 = vld [vmem:[%s1 + $0x188] sm:$0xff]
      %v819 = vld [vmem:[%s1 + $0x190] sm:$0xff]
      %v820 = vld [vmem:[%s1 + $0x198] sm:$0xff]
      %v821 = vld [vmem:[%s1 + $0x1a0] sm:$0xff]
      %v822 = vld [vmem:[%s1 + $0x1a8] sm:$0xff]
      %v823 = vld [vmem:[%s1 + $0x1b0] sm:$0xff]
      %v824 = vld [vmem:[%s1 + $0x1b8] sm:$0xff]
      %v825 = vld [vmem:[%s1 + $0x1c0] sm:$0xff]
      %v827 = vsel %vm212, %v790, 0
      %v830 = vsel %vm212, %v791, 0
      %832 = vmatpush.msra.mxu0 %v817
      %833 = vmatpush.msra.mxu0 %v816
      %834 = vmatpush.msra.mxu0 %v815
      %835 = vmatpush.msra.mxu0 %v814
      %836 = vmatpush.msra.mxu0 %v813
      %837 = vmatpush.msra.mxu0 %v812
      %838 = vmatpush.msra.mxu0 %v811
      %839 = vmatpush.msra.mxu0 %v810
      %840 = vmatpush.msra.mxu0 %v809
      %841 = vmatpush.msra.mxu0 %v808
      %842 = vmatpush.msra.mxu0 %v807
      %843 = vmatpush.msra.mxu0 %v806
      %844 = vmatpush.msra.mxu0 %v805
      %845 = vmatpush.msra.mxu0 %v804
      %846 = vmatpush.msra.mxu0 %v803
      %847 = vmatpush.msra.mxu0 %v802
      %848 = vmatmul.f32.gmra.mxu0 %v800
      %v849 = vpop.f32.mrf.mxu0
      %v850 = vadd.f32 0.0, %v849
      %851 = vmatmul.f32.gmra.mxu0 %v801
      %v852 = vpop.f32.mrf.mxu0
      %v853 = vadd.f32 0.0, %v852
      %854 = vdwg.mxu0
      %855 = vmatpush.msra.mxu0 0.0
      %856 = vmatpush.msra.mxu0 0.0
      %857 = vmatpush.msra.mxu0 0.0
      %858 = vmatpush.msra.mxu0 0.0
      %859 = vmatpush.msra.mxu0 0.0
      %860 = vmatpush.msra.mxu0 0.0
      %861 = vmatpush.msra.mxu0 0.0
      %862 = vmatpush.msra.mxu0 0.0
      %863 = vmatpush.msra.mxu0 %v825
      %864 = vmatpush.msra.mxu0 %v824
      %865 = vmatpush.msra.mxu0 %v823
      %866 = vmatpush.msra.mxu0 %v822
      %867 = vmatpush.msra.mxu0 %v821
      %868 = vmatpush.msra.mxu0 %v820
      %869 = vmatpush.msra.mxu0 %v819
      %870 = vmatpush.msra.mxu0 %v818
      %871 = vmatmul.f32.gmra.mxu0 %v827
      %v872 = vpop.f32.mrf.mxu0
      %v873 = vadd.f32 %v850, %v872
      %874 = vmatmul.f32.gmra.mxu0 %v830
      %v875 = vpop.f32.mrf.mxu0
      %v876 = vadd.f32 %v853, %v875
      %877 = vdwg.mxu0
      %v878 = vsel %vm212, %v873, 0.0
      %v879 = vrot.slane %v878, 4
      %v880 = vadd.f32 %v878, %v879
      %v881 = vrot.slane %v880, 2
      %v882 = vadd.f32 %v880, %v881
      %v883 = vrot.slane %v882, 1
      %v884 = vadd.f32 %v882, %v883
      %v885 = vmul.f32 %v873, %v873
      %v886 = vsel %vm212, %v885, 0.0
      %v887 = vrot.slane %v886, 4
      %v888 = vadd.f32 %v886, %v887
      %v889 = vrot.slane %v888, 2
      %v890 = vadd.f32 %v888, %v889
      %v891 = vrot.slane %v890, 1
      %v892 = vadd.f32 %v890, %v891
      %v893 = vmul.f32 %v884, %v713
      %v894 = vmul.f32 %v892, %v713
      %v895 = vmul.f32 %v893, %v893
      %v896 = vsub.f32 %v894, %v895
      %v897 = vadd.f32 %v896, 1e-05
      %v898 = vrsqrt.pop %v897
      %v899 = vmul.f32 %v898, %v897
      %v900 = vmul.f32 %v899, %v898
      %v901 = vmul.f32 0.5, %v900
      %v902 = vsub.f32 1.5, %v901
      %v903 = vmul.f32 %v898, %v902
      %vm904 = vweird.f32 %v897
      %vm905 = vweird.f32 %v898
      %vm906 = vmor %vm904, %vm905
      %v907 = vsel %vm906, %v898, %v903
      %v908 = vsub.f32 %v873, %v893
      %v909 = vmul.f32 %v908, %v907
      %v910 = vsel %vm212, %v876, 0.0
      %v911 = vrot.slane %v910, 4
      %v912 = vadd.f32 %v910, %v911
      %v913 = vrot.slane %v912, 2
      %v914 = vadd.f32 %v912, %v913
      %v915 = vrot.slane %v914, 1
      %v916 = vadd.f32 %v914, %v915
      %v917 = vmul.f32 %v876, %v876
      %v918 = vsel %vm212, %v917, 0.0
      %v919 = vrot.slane %v918, 4
      %v920 = vadd.f32 %v918, %v919
      %v921 = vrot.slane %v920, 2
      %v922 = vadd.f32 %v920, %v921
      %v923 = vrot.slane %v922, 1
      %v924 = vadd.f32 %v922, %v923
      %v925 = vmul.f32 %v916, %v713
      %v926 = vmul.f32 %v924, %v713
      %v927 = vmul.f32 %v925, %v925
      %v928 = vsub.f32 %v926, %v927
      %v929 = vadd.f32 %v928, 1e-05
      %v930 = vrsqrt.pop %v929
      %v931 = vmul.f32 %v930, %v929
      %v932 = vmul.f32 %v931, %v930
      %v933 = vmul.f32 0.5, %v932
      %v934 = vsub.f32 1.5, %v933
      %v935 = vmul.f32 %v930, %v934
      %vm936 = vweird.f32 %v929
      %vm937 = vweird.f32 %v930
      %vm938 = vmor %vm936, %vm937
      %v939 = vsel %vm938, %v930, %v935
      %v940 = vsub.f32 %v876, %v925
      %v941 = vmul.f32 %v940, %v939
      %v942 = vmax.f32 %v909, 0.0
      %v943 = vmax.f32 %v941, 0.0
      %v944 = vrot.slane %v942, 7
      %v945 = vrot.slane %v943, 7
      %v946 = vsel %vm406, %v944, %v945
      %v947 = vsel %vm406, %v945, %v944
      %v948 = vrot.slane %v942, 1
      %v949 = vrot.slane %v943, 1
      %v950 = vsel %vm411, %v948, %v949
      %v951 = vsel %vm411, %v949, %v948
      %v952 = vmul.f32 %v947, %v170
      %v953 = vmul.f32 %v946, %v171
      %v954 = vmul.f32 %v950, %v158
      %v955 = vmul.f32 %v951, %v159
      %v956 = vadd.f32 %v952, %v954
      %v957 = vadd.f32 %v953, %v955
      %v958 = vmul.f32 %v950, %v172
      %v959 = vmul.f32 %v951, %v173
      %v960 = vmul.f32 %v947, %v168
      %v961 = vmul.f32 %v946, %v169
      %v962 = vadd.f32 %v958, %v960
      %v963 = vadd.f32 %v959, %v961
      %966 = vrot.lane.b32.xlu0 %v942, 64
      %v967 = vpop.permute.xlu0 %966
      %968 = vrot.lane.b32.xlu0 %v943, 64
      %v969 = vpop.permute.xlu0 %968
      %v972 = vsel %vm212, %v956, %v967
      %v973 = vsel %vm212, %v957, %v969
      %v974 = vld [vmem:[%s1 + $0x1c8] sm:$0xff]
      %v975 = vld [vmem:[%s1 + $0x1d0] sm:$0xff]
      %v976 = vld [vmem:[%s1 + $0x1d8] sm:$0xff]
      %v977 = vld [vmem:[%s1 + $0x1e0] sm:$0xff]
      %v978 = vld [vmem:[%s1 + $0x1e8] sm:$0xff]
      %v979 = vld [vmem:[%s1 + $0x1f0] sm:$0xff]
      %v980 = vld [vmem:[%s1 + $0x1f8] sm:$0xff]
      %v981 = vld [vmem:[%s1 + $0x200] sm:$0xff]
      %v982 = vld [vmem:[%s1 + $0x208] sm:$0xff]
      %v983 = vld [vmem:[%s1 + $0x210] sm:$0xff]
      %v984 = vld [vmem:[%s1 + $0x218] sm:$0xff]
      %v985 = vld [vmem:[%s1 + $0x220] sm:$0xff]
      %v986 = vld [vmem:[%s1 + $0x228] sm:$0xff]
      %v987 = vld [vmem:[%s1 + $0x230] sm:$0xff]
      %v988 = vld [vmem:[%s1 + $0x238] sm:$0xff]
      %v989 = vld [vmem:[%s1 + $0x240] sm:$0xff]
      %v990 = vld [vmem:[%s1 + $0x248] sm:$0xff]
      %v991 = vld [vmem:[%s1 + $0x250] sm:$0xff]
      %v992 = vld [vmem:[%s1 + $0x258] sm:$0xff]
      %v993 = vld [vmem:[%s1 + $0x260] sm:$0xff]
      %v994 = vld [vmem:[%s1 + $0x268] sm:$0xff]
      %v995 = vld [vmem:[%s1 + $0x270] sm:$0xff]
      %v996 = vld [vmem:[%s1 + $0x278] sm:$0xff]
      %v997 = vld [vmem:[%s1 + $0x280] sm:$0xff]
      %v999 = vsel %vm212, %v962, 0
      %v1002 = vsel %vm212, %v963, 0
      %1004 = vmatpush.msra.mxu0 %v989
      %1005 = vmatpush.msra.mxu0 %v988
      %1006 = vmatpush.msra.mxu0 %v987
      %1007 = vmatpush.msra.mxu0 %v986
      %1008 = vmatpush.msra.mxu0 %v985
      %1009 = vmatpush.msra.mxu0 %v984
      %1010 = vmatpush.msra.mxu0 %v983
      %1011 = vmatpush.msra.mxu0 %v982
      %1012 = vmatpush.msra.mxu0 %v981
      %1013 = vmatpush.msra.mxu0 %v980
      %1014 = vmatpush.msra.mxu0 %v979
      %1015 = vmatpush.msra.mxu0 %v978
      %1016 = vmatpush.msra.mxu0 %v977
      %1017 = vmatpush.msra.mxu0 %v976
      %1018 = vmatpush.msra.mxu0 %v975
      %1019 = vmatpush.msra.mxu0 %v974
      %1020 = vmatmul.f32.gmra.mxu0 %v972
      %v1021 = vpop.f32.mrf.mxu0
      %v1022 = vadd.f32 0.0, %v1021
      %1023 = vmatmul.f32.gmra.mxu0 %v973
      %v1024 = vpop.f32.mrf.mxu0
      %v1025 = vadd.f32 0.0, %v1024
      %1026 = vdwg.mxu0
      %1027 = vmatpush.msra.mxu0 0.0
      %1028 = vmatpush.msra.mxu0 0.0
      %1029 = vmatpush.msra.mxu0 0.0
      %1030 = vmatpush.msra.mxu0 0.0
      %1031 = vmatpush.msra.mxu0 0.0
      %1032 = vmatpush.msra.mxu0 0.0
      %1033 = vmatpush.msra.mxu0 0.0
      %1034 = vmatpush.msra.mxu0 0.0
      %1035 = vmatpush.msra.mxu0 %v997
      %1036 = vmatpush.msra.mxu0 %v996
      %1037 = vmatpush.msra.mxu0 %v995
      %1038 = vmatpush.msra.mxu0 %v994
      %1039 = vmatpush.msra.mxu0 %v993
      %1040 = vmatpush.msra.mxu0 %v992
      %1041 = vmatpush.msra.mxu0 %v991
      %1042 = vmatpush.msra.mxu0 %v990
      %1043 = vmatmul.f32.gmra.mxu0 %v999
      %v1044 = vpop.f32.mrf.mxu0
      %v1045 = vadd.f32 %v1022, %v1044
      %1046 = vmatmul.f32.gmra.mxu0 %v1002
      %v1047 = vpop.f32.mrf.mxu0
      %v1048 = vadd.f32 %v1025, %v1047
      %1049 = vdwg.mxu0
      %v1050 = vsel %vm212, %v1045, 0.0
      %v1051 = vrot.slane %v1050, 4
      %v1052 = vadd.f32 %v1050, %v1051
      %v1053 = vrot.slane %v1052, 2
      %v1054 = vadd.f32 %v1052, %v1053
      %v1055 = vrot.slane %v1054, 1
      %v1056 = vadd.f32 %v1054, %v1055
      %v1057 = vmul.f32 %v1045, %v1045
      %v1058 = vsel %vm212, %v1057, 0.0
      %v1059 = vrot.slane %v1058, 4
      %v1060 = vadd.f32 %v1058, %v1059
      %v1061 = vrot.slane %v1060, 2
      %v1062 = vadd.f32 %v1060, %v1061
      %v1063 = vrot.slane %v1062, 1
      %v1064 = vadd.f32 %v1062, %v1063
      %v1065 = vmul.f32 %v1056, %v713
      %v1066 = vmul.f32 %v1064, %v713
      %v1067 = vmul.f32 %v1065, %v1065
      %v1068 = vsub.f32 %v1066, %v1067
      %v1069 = vadd.f32 %v1068, 1e-05
      %v1070 = vrsqrt.pop %v1069
      %v1071 = vmul.f32 %v1070, %v1069
      %v1072 = vmul.f32 %v1071, %v1070
      %v1073 = vmul.f32 0.5, %v1072
      %v1074 = vsub.f32 1.5, %v1073
      %v1075 = vmul.f32 %v1070, %v1074
      %vm1076 = vweird.f32 %v1069
      %vm1077 = vweird.f32 %v1070
      %vm1078 = vmor %vm1076, %vm1077
      %v1079 = vsel %vm1078, %v1070, %v1075
      %v1080 = vsub.f32 %v1045, %v1065
      %v1081 = vmul.f32 %v1080, %v1079
      %v1082 = vsel %vm212, %v1048, 0.0
      %v1083 = vrot.slane %v1082, 4
      %v1084 = vadd.f32 %v1082, %v1083
      %v1085 = vrot.slane %v1084, 2
      %v1086 = vadd.f32 %v1084, %v1085
      %v1087 = vrot.slane %v1086, 1
      %v1088 = vadd.f32 %v1086, %v1087
      %v1089 = vmul.f32 %v1048, %v1048
      %v1090 = vsel %vm212, %v1089, 0.0
      %v1091 = vrot.slane %v1090, 4
      %v1092 = vadd.f32 %v1090, %v1091
      %v1093 = vrot.slane %v1092, 2
      %v1094 = vadd.f32 %v1092, %v1093
      %v1095 = vrot.slane %v1094, 1
      %v1096 = vadd.f32 %v1094, %v1095
      %v1097 = vmul.f32 %v1088, %v713
      %v1098 = vmul.f32 %v1096, %v713
      %v1099 = vmul.f32 %v1097, %v1097
      %v1100 = vsub.f32 %v1098, %v1099
      %v1101 = vadd.f32 %v1100, 1e-05
      %v1102 = vrsqrt.pop %v1101
      %v1103 = vmul.f32 %v1102, %v1101
      %v1104 = vmul.f32 %v1103, %v1102
      %v1105 = vmul.f32 0.5, %v1104
      %v1106 = vsub.f32 1.5, %v1105
      %v1107 = vmul.f32 %v1102, %v1106
      %vm1108 = vweird.f32 %v1101
      %vm1109 = vweird.f32 %v1102
      %vm1110 = vmor %vm1108, %vm1109
      %v1111 = vsel %vm1110, %v1102, %v1107
      %v1112 = vsub.f32 %v1048, %v1097
      %v1113 = vmul.f32 %v1112, %v1111
      %v1114 = vadd.f32 %v770, %v1081
      %v1115 = vadd.f32 %v771, %v1113
      %v1116 = vrot.slane %v1114, 7
      %v1117 = vrot.slane %v1115, 7
      %v1118 = vsel %vm406, %v1116, %v1117
      %v1119 = vsel %vm406, %v1117, %v1116
      %v1120 = vrot.slane %v1114, 1
      %v1121 = vrot.slane %v1115, 1
      %v1122 = vsel %vm411, %v1120, %v1121
      %v1123 = vsel %vm411, %v1121, %v1120
      %v1124 = vmul.f32 %v1119, %v170
      %v1125 = vmul.f32 %v1118, %v171
      %v1126 = vmul.f32 %v1122, %v158
      %v1127 = vmul.f32 %v1123, %v159
      %v1128 = vadd.f32 %v1124, %v1126
      %v1129 = vadd.f32 %v1125, %v1127
      %v1130 = vmul.f32 %v1122, %v172
      %v1131 = vmul.f32 %v1123, %v173
      %v1132 = vmul.f32 %v1119, %v168
      %v1133 = vmul.f32 %v1118, %v169
      %v1134 = vadd.f32 %v1130, %v1132
      %v1135 = vadd.f32 %v1131, %v1133
      %1138 = vrot.lane.b32.xlu0 %v1114, 64
      %v1139 = vpop.permute.xlu0 %1138
      %1140 = vrot.lane.b32.xlu0 %v1115, 64
      %v1141 = vpop.permute.xlu0 %1140
      %v1144 = vsel %vm212, %v1128, %v1139
      %v1145 = vsel %vm212, %v1129, %v1141
      %v1146 = vld [vmem:[%s1 + $0x288] sm:$0xff]
      %v1147 = vld [vmem:[%s1 + $0x290] sm:$0xff]
      %v1148 = vld [vmem:[%s1 + $0x298] sm:$0xff]
      %v1149 = vld [vmem:[%s1 + $0x2a0] sm:$0xff]
      %v1150 = vld [vmem:[%s1 + $0x2a8] sm:$0xff]
      %v1151 = vld [vmem:[%s1 + $0x2b0] sm:$0xff]
      %v1152 = vld [vmem:[%s1 + $0x2b8] sm:$0xff]
      %v1153 = vld [vmem:[%s1 + $0x2c0] sm:$0xff]
      %v1154 = vld [vmem:[%s1 + $0x2c8] sm:$0xff]
      %v1155 = vld [vmem:[%s1 + $0x2d0] sm:$0xff]
      %v1156 = vld [vmem:[%s1 + $0x2d8] sm:$0xff]
      %v1157 = vld [vmem:[%s1 + $0x2e0] sm:$0xff]
      %v1158 = vld [vmem:[%s1 + $0x2e8] sm:$0xff]
      %v1159 = vld [vmem:[%s1 + $0x2f0] sm:$0xff]
      %v1160 = vld [vmem:[%s1 + $0x2f8] sm:$0xff]
      %v1161 = vld [vmem:[%s1 + $0x300] sm:$0xff]
      %v1162 = vld [vmem:[%s1 + $0x308] sm:$0xff]
      %v1163 = vld [vmem:[%s1 + $0x310] sm:$0xff]
      %v1164 = vld [vmem:[%s1 + $0x318] sm:$0xff]
      %v1165 = vld [vmem:[%s1 + $0x320] sm:$0xff]
      %v1166 = vld [vmem:[%s1 + $0x328] sm:$0xff]
      %v1167 = vld [vmem:[%s1 + $0x330] sm:$0xff]
      %v1168 = vld [vmem:[%s1 + $0x338] sm:$0xff]
      %v1169 = vld [vmem:[%s1 + $0x340] sm:$0xff]
      %v1171 = vsel %vm212, %v1134, 0
      %v1174 = vsel %vm212, %v1135, 0
      %1176 = vmatpush.msra.mxu0 %v1161
      %1177 = vmatpush.msra.mxu0 %v1160
      %1178 = vmatpush.msra.mxu0 %v1159
      %1179 = vmatpush.msra.mxu0 %v1158
      %1180 = vmatpush.msra.mxu0 %v1157
      %1181 = vmatpush.msra.mxu0 %v1156
      %1182 = vmatpush.msra.mxu0 %v1155
      %1183 = vmatpush.msra.mxu0 %v1154
      %1184 = vmatpush.msra.mxu0 %v1153
      %1185 = vmatpush.msra.mxu0 %v1152
      %1186 = vmatpush.msra.mxu0 %v1151
      %1187 = vmatpush.msra.mxu0 %v1150
      %1188 = vmatpush.msra.mxu0 %v1149
      %1189 = vmatpush.msra.mxu0 %v1148
      %1190 = vmatpush.msra.mxu0 %v1147
      %1191 = vmatpush.msra.mxu0 %v1146
      %1192 = vmatmul.f32.gmra.mxu0 %v1144
      %v1193 = vpop.f32.mrf.mxu0
      %v1194 = vadd.f32 0.0, %v1193
      %1195 = vmatmul.f32.gmra.mxu0 %v1145
      %v1196 = vpop.f32.mrf.mxu0
      %v1197 = vadd.f32 0.0, %v1196
      %1198 = vdwg.mxu0
      %1199 = vmatpush.msra.mxu0 0.0
      %1200 = vmatpush.msra.mxu0 0.0
      %1201 = vmatpush.msra.mxu0 0.0
      %1202 = vmatpush.msra.mxu0 0.0
      %1203 = vmatpush.msra.mxu0 0.0
      %1204 = vmatpush.msra.mxu0 0.0
      %1205 = vmatpush.msra.mxu0 0.0
      %1206 = vmatpush.msra.mxu0 0.0
      %1207 = vmatpush.msra.mxu0 %v1169
      %1208 = vmatpush.msra.mxu0 %v1168
      %1209 = vmatpush.msra.mxu0 %v1167
      %1210 = vmatpush.msra.mxu0 %v1166
      %1211 = vmatpush.msra.mxu0 %v1165
      %1212 = vmatpush.msra.mxu0 %v1164
      %1213 = vmatpush.msra.mxu0 %v1163
      %1214 = vmatpush.msra.mxu0 %v1162
      %1215 = vmatmul.f32.gmra.mxu0 %v1171
      %v1216 = vpop.f32.mrf.mxu0
      %v1217 = vadd.f32 %v1194, %v1216
      %1218 = vmatmul.f32.gmra.mxu0 %v1174
      %v1219 = vpop.f32.mrf.mxu0
      %v1220 = vadd.f32 %v1197, %v1219
      %1221 = vdwg.mxu0
      %v1222 = vsel %vm212, %v1217, 0.0
      %v1223 = vrot.slane %v1222, 4
      %v1224 = vadd.f32 %v1222, %v1223
      %v1225 = vrot.slane %v1224, 2
      %v1226 = vadd.f32 %v1224, %v1225
      %v1227 = vrot.slane %v1226, 1
      %v1228 = vadd.f32 %v1226, %v1227
      %v1229 = vmul.f32 %v1217, %v1217
      %v1230 = vsel %vm212, %v1229, 0.0
      %v1231 = vrot.slane %v1230, 4
      %v1232 = vadd.f32 %v1230, %v1231
      %v1233 = vrot.slane %v1232, 2
      %v1234 = vadd.f32 %v1232, %v1233
      %v1235 = vrot.slane %v1234, 1
      %v1236 = vadd.f32 %v1234, %v1235
      %v1237 = vmul.f32 %v1228, %v713
      %v1238 = vmul.f32 %v1236, %v713
      %v1239 = vmul.f32 %v1237, %v1237
      %v1240 = vsub.f32 %v1238, %v1239
      %v1241 = vadd.f32 %v1240, 1e-05
      %v1242 = vrsqrt.pop %v1241
      %v1243 = vmul.f32 %v1242, %v1241
      %v1244 = vmul.f32 %v1243, %v1242
      %v1245 = vmul.f32 0.5, %v1244
      %v1246 = vsub.f32 1.5, %v1245
      %v1247 = vmul.f32 %v1242, %v1246
      %vm1248 = vweird.f32 %v1241
      %vm1249 = vweird.f32 %v1242
      %vm1250 = vmor %vm1248, %vm1249
      %v1251 = vsel %vm1250, %v1242, %v1247
      %v1252 = vsub.f32 %v1217, %v1237
      %v1253 = vmul.f32 %v1252, %v1251
      %v1254 = vsel %vm212, %v1220, 0.0
      %v1255 = vrot.slane %v1254, 4
      %v1256 = vadd.f32 %v1254, %v1255
      %v1257 = vrot.slane %v1256, 2
      %v1258 = vadd.f32 %v1256, %v1257
      %v1259 = vrot.slane %v1258, 1
      %v1260 = vadd.f32 %v1258, %v1259
      %v1261 = vmul.f32 %v1220, %v1220
      %v1262 = vsel %vm212, %v1261, 0.0
      %v1263 = vrot.slane %v1262, 4
      %v1264 = vadd.f32 %v1262, %v1263
      %v1265 = vrot.slane %v1264, 2
      %v1266 = vadd.f32 %v1264, %v1265
      %v1267 = vrot.slane %v1266, 1
      %v1268 = vadd.f32 %v1266, %v1267
      %v1269 = vmul.f32 %v1260, %v713
      %v1270 = vmul.f32 %v1268, %v713
      %v1271 = vmul.f32 %v1269, %v1269
      %v1272 = vsub.f32 %v1270, %v1271
      %v1273 = vadd.f32 %v1272, 1e-05
      %v1274 = vrsqrt.pop %v1273
      %v1275 = vmul.f32 %v1274, %v1273
      %v1276 = vmul.f32 %v1275, %v1274
      %v1277 = vmul.f32 0.5, %v1276
      %v1278 = vsub.f32 1.5, %v1277
      %v1279 = vmul.f32 %v1274, %v1278
      %vm1280 = vweird.f32 %v1273
      %vm1281 = vweird.f32 %v1274
      %vm1282 = vmor %vm1280, %vm1281
      %v1283 = vsel %vm1282, %v1274, %v1279
      %v1284 = vsub.f32 %v1220, %v1269
      %v1285 = vmul.f32 %v1284, %v1283
      %v1286 = vmax.f32 %v1253, 0.0
      %v1287 = vmax.f32 %v1285, 0.0
      %v1288 = vrot.slane %v1286, 7
      %v1289 = vrot.slane %v1287, 7
      %v1290 = vsel %vm406, %v1288, %v1289
      %v1291 = vsel %vm406, %v1289, %v1288
      %v1292 = vrot.slane %v1286, 1
      %v1293 = vrot.slane %v1287, 1
      %v1294 = vsel %vm411, %v1292, %v1293
      %v1295 = vsel %vm411, %v1293, %v1292
      %v1296 = vmul.f32 %v1291, %v170
      %v1297 = vmul.f32 %v1290, %v171
      %v1298 = vmul.f32 %v1294, %v158
      %v1299 = vmul.f32 %v1295, %v159
      %v1300 = vadd.f32 %v1296, %v1298
      %v1301 = vadd.f32 %v1297, %v1299
      %v1302 = vmul.f32 %v1294, %v172
      %v1303 = vmul.f32 %v1295, %v173
      %v1304 = vmul.f32 %v1291, %v168
      %v1305 = vmul.f32 %v1290, %v169
      %v1306 = vadd.f32 %v1302, %v1304
      %v1307 = vadd.f32 %v1303, %v1305
      %1310 = vrot.lane.b32.xlu0 %v1286, 64
      %v1311 = vpop.permute.xlu0 %1310
      %1312 = vrot.lane.b32.xlu0 %v1287, 64
      %v1313 = vpop.permute.xlu0 %1312
      %v1316 = vsel %vm212, %v1300, %v1311
      %v1317 = vsel %vm212, %v1301, %v1313
      %v1318 = vld [vmem:[%s1 + $0x348] sm:$0xff]
      %v1319 = vld [vmem:[%s1 + $0x350] sm:$0xff]
      %v1320 = vld [vmem:[%s1 + $0x358] sm:$0xff]
      %v1321 = vld [vmem:[%s1 + $0x360] sm:$0xff]
      %v1322 = vld [vmem:[%s1 + $0x368] sm:$0xff]
      %v1323 = vld [vmem:[%s1 + $0x370] sm:$0xff]
      %v1324 = vld [vmem:[%s1 + $0x378] sm:$0xff]
      %v1325 = vld [vmem:[%s1 + $0x380] sm:$0xff]
      %v1326 = vld [vmem:[%s1 + $0x388] sm:$0xff]
      %v1327 = vld [vmem:[%s1 + $0x390] sm:$0xff]
      %v1328 = vld [vmem:[%s1 + $0x398] sm:$0xff]
      %v1329 = vld [vmem:[%s1 + $0x3a0] sm:$0xff]
      %v1330 = vld [vmem:[%s1 + $0x3a8] sm:$0xff]
      %v1331 = vld [vmem:[%s1 + $0x3b0] sm:$0xff]
      %v1332 = vld [vmem:[%s1 + $0x3b8] sm:$0xff]
      %v1333 = vld [vmem:[%s1 + $0x3c0] sm:$0xff]
      %v1334 = vld [vmem:[%s1 + $0x3c8] sm:$0xff]
      %v1335 = vld [vmem:[%s1 + $0x3d0] sm:$0xff]
      %v1336 = vld [vmem:[%s1 + $0x3d8] sm:$0xff]
      %v1337 = vld [vmem:[%s1 + $0x3e0] sm:$0xff]
      %v1338 = vld [vmem:[%s1 + $0x3e8] sm:$0xff]
      %v1339 = vld [vmem:[%s1 + $0x3f0] sm:$0xff]
      %v1340 = vld [vmem:[%s1 + $0x3f8] sm:$0xff]
      %v1341 = vld [vmem:[%s1 + $0x400] sm:$0xff]
      %v1343 = vsel %vm212, %v1306, 0
      %v1346 = vsel %vm212, %v1307, 0
      %1348 = vmatpush.msra.mxu0 %v1333
      %1349 = vmatpush.msra.mxu0 %v1332
      %1350 = vmatpush.msra.mxu0 %v1331
      %1351 = vmatpush.msra.mxu0 %v1330
      %1352 = vmatpush.msra.mxu0 %v1329
      %1353 = vmatpush.msra.mxu0 %v1328
      %1354 = vmatpush.msra.mxu0 %v1327
      %1355 = vmatpush.msra.mxu0 %v1326
      %1356 = vmatpush.msra.mxu0 %v1325
      %1357 = vmatpush.msra.mxu0 %v1324
      %1358 = vmatpush.msra.mxu0 %v1323
      %1359 = vmatpush.msra.mxu0 %v1322
      %1360 = vmatpush.msra.mxu0 %v1321
      %1361 = vmatpush.msra.mxu0 %v1320
      %1362 = vmatpush.msra.mxu0 %v1319
      %1363 = vmatpush.msra.mxu0 %v1318
      %1364 = vmatmul.f32.gmra.mxu0 %v1316
      %v1365 = vpop.f32.mrf.mxu0
      %v1366 = vadd.f32 0.0, %v1365
      %1367 = vmatmul.f32.gmra.mxu0 %v1317
      %v1368 = vpop.f32.mrf.mxu0
      %v1369 = vadd.f32 0.0, %v1368
      %1370 = vdwg.mxu0
      %1371 = vmatpush.msra.mxu0 0.0
      %1372 = vmatpush.msra.mxu0 0.0
      %1373 = vmatpush.msra.mxu0 0.0
      %1374 = vmatpush.msra.mxu0 0.0
      %1375 = vmatpush.msra.mxu0 0.0
      %1376 = vmatpush.msra.mxu0 0.0
      %1377 = vmatpush.msra.mxu0 0.0
      %1378 = vmatpush.msra.mxu0 0.0
      %1379 = vmatpush.msra.mxu0 %v1341
      %1380 = vmatpush.msra.mxu0 %v1340
      %1381 = vmatpush.msra.mxu0 %v1339
      %1382 = vmatpush.msra.mxu0 %v1338
      %1383 = vmatpush.msra.mxu0 %v1337
      %1384 = vmatpush.msra.mxu0 %v1336
      %1385 = vmatpush.msra.mxu0 %v1335
      %1386 = vmatpush.msra.mxu0 %v1334
      %1387 = vmatmul.f32.gmra.mxu0 %v1343
      %v1388 = vpop.f32.mrf.mxu0
      %v1389 = vadd.f32 %v1366, %v1388
      %1390 = vmatmul.f32.gmra.mxu0 %v1346
      %v1391 = vpop.f32.mrf.mxu0
      %v1392 = vadd.f32 %v1369, %v1391
      %1393 = vdwg.mxu0
      %v1394 = vsel %vm212, %v1389, 0.0
      %v1395 = vrot.slane %v1394, 4
      %v1396 = vadd.f32 %v1394, %v1395
      %v1397 = vrot.slane %v1396, 2
      %v1398 = vadd.f32 %v1396, %v1397
      %v1399 = vrot.slane %v1398, 1
      %v1400 = vadd.f32 %v1398, %v1399
      %v1401 = vmul.f32 %v1389, %v1389
      %v1402 = vsel %vm212, %v1401, 0.0
      %v1403 = vrot.slane %v1402, 4
      %v1404 = vadd.f32 %v1402, %v1403
      %v1405 = vrot.slane %v1404, 2
      %v1406 = vadd.f32 %v1404, %v1405
      %v1407 = vrot.slane %v1406, 1
      %v1408 = vadd.f32 %v1406, %v1407
      %v1409 = vmul.f32 %v1400, %v713
      %v1410 = vmul.f32 %v1408, %v713
      %v1411 = vmul.f32 %v1409, %v1409
      %v1412 = vsub.f32 %v1410, %v1411
      %v1413 = vadd.f32 %v1412, 1e-05
      %v1414 = vrsqrt.pop %v1413
      %v1415 = vmul.f32 %v1414, %v1413
      %v1416 = vmul.f32 %v1415, %v1414
      %v1417 = vmul.f32 0.5, %v1416
      %v1418 = vsub.f32 1.5, %v1417
      %v1419 = vmul.f32 %v1414, %v1418
      %vm1420 = vweird.f32 %v1413
      %vm1421 = vweird.f32 %v1414
      %vm1422 = vmor %vm1420, %vm1421
      %v1423 = vsel %vm1422, %v1414, %v1419
      %v1424 = vsub.f32 %v1389, %v1409
      %v1425 = vmul.f32 %v1424, %v1423
      %v1426 = vsel %vm212, %v1392, 0.0
      %v1427 = vrot.slane %v1426, 4
      %v1428 = vadd.f32 %v1426, %v1427
      %v1429 = vrot.slane %v1428, 2
      %v1430 = vadd.f32 %v1428, %v1429
      %v1431 = vrot.slane %v1430, 1
      %v1432 = vadd.f32 %v1430, %v1431
      %v1433 = vmul.f32 %v1392, %v1392
      %v1434 = vsel %vm212, %v1433, 0.0
      %v1435 = vrot.slane %v1434, 4
      %v1436 = vadd.f32 %v1434, %v1435
      %v1437 = vrot.slane %v1436, 2
      %v1438 = vadd.f32 %v1436, %v1437
      %v1439 = vrot.slane %v1438, 1
      %v1440 = vadd.f32 %v1438, %v1439
      %v1441 = vmul.f32 %v1432, %v713
      %v1442 = vmul.f32 %v1440, %v713
      %v1443 = vmul.f32 %v1441, %v1441
      %v1444 = vsub.f32 %v1442, %v1443
      %v1445 = vadd.f32 %v1444, 1e-05
      %v1446 = vrsqrt.pop %v1445
      %v1447 = vmul.f32 %v1446, %v1445
      %v1448 = vmul.f32 %v1447, %v1446
      %v1449 = vmul.f32 0.5, %v1448
      %v1450 = vsub.f32 1.5, %v1449
      %v1451 = vmul.f32 %v1446, %v1450
      %vm1452 = vweird.f32 %v1445
      %vm1453 = vweird.f32 %v1446
      %vm1454 = vmor %vm1452, %vm1453
      %v1455 = vsel %vm1454, %v1446, %v1451
      %v1456 = vsub.f32 %v1392, %v1441
      %v1457 = vmul.f32 %v1456, %v1455
      %v1458 = vadd.f32 %v1114, %v1425
      %v1459 = vadd.f32 %v1115, %v1457
      %v1460 = vrot.slane %v1458, 7
      %v1461 = vrot.slane %v1459, 7
      %v1462 = vsel %vm406, %v1460, %v1461
      %v1463 = vsel %vm406, %v1461, %v1460
      %v1464 = vrot.slane %v1458, 1
      %v1465 = vrot.slane %v1459, 1
      %v1466 = vsel %vm411, %v1464, %v1465
      %v1467 = vsel %vm411, %v1465, %v1464
      %v1468 = vmul.f32 %v1463, %v170
      %v1469 = vmul.f32 %v1462, %v171
      %v1470 = vmul.f32 %v1466, %v172
      %v1471 = vmul.f32 %v1467, %v173
      %1474 = vrot.lane.b32.xlu0 %v1458, 64
      %v1475 = vpop.permute.xlu0 %1474
      %1476 = vrot.lane.b32.xlu0 %v1459, 64
      %v1477 = vpop.permute.xlu0 %1476
      %v1480 = vsel %vm212, %v1468, %v1475
      %v1481 = vsel %vm212, %v1469, %v1477
      %v1482 = vld [vmem:[%s1 + $0x408] sm:$0xff]
      %v1483 = vld [vmem:[%s1 + $0x410] sm:$0xff]
      %v1484 = vld [vmem:[%s1 + $0x418] sm:$0xff]
      %v1485 = vld [vmem:[%s1 + $0x420] sm:$0xff]
      %v1486 = vld [vmem:[%s1 + $0x428] sm:$0xff]
      %v1487 = vld [vmem:[%s1 + $0x430] sm:$0xff]
      %v1488 = vld [vmem:[%s1 + $0x438] sm:$0xff]
      %v1489 = vld [vmem:[%s1 + $0x440] sm:$0xff]
      %v1490 = vld [vmem:[%s1 + $0x448] sm:$0xff]
      %v1491 = vld [vmem:[%s1 + $0x450] sm:$0xff]
      %v1492 = vld [vmem:[%s1 + $0x458] sm:$0xff]
      %v1493 = vld [vmem:[%s1 + $0x460] sm:$0xff]
      %v1494 = vld [vmem:[%s1 + $0x468] sm:$0xff]
      %v1495 = vld [vmem:[%s1 + $0x470] sm:$0xff]
      %v1496 = vld [vmem:[%s1 + $0x478] sm:$0xff]
      %v1497 = vld [vmem:[%s1 + $0x480] sm:$0xff]
      %v1498 = vld [vmem:[%s1 + $0x488] sm:$0xff]
      %v1499 = vld [vmem:[%s1 + $0x490] sm:$0xff]
      %v1500 = vld [vmem:[%s1 + $0x498] sm:$0xff]
      %v1501 = vld [vmem:[%s1 + $0x4a0] sm:$0xff]
      %v1502 = vld [vmem:[%s1 + $0x4a8] sm:$0xff]
      %v1503 = vld [vmem:[%s1 + $0x4b0] sm:$0xff]
      %v1504 = vld [vmem:[%s1 + $0x4b8] sm:$0xff]
      %v1505 = vld [vmem:[%s1 + $0x4c0] sm:$0xff]
      %v1507 = vsel %vm212, %v1470, 0
      %v1510 = vsel %vm212, %v1471, 0
      %1512 = vmatpush.msra.mxu0 %v1497
      %1513 = vmatpush.msra.mxu0 %v1496
      %1514 = vmatpush.msra.mxu0 %v1495
      %1515 = vmatpush.msra.mxu0 %v1494
      %1516 = vmatpush.msra.mxu0 %v1493
      %1517 = vmatpush.msra.mxu0 %v1492
      %1518 = vmatpush.msra.mxu0 %v1491
      %1519 = vmatpush.msra.mxu0 %v1490
      %1520 = vmatpush.msra.mxu0 %v1489
      %1521 = vmatpush.msra.mxu0 %v1488
      %1522 = vmatpush.msra.mxu0 %v1487
      %1523 = vmatpush.msra.mxu0 %v1486
      %1524 = vmatpush.msra.mxu0 %v1485
      %1525 = vmatpush.msra.mxu0 %v1484
      %1526 = vmatpush.msra.mxu0 %v1483
      %1527 = vmatpush.msra.mxu0 %v1482
      %1528 = vmatmul.f32.gmra.mxu0 %v1480
      %v1529 = vpop.f32.mrf.mxu0
      %v1530 = vadd.f32 0.0, %v1529
      %1531 = vmatmul.f32.gmra.mxu0 %v1481
      %v1532 = vpop.f32.mrf.mxu0
      %v1533 = vadd.f32 0.0, %v1532
      %1534 = vdwg.mxu0
      %1535 = vmatpush.msra.mxu0 0.0
      %1536 = vmatpush.msra.mxu0 0.0
      %1537 = vmatpush.msra.mxu0 0.0
      %1538 = vmatpush.msra.mxu0 0.0
      %1539 = vmatpush.msra.mxu0 0.0
      %1540 = vmatpush.msra.mxu0 0.0
      %1541 = vmatpush.msra.mxu0 0.0
      %1542 = vmatpush.msra.mxu0 0.0
      %1543 = vmatpush.msra.mxu0 %v1505
      %1544 = vmatpush.msra.mxu0 %v1504
      %1545 = vmatpush.msra.mxu0 %v1503
      %1546 = vmatpush.msra.mxu0 %v1502
      %1547 = vmatpush.msra.mxu0 %v1501
      %1548 = vmatpush.msra.mxu0 %v1500
      %1549 = vmatpush.msra.mxu0 %v1499
      %1550 = vmatpush.msra.mxu0 %v1498
      %1551 = vmatmul.f32.gmra.mxu0 %v1507
      %v1552 = vpop.f32.mrf.mxu0
      %v1553 = vadd.f32 %v1530, %v1552
      %1554 = vmatmul.f32.gmra.mxu0 %v1510
      %v1555 = vpop.f32.mrf.mxu0
      %v1556 = vadd.f32 %v1533, %v1555
      %1557 = vdwg.mxu0
      %v1558 = vsel %vm212, %v1553, 0.0
      %v1559 = vrot.slane %v1558, 4
      %v1560 = vadd.f32 %v1558, %v1559
      %v1561 = vrot.slane %v1560, 2
      %v1562 = vadd.f32 %v1560, %v1561
      %v1563 = vrot.slane %v1562, 1
      %v1564 = vadd.f32 %v1562, %v1563
      %v1565 = vmul.f32 %v1553, %v1553
      %v1566 = vsel %vm212, %v1565, 0.0
      %v1567 = vrot.slane %v1566, 4
      %v1568 = vadd.f32 %v1566, %v1567
      %v1569 = vrot.slane %v1568, 2
      %v1570 = vadd.f32 %v1568, %v1569
      %v1571 = vrot.slane %v1570, 1
      %v1572 = vadd.f32 %v1570, %v1571
      %1574 = vrot.lane.b32.xlu0 %v1564, 96
      %v1575 = vpop.permute.xlu0 %1574
      %v1577 = vadd.f32 %v1564, %v1575
      %1579 = vrot.lane.b32.xlu0 %v1572, 96
      %v1580 = vpop.permute.xlu0 %1579
      %v1582 = vadd.f32 %v1572, %v1580
      %v1583 = vmul.f32 %v1577, %v520
      %v1584 = vmul.f32 %v1582, %v520
      %v1585 = vmul.f32 %v1583, %v1583
      %v1586 = vsub.f32 %v1584, %v1585
      %v1587 = vadd.f32 %v1586, 1e-05
      %v1588 = vrsqrt.pop %v1587
      %v1589 = vmul.f32 %v1588, %v1587
      %v1590 = vmul.f32 %v1589, %v1588
      %v1591 = vmul.f32 0.5, %v1590
      %v1592 = vsub.f32 1.5, %v1591
      %v1593 = vmul.f32 %v1588, %v1592
      %vm1594 = vweird.f32 %v1587
      %vm1595 = vweird.f32 %v1588
      %vm1596 = vmor %vm1594, %vm1595
      %v1597 = vsel %vm1596, %v1588, %v1593
      %1599 = vrot.lane.b32.xlu0 %v1583, 32
      %v1600 = vpop.permute.xlu0 %1599
      %v1602 = vsel %vm288, %v1583, %v1600
      %1604 = vrot.lane.b32.xlu0 %v1597, 32
      %v1605 = vpop.permute.xlu0 %1604
      %v1607 = vsel %vm288, %v1597, %v1605
      %v1608 = vperm.slane %v1602, 0
      %v1609 = vsub.f32 %v1553, %v1608
      %v1610 = vperm.slane %v1607, 0
      %v1611 = vmul.f32 %v1609, %v1610
      %v1612 = vsel %vm212, %v1556, 0.0
      %v1613 = vrot.slane %v1612, 4
      %v1614 = vadd.f32 %v1612, %v1613
      %v1615 = vrot.slane %v1614, 2
      %v1616 = vadd.f32 %v1614, %v1615
      %v1617 = vrot.slane %v1616, 1
      %v1618 = vadd.f32 %v1616, %v1617
      %v1619 = vmul.f32 %v1556, %v1556
      %v1620 = vsel %vm212, %v1619, 0.0
      %v1621 = vrot.slane %v1620, 4
      %v1622 = vadd.f32 %v1620, %v1621
      %v1623 = vrot.slane %v1622, 2
      %v1624 = vadd.f32 %v1622, %v1623
      %v1625 = vrot.slane %v1624, 1
      %v1626 = vadd.f32 %v1624, %v1625
      %1628 = vrot.lane.b32.xlu0 %v1618, 96
      %v1629 = vpop.permute.xlu0 %1628
      %v1631 = vadd.f32 %v1618, %v1629
      %1633 = vrot.lane.b32.xlu0 %v1626, 96
      %v1634 = vpop.permute.xlu0 %1633
      %v1636 = vadd.f32 %v1626, %v1634
      %v1637 = vmul.f32 %v1631, %v520
      %v1638 = vmul.f32 %v1636, %v520
      %v1639 = vmul.f32 %v1637, %v1637
      %v1640 = vsub.f32 %v1638, %v1639
      %v1641 = vadd.f32 %v1640, 1e-05
      %v1642 = vrsqrt.pop %v1641
      %v1643 = vmul.f32 %v1642, %v1641
      %v1644 = vmul.f32 %v1643, %v1642
      %v1645 = vmul.f32 0.5, %v1644
      %v1646 = vsub.f32 1.5, %v1645
      %v1647 = vmul.f32 %v1642, %v1646
      %vm1648 = vweird.f32 %v1641
      %vm1649 = vweird.f32 %v1642
      %vm1650 = vmor %vm1648, %vm1649
      %v1651 = vsel %vm1650, %v1642, %v1647
      %1653 = vrot.lane.b32.xlu0 %v1637, 32
      %v1654 = vpop.permute.xlu0 %1653
      %v1656 = vsel %vm288, %v1637, %v1654
      %1658 = vrot.lane.b32.xlu0 %v1651, 32
      %v1659 = vpop.permute.xlu0 %1658
      %v1661 = vsel %vm288, %v1651, %v1659
      %v1662 = vperm.slane %v1656, 0
      %v1663 = vsub.f32 %v1556, %v1662
      %v1664 = vperm.slane %v1661, 0
      %v1665 = vmul.f32 %v1663, %v1664
      %v1666 = vld [vmem:[%s1 + $0x4c8] sm:$0x3]
      %v1667 = vperm.slane %v1666, 0
      %v1668 = vmul.f32 %v1611, %v1667
      %v1669 = vmul.f32 %v1665, %v1667
      %v1670 = vperm.slane %v1666, 1
      %v1671 = vadd.f32 %v1668, %v1670
      %v1672 = vadd.f32 %v1669, %v1670
      %v1673 = vmax.f32 %v1671, 0.0
      %v1674 = vmax.f32 %v1672, 0.0
      %v1675 = vrot.slane %v1673, 7
      %v1676 = vrot.slane %v1674, 7
      %v1677 = vsel %vm406, %v1675, %v1676
      %v1678 = vsel %vm406, %v1676, %v1675
      %v1679 = vrot.slane %v1673, 1
      %v1680 = vrot.slane %v1674, 1
      %v1681 = vsel %vm411, %v1679, %v1680
      %v1682 = vsel %vm411, %v1680, %v1679
      %v1683 = vmul.f32 %v1678, %v170
      %v1684 = vmul.f32 %v1677, %v171
      %v1685 = vmul.f32 %v1681, %v172
      %v1686 = vmul.f32 %v1682, %v173
      %1689 = vrot.lane.b32.xlu0 %v1683, 96
      %v1690 = vpop.permute.xlu0 %1689
      %1691 = vrot.lane.b32.xlu0 %v1684, 96
      %v1692 = vpop.permute.xlu0 %1691
      %1697 = vrot.lane.b32.xlu0 %v1673, 32
      %v1698 = vpop.permute.xlu0 %1697
      %1699 = vrot.lane.b32.xlu0 %v1674, 32
      %v1700 = vpop.permute.xlu0 %1699
      %1705 = vrot.lane.b32.xlu0 %v1685, 96
      %v1706 = vpop.permute.xlu0 %1705
      %1707 = vrot.lane.b32.xlu0 %v1686, 96
      %v1708 = vpop.permute.xlu0 %1707
      %v1711 = vsel %vm288, %v1690, %v1698
      %v1712 = vsel %vm288, %v1692, %v1700
      %v1713 = vsel %vm459, %v1711, %v1706
      %v1714 = vsel %vm459, %v1712, %v1708
      %v1715 = vld [vmem:[%s1 + $0x4d0] sm:$0xff]
      %v1716 = vld [vmem:[%s1 + $0x4d8] sm:$0xff]
      %v1717 = vld [vmem:[%s1 + $0x4e0] sm:$0xff]
      %v1718 = vld [vmem:[%s1 + $0x4e8] sm:$0xff]
      %v1719 = vld [vmem:[%s1 + $0x4f0] sm:$0xff]
      %v1720 = vld [vmem:[%s1 + $0x4f8] sm:$0xff]
      %v1721 = vld [vmem:[%s1 + $0x500] sm:$0xff]
      %v1722 = vld [vmem:[%s1 + $0x508] sm:$0xff]
      %v1723 = vld [vmem:[%s1 + $0x510] sm:$0xff]
      %v1724 = vld [vmem:[%s1 + $0x518] sm:$0xff]
      %v1725 = vld [vmem:[%s1 + $0x520] sm:$0xff]
      %v1726 = vld [vmem:[%s1 + $0x528] sm:$0xff]
      %v1727 = vld [vmem:[%s1 + $0x530] sm:$0xff]
      %v1728 = vld [vmem:[%s1 + $0x538] sm:$0xff]
      %v1729 = vld [vmem:[%s1 + $0x540] sm:$0xff]
      %v1730 = vld [vmem:[%s1 + $0x548] sm:$0xff]
      %1731 = vmatpush.msra.mxu0 %v1730
      %1732 = vmatpush.msra.mxu0 %v1729
      %1733 = vmatpush.msra.mxu0 %v1728
      %1734 = vmatpush.msra.mxu0 %v1727
      %1735 = vmatpush.msra.mxu0 %v1726
      %1736 = vmatpush.msra.mxu0 %v1725
      %1737 = vmatpush.msra.mxu0 %v1724
      %1738 = vmatpush.msra.mxu0 %v1723
      %1739 = vmatpush.msra.mxu0 %v1722
      %1740 = vmatpush.msra.mxu0 %v1721
      %1741 = vmatpush.msra.mxu0 %v1720
      %1742 = vmatpush.msra.mxu0 %v1719
      %1743 = vmatpush.msra.mxu0 %v1718
      %1744 = vmatpush.msra.mxu0 %v1717
      %1745 = vmatpush.msra.mxu0 %v1716
      %1746 = vmatpush.msra.mxu0 %v1715
      %1747 = vmatmul.f32.gmra.mxu0 %v1713
      %v1748 = vpop.f32.mrf.mxu0
      %v1749 = vadd.f32 0.0, %v1748
      %1750 = vmatmul.f32.gmra.mxu0 %v1714
      %v1751 = vpop.f32.mrf.mxu0
      %v1752 = vadd.f32 0.0, %v1751
      %1753 = vdwg.mxu0
      %v1754 = vsel %vm212, %v1749, 0.0
      %v1755 = vrot.slane %v1754, 4
      %v1756 = vadd.f32 %v1754, %v1755
      %v1757 = vrot.slane %v1756, 2
      %v1758 = vadd.f32 %v1756, %v1757
      %v1759 = vrot.slane %v1758, 1
      %v1760 = vadd.f32 %v1758, %v1759
      %v1761 = vmul.f32 %v1749, %v1749
      %v1762 = vsel %vm212, %v1761, 0.0
      %v1763 = vrot.slane %v1762, 4
      %v1764 = vadd.f32 %v1762, %v1763
      %v1765 = vrot.slane %v1764, 2
      %v1766 = vadd.f32 %v1764, %v1765
      %v1767 = vrot.slane %v1766, 1
      %v1768 = vadd.f32 %v1766, %v1767
      %1770 = vrot.lane.b32.xlu0 %v1760, 112
      %v1771 = vpop.permute.xlu0 %1770
      %v1773 = vadd.f32 %v1760, %v1771
      %1775 = vrot.lane.b32.xlu0 %v1768, 112
      %v1776 = vpop.permute.xlu0 %1775
      %v1778 = vadd.f32 %v1768, %v1776
      %1779 = vrot.lane.b32.xlu0 %v1760, 96
      %v1780 = vpop.permute.xlu0 %1779
      %v1782 = vadd.f32 %v1773, %v1780
      %1783 = vrot.lane.b32.xlu0 %v1768, 96
      %v1784 = vpop.permute.xlu0 %1783
      %v1786 = vadd.f32 %v1778, %v1784
      %1787 = vrot.lane.b32.xlu0 %v1760, 80
      %v1788 = vpop.permute.xlu0 %1787
      %v1790 = vadd.f32 %v1782, %v1788
      %1791 = vrot.lane.b32.xlu0 %v1768, 80
      %v1792 = vpop.permute.xlu0 %1791
      %v1794 = vadd.f32 %v1786, %v1792
      %v1795 = vmul.f32 %v1790, %v260
      %v1796 = vmul.f32 %v1794, %v260
      %v1797 = vmul.f32 %v1795, %v1795
      %v1798 = vsub.f32 %v1796, %v1797
      %v1799 = vadd.f32 %v1798, 1e-05
      %v1800 = vrsqrt.pop %v1799
      %v1801 = vmul.f32 %v1800, %v1799
      %v1802 = vmul.f32 %v1801, %v1800
      %v1803 = vmul.f32 0.5, %v1802
      %v1804 = vsub.f32 1.5, %v1803
      %v1805 = vmul.f32 %v1800, %v1804
      %vm1806 = vweird.f32 %v1799
      %vm1807 = vweird.f32 %v1800
      %vm1808 = vmor %vm1806, %vm1807
      %v1809 = vsel %vm1808, %v1800, %v1805
      %1811 = vrot.lane.b32.xlu0 %v1795, 16
      %v1812 = vpop.permute.xlu0 %1811
      %1814 = vrot.lane.b32.xlu0 %v1795, 32
      %v1815 = vpop.permute.xlu0 %1814
      %1817 = vrot.lane.b32.xlu0 %v1795, 48
      %v1818 = vpop.permute.xlu0 %1817
      %v1820 = vsel %vm286, %v1795, %v1812
      %v1821 = vsel %vm288, %v1820, %v1815
      %v1822 = vsel %vm290, %v1821, %v1818
      %1824 = vrot.lane.b32.xlu0 %v1809, 16
      %v1825 = vpop.permute.xlu0 %1824
      %1827 = vrot.lane.b32.xlu0 %v1809, 32
      %v1828 = vpop.permute.xlu0 %1827
      %1830 = vrot.lane.b32.xlu0 %v1809, 48
      %v1831 = vpop.permute.xlu0 %1830
      %v1833 = vsel %vm286, %v1809, %v1825
      %v1834 = vsel %vm288, %v1833, %v1828
      %v1835 = vsel %vm290, %v1834, %v1831
      %v1836 = vperm.slane %v1822, 0
      %v1837 = vsub.f32 %v1749, %v1836
      %v1838 = vperm.slane %v1835, 0
      %v1839 = vmul.f32 %v1837, %v1838
      %v1840 = vsel %vm212, %v1752, 0.0
      %v1841 = vrot.slane %v1840, 4
      %v1842 = vadd.f32 %v1840, %v1841
      %v1843 = vrot.slane %v1842, 2
      %v1844 = vadd.f32 %v1842, %v1843
      %v1845 = vrot.slane %v1844, 1
      %v1846 = vadd.f32 %v1844, %v1845
      %v1847 = vmul.f32 %v1752, %v1752
      %v1848 = vsel %vm212, %v1847, 0.0
      %v1849 = vrot.slane %v1848, 4
      %v1850 = vadd.f32 %v1848, %v1849
      %v1851 = vrot.slane %v1850, 2
      %v1852 = vadd.f32 %v1850, %v1851
      %v1853 = vrot.slane %v1852, 1
      %v1854 = vadd.f32 %v1852, %v1853
      %1856 = vrot.lane.b32.xlu0 %v1846, 112
      %v1857 = vpop.permute.xlu0 %1856
      %v1859 = vadd.f32 %v1846, %v1857
      %1861 = vrot.lane.b32.xlu0 %v1854, 112
      %v1862 = vpop.permute.xlu0 %1861
      %v1864 = vadd.f32 %v1854, %v1862
      %1865 = vrot.lane.b32.xlu0 %v1846, 96
      %v1866 = vpop.permute.xlu0 %1865
      %v1868 = vadd.f32 %v1859, %v1866
      %1869 = vrot.lane.b32.xlu0 %v1854, 96
      %v1870 = vpop.permute.xlu0 %1869
      %v1872 = vadd.f32 %v1864, %v1870
      %1873 = vrot.lane.b32.xlu0 %v1846, 80
      %v1874 = vpop.permute.xlu0 %1873
      %v1876 = vadd.f32 %v1868, %v1874
      %1877 = vrot.lane.b32.xlu0 %v1854, 80
      %v1878 = vpop.permute.xlu0 %1877
      %v1880 = vadd.f32 %v1872, %v1878
      %v1881 = vmul.f32 %v1876, %v260
      %v1882 = vmul.f32 %v1880, %v260
      %v1883 = vmul.f32 %v1881, %v1881
      %v1884 = vsub.f32 %v1882, %v1883
      %v1885 = vadd.f32 %v1884, 1e-05
      %v1886 = vrsqrt.pop %v1885
      %v1887 = vmul.f32 %v1886, %v1885
      %v1888 = vmul.f32 %v1887, %v1886
      %v1889 = vmul.f32 0.5, %v1888
      %v1890 = vsub.f32 1.5, %v1889
      %v1891 = vmul.f32 %v1886, %v1890
      %vm1892 = vweird.f32 %v1885
      %vm1893 = vweird.f32 %v1886
      %vm1894 = vmor %vm1892, %vm1893
      %v1895 = vsel %vm1894, %v1886, %v1891
      %1897 = vrot.lane.b32.xlu0 %v1881, 16
      %v1898 = vpop.permute.xlu0 %1897
      %1900 = vrot.lane.b32.xlu0 %v1881, 32
      %v1901 = vpop.permute.xlu0 %1900
      %1903 = vrot.lane.b32.xlu0 %v1881, 48
      %v1904 = vpop.permute.xlu0 %1903
      %v1906 = vsel %vm286, %v1881, %v1898
      %v1907 = vsel %vm288, %v1906, %v1901
      %v1908 = vsel %vm290, %v1907, %v1904
      %1910 = vrot.lane.b32.xlu0 %v1895, 16
      %v1911 = vpop.permute.xlu0 %1910
      %1913 = vrot.lane.b32.xlu0 %v1895, 32
      %v1914 = vpop.permute.xlu0 %1913
      %1916 = vrot.lane.b32.xlu0 %v1895, 48
      %v1917 = vpop.permute.xlu0 %1916
      %v1919 = vsel %vm286, %v1895, %v1911
      %v1920 = vsel %vm288, %v1919, %v1914
      %v1921 = vsel %vm290, %v1920, %v1917
      %v1922 = vperm.slane %v1908, 0
      %v1923 = vsub.f32 %v1752, %v1922
      %v1924 = vperm.slane %v1921, 0
      %v1925 = vmul.f32 %v1923, %v1924
      %v1926 = vld [vmem:[%s1 + $0x550] sm:$0x3]
      %v1927 = vperm.slane %v1926, 0
      %v1928 = vmul.f32 %v1839, %v1927
      %v1929 = vmul.f32 %v1925, %v1927
      %v1930 = vperm.slane %v1926, 1
      %v1931 = vadd.f32 %v1928, %v1930
      %v1932 = vadd.f32 %v1929, %v1930
      %v1933 = vmax.f32 %v1931, 0.0
      %v1934 = vmax.f32 %v1932, 0.0
      %v1935 = vrot.slane %v1933, 7
      %v1936 = vrot.slane %v1934, 7
      %v1937 = vsel %vm406, %v1935, %v1936
      %v1938 = vsel %vm406, %v1936, %v1935
      %v1939 = vrot.slane %v1933, 1
      %v1940 = vrot.slane %v1934, 1
      %v1941 = vsel %vm411, %v1939, %v1940
      %v1942 = vsel %vm411, %v1940, %v1939
      %1945 = vrot.lane.b32.xlu0 %v1933, 80
      %v1946 = vpop.permute.xlu0 %1945
      %1947 = vrot.lane.b32.xlu0 %v1934, 80
      %v1948 = vpop.permute.xlu0 %1947
      %1951 = vrot.lane.b32.xlu0 %v1933, 112
      %v1952 = vpop.permute.xlu0 %1951
      %1953 = vrot.lane.b32.xlu0 %v1934, 112
      %v1954 = vpop.permute.xlu0 %1953
      %1957 = vrot.lane.b32.xlu0 %v1933, 16
      %v1958 = vpop.permute.xlu0 %1957
      %1959 = vrot.lane.b32.xlu0 %v1934, 16
      %v1960 = vpop.permute.xlu0 %1959
      %v1963 = vsel %vm286, %v1946, %v1952
      %v1964 = vsel %vm286, %v1948, %v1954
      %v1965 = vsel %vm288, %v1963, %v1958
      %v1966 = vsel %vm288, %v1964, %v1960
      %1967 = vrot.lane.b32.xlu0 %v1933, 96
      %v1968 = vpop.permute.xlu0 %1967
      %1969 = vrot.lane.b32.xlu0 %v1934, 96
      %v1970 = vpop.permute.xlu0 %1969
      %1973 = vrot.lane.b32.xlu0 %v1933, 32
      %v1974 = vpop.permute.xlu0 %1973
      %1975 = vrot.lane.b32.xlu0 %v1934, 32
      %v1976 = vpop.permute.xlu0 %1975
      %v1979 = vsel %vm286, %v1968, %v1933
      %v1980 = vsel %vm286, %v1970, %v1934
      %v1981 = vsel %vm288, %v1979, %v1974
      %v1982 = vsel %vm288, %v1980, %v1976
      %v1983 = vmul.f32 %v1938, %v170
      %v1984 = vmul.f32 %v1937, %v171
      %v1985 = vmul.f32 %v1965, %v158
      %v1986 = vmul.f32 %v1966, %v159
      %1989 = vrot.lane.b32.xlu0 %v1985, 16
      %v1990 = vpop.permute.xlu0 %1989
      %1991 = vrot.lane.b32.xlu0 %v1986, 16
      %v1992 = vpop.permute.xlu0 %1991
      %v1995 = vadd.f32 %v1983, %v1990
      %v1996 = vadd.f32 %v1984, %v1992
      %v1997 = vmul.f32 %v1941, %v172
      %v1998 = vmul.f32 %v1942, %v173
      %v1999 = vmul.f32 %v1981, %v168
      %v2000 = vmul.f32 %v1982, %v169
      %v2001 = vadd.f32 %v1997, %v1999
      %v2002 = vadd.f32 %v1998, %v2000
      %2005 = vrot.lane.b32.xlu0 %v1995, 112
      %v2006 = vpop.permute.xlu0 %2005
      %2007 = vrot.lane.b32.xlu0 %v1996, 112
      %v2008 = vpop.permute.xlu0 %2007
      %2011 = vrot.lane.b32.xlu0 %v1933, 48
      %v2012 = vpop.permute.xlu0 %2011
      %2013 = vrot.lane.b32.xlu0 %v1934, 48
      %v2014 = vpop.permute.xlu0 %2013
      %2019 = vrot.lane.b32.xlu0 %v2001, 112
      %v2020 = vpop.permute.xlu0 %2019
      %2021 = vrot.lane.b32.xlu0 %v2002, 112
      %v2022 = vpop.permute.xlu0 %2021
      %v2025 = vsel %vm290, %v2006, %v2012
      %v2026 = vsel %vm290, %v2008, %v2014
      %vm2027 = vcmask 916480
      %v2028 = vsel %vm2027, %v2025, %v2020
      %v2029 = vsel %vm2027, %v2026, %v2022
      %v2030 = vld [vmem:[%s1 + $0x558] sm:$0xff]
      %v2031 = vld [vmem:[%s1 + $0x560] sm:$0xff]
      %v2032 = vld [vmem:[%s1 + $0x568] sm:$0xff]
      %v2033 = vld [vmem:[%s1 + $0x570] sm:$0xff]
      %v2034 = vld [vmem:[%s1 + $0x578] sm:$0xff]
      %v2035 = vld [vmem:[%s1 + $0x580] sm:$0xff]
      %v2036 = vld [vmem:[%s1 + $0x588] sm:$0xff]
      %v2037 = vld [vmem:[%s1 + $0x590] sm:$0xff]
      %v2038 = vld [vmem:[%s1 + $0x598] sm:$0xff]
      %v2039 = vld [vmem:[%s1 + $0x5a0] sm:$0xff]
      %v2040 = vld [vmem:[%s1 + $0x5a8] sm:$0xff]
      %v2041 = vld [vmem:[%s1 + $0x5b0] sm:$0xff]
      %v2042 = vld [vmem:[%s1 + $0x5b8] sm:$0xff]
      %v2043 = vld [vmem:[%s1 + $0x5c0] sm:$0xff]
      %v2044 = vld [vmem:[%s1 + $0x5c8] sm:$0xff]
      %v2045 = vld [vmem:[%s1 + $0x5d0] sm:$0xff]
      %v2046 = vld [vmem:[%s1 + $0x5d8] sm:$0xff]
      %v2047 = vld [vmem:[%s1 + $0x5e0] sm:$0xff]
      %v2048 = vld [vmem:[%s1 + $0x5e8] sm:$0xff]
      %v2049 = vld [vmem:[%s1 + $0x5f0] sm:$0xff]
      %v2050 = vld [vmem:[%s1 + $0x5f8] sm:$0x1]
      %v2051 = vperm.slane %v2050, 0
      %v2052 = vsel %vm288, %v2020, 0
      %v2054 = vsel %vm288, %v2022, 0
      %2056 = vmatpush.msra.mxu0 %v2045
      %2057 = vmatpush.msra.mxu0 %v2044
      %2058 = vmatpush.msra.mxu0 %v2043
      %2059 = vmatpush.msra.mxu0 %v2042
      %2060 = vmatpush.msra.mxu0 %v2041
      %2061 = vmatpush.msra.mxu0 %v2040
      %2062 = vmatpush.msra.mxu0 %v2039
      %2063 = vmatpush.msra.mxu0 %v2038
      %2064 = vmatpush.msra.mxu0 %v2037
      %2065 = vmatpush.msra.mxu0 %v2036
      %2066 = vmatpush.msra.mxu0 %v2035
      %2067 = vmatpush.msra.mxu0 %v2034
      %2068 = vmatpush.msra.mxu0 %v2033
      %2069 = vmatpush.msra.mxu0 %v2032
      %2070 = vmatpush.msra.mxu0 %v2031
      %2071 = vmatpush.msra.mxu0 %v2030
      %2072 = vmatmul.f32.gmra.mxu0 %v2028
      %v2073 = vpop.f32.mrf.mxu0
      %v2074 = vadd.f32 %v2051, %v2073
      %2075 = vmatmul.f32.gmra.mxu0 %v2029
      %v2076 = vpop.f32.mrf.mxu0
      %v2077 = vadd.f32 %v2051, %v2076
      %2078 = vdwg.mxu0
      %2079 = vmatpush.msra.mxu0 0.0
      %2080 = vmatpush.msra.mxu0 0.0
      %2081 = vmatpush.msra.mxu0 0.0
      %2082 = vmatpush.msra.mxu0 0.0
      %2083 = vmatpush.msra.mxu0 0.0
      %2084 = vmatpush.msra.mxu0 0.0
      %2085 = vmatpush.msra.mxu0 0.0
      %2086 = vmatpush.msra.mxu0 0.0
      %2087 = vmatpush.msra.mxu0 0.0
      %2088 = vmatpush.msra.mxu0 0.0
      %2089 = vmatpush.msra.mxu0 0.0
      %2090 = vmatpush.msra.mxu0 0.0
      %2091 = vmatpush.msra.mxu0 %v2049
      %2092 = vmatpush.msra.mxu0 %v2048
      %2093 = vmatpush.msra.mxu0 %v2047
      %2094 = vmatpush.msra.mxu0 %v2046
      %2095 = vmatmul.f32.gmra.mxu0 %v2052
      %v2096 = vpop.f32.mrf.mxu0
      %v2097 = vadd.f32 %v2074, %v2096
      %2098 = vmatmul.f32.gmra.mxu0 %v2054
      %v2099 = vpop.f32.mrf.mxu0
      %v2100 = vadd.f32 %v2077, %v2099
      %2101 = vdwg.mxu0
      %v2102 = vtanh.pop %v2097
      %v2103 = vtanh.pop %v2100
      %2104 = vst [vmem:[%s145] sm:$0xff] %v2102
      %2105 = vst [vmem:[%s145 + $0x8] sm:$0xff] %v2103
      %s2106 = smul.u32 2, %s13
      %p2107 = scmp.lt.s32.totalorder %s2106, 3
      %s2108 = scalar_select %p2107, %s2106, 3
      %s2109 = smul.addr %s2108, 8
      %s2110 = scalar_lea.vmem %s2, %s2109
      // Predicated region
      $region29: #{generator_forward.1} parent=27 // pred_check
        %p2111 = pneg %p78
      $region30: #{generator_forward.1} parent=27 // pred_check_branch
        %2113 = sbr.rel (%p2111) target = $region32
      $region31: #{generator_forward.1} parent=27 // pred_region
        %s2114 = smul.u32 2, %s13
      $region32: #{generator_forward.1} parent=27 // pred_fallthru
        _
    $region28: #{generator_forward.1} parent=5 // pred_fallthru
      _
    %p2115 = scmp.le.s32.totalorder 2, %s8
    // Predicated region
    $region33: #{generator_forward.1} parent=5 // pred_check
      %p2116 = pneg %p2115
    $region34: #{generator_forward.1} parent=5 // pred_check_branch
      %2118 = sbr.rel (%p2116) target = $region36
    $region35: #{generator_forward.1} parent=5 // pred_region
      %s2119 = ssub.s32 %s8, 2
      // Predicated region
      $region37: #{generator_forward.1} parent=35 // pred_check
        %p2120 = pneg %p84
      $region38: #{generator_forward.1} parent=35 // pred_check_branch
        %2122 = sbr.rel (%p2120) target = $region40
      $region39: #{generator_forward.1} parent=35 // pred_region
        %s2123 = smul.u32 2, %s14
        %p2124 = scmp.lt.s32.totalorder %s2123, 3
        %s2125 = scalar_select %p2124, %s2123, 3
        %s2126 = smul.addr %s2125, 8
        %s2127 = scalar_lea.vmem %s2, %s2126
      $region40: #{generator_forward.1} parent=35 // pred_fallthru
        _
    $region36: #{generator_forward.1} parent=5 // pred_fallthru
      _
  $region6: #{generator_forward.1} parent=0 // loop_footer
    %s12 = sadd.s32 1, %s8
  $region7: #{generator_forward.1} parent=0 // loop_footer_branch
    %7 = sbr.rel target = $region3
  $region8: #{generator_forward.1} parent=0 // loop_exit
    _

</llo_original>
